<compile_context>
chip_gen: v7x
topology: tpu7x:2x2x1
jax: 0.10.0
libtpu: 0.0.40
codegen_flags: <defaults>
</compile_context>

<pallas_src>
import math
import jax
import jax.numpy as jnp
from jax.experimental import pallas as pl
from jax.experimental.pallas import tpu as pltpu


def greedyfc_kernel(x_ref, scale_ref, shift_ref, w_ref, b_ref, o_ref):
    # x_ref:     (TILE_N, F_pad)  batch-tile rows, features (C*HW) on lanes
    # scale_ref: (1, F_pad)       BN scale, expanded per-feature (0 in padding)
    # shift_ref: (1, F_pad)       BN shift, expanded per-feature (0 in padding)
    # w_ref:     (F_pad, K_pad)   fc weight expanded: fc_w[k, c] / HW, zero-padded
    # b_ref:     (1, K_pad)       fc bias, zero-padded
    # o_ref:     (TILE_N, K_pad)
    y = jnp.maximum(x_ref[...] * scale_ref[...] + shift_ref[...], 0.0)
    o_ref[...] = (
        jnp.dot(y, w_ref[...],
                preferred_element_type=jnp.float32,
                precision=jax.lax.Precision.HIGHEST)
        + b_ref[...]
    )


def greedyfc_forward(x_nchw, gamma, beta, run_mean, run_var, fc_w, fc_b,
                     avg_size, eps=1e-5):
    """x_nchw: (N, C, H, W) float32; returns (N, num_classes) float32."""
    N, C, H, W = x_nchw.shape
    # Global-mean pooling == AvgPool2d(avg_size) only when the map is avg_size^2.
    assert H == avg_size and W == avg_size, (
        "kernel implements AvgPool2d(avg_size) as a global mean; "
        "requires H == W == avg_size")
    HW = H * W
    K = fc_w.shape[0]
    F = C * HW

    # Lane-dense padding of feature and class axes.
    F_pad = ((F + 127) // 128) * 128
    K_pad = max(128, ((K + 127) // 128) * 128)

    # Batch tile: big enough to amortize per-step overhead, small enough that
    # double-buffered input tiles fit comfortably in scoped VMEM on all gens
    # (v5e default scoped VMEM is 16 MiB).
    TILE_N = 512 if N >= 512 else ((N + 7) // 8) * 8
    while TILE_N > 8 and 2 * TILE_N * F_pad * 4 > 8 * 1024 * 1024:
        TILE_N //= 2
    N_pad = ((N + TILE_N - 1) // TILE_N) * TILE_N

    # Fold eval-mode BN into per-channel scale/shift, then expand per-feature
    # to match the (N, C*HW) flattening (channel-major, spatial-minor).
    scale_c = (gamma / jnp.sqrt(run_var + eps)).astype(jnp.float32)
    shift_c = (beta - run_mean * scale_c).astype(jnp.float32)
    scale = jnp.pad(jnp.repeat(scale_c, HW).reshape(1, F),
                    ((0, 0), (0, F_pad - F)))
    shift = jnp.pad(jnp.repeat(shift_c, HW).reshape(1, F),
                    ((0, 0), (0, F_pad - F)))

    # Fold the 1/HW average pool into an expanded FC weight (exact: the scale
    # is applied after ReLU, so it commutes into the matmul).
    w_exp = jnp.repeat(fc_w.T.astype(jnp.float32), HW, axis=0) / HW   # (F, K)
    w_exp = jnp.pad(w_exp, ((0, F_pad - F), (0, K_pad - K)))
    b = jnp.pad(fc_b.astype(jnp.float32), (0, K_pad - K)).reshape(1, K_pad)

    x = x_nchw.reshape(N, F).astype(jnp.float32)
    x = jnp.pad(x, ((0, N_pad - N), (0, F_pad - F)))

    grid_spec = pl.GridSpec(
        grid=(N_pad // TILE_N,),
        in_specs=[
            pl.BlockSpec((TILE_N, F_pad), lambda n: (n, 0)),
            pl.BlockSpec((1, F_pad),      lambda n: (0, 0)),
            pl.BlockSpec((1, F_pad),      lambda n: (0, 0)),
            pl.BlockSpec((F_pad, K_pad),  lambda n: (0, 0)),
            pl.BlockSpec((1, K_pad),      lambda n: (0, 0)),
        ],
        out_specs=pl.BlockSpec((TILE_N, K_pad), lambda n: (n, 0)),
    )

    out = pl.pallas_call(
        greedyfc_kernel,
        out_shape=jax.ShapeDtypeStruct((N_pad, K_pad), jnp.float32),
        grid_spec=grid_spec,
        compiler_params=pltpu.CompilerParams(
            dimension_semantics=("parallel",),
            vmem_limit_bytes=64 * 1024 * 1024,
        ),
    )(x, scale, shift, w_exp, b)

    return out[:N, :K]


def reference_forward(x_nchw, gamma, beta, run_mean, run_var, fc_w, fc_b,
                      eps=1e-5):
    """Plain-JAX reference matching the PyTorch eval-mode forward."""
    scale = gamma / jnp.sqrt(run_var + eps)
    shift = beta - run_mean * scale
    y = x_nchw * scale[None, :, None, None] + shift[None, :, None, None]
    y = jnp.maximum(y, 0.0)
    pooled = jnp.mean(y, axis=(2, 3))                # AvgPool2d(avg_size) -> 1x1
    return jnp.dot(pooled, fc_w.T,
                   precision=jax.lax.Precision.HIGHEST) + fc_b


if __name__ == "__main__":
    # GreedyFC(in_plane=4, avg_size=16, fc_type='BN', num_classes=10)
    N, C, H, W = 2, 4, 16, 16
    avg_size = 16
    num_classes = 10

    key = jax.random.PRNGKey(0)
    kx, kw = jax.random.split(key)

    x = jax.random.normal(kx, (N, C, H, W), dtype=jnp.float32)

    # BatchNorm2d params per initweights: weight=1, bias=0; default running stats.
    gamma = jnp.ones((C,), jnp.float32)
    beta = jnp.zeros((C,), jnp.float32)
    run_mean = jnp.zeros((C,), jnp.float32)
    run_var = jnp.ones((C,), jnp.float32)

    # Linear: deterministic weight (uniform, Kaiming-style bound), bias zeroed
    # by initweights.
    bound = 1.0 / math.sqrt(C)
    fc_w = jax.random.uniform(kw, (num_classes, C), jnp.float32,
                              minval=-bound, maxval=bound)
    fc_b = jnp.zeros((num_classes,), jnp.float32)

    out = greedyfc_forward(x, gamma, beta, run_mean, run_var, fc_w, fc_b,
                           avg_size)
    out = jax.block_until_ready(out)

    ref = reference_forward(x, gamma, beta, run_mean, run_var, fc_w, fc_b)
    assert out.shape == (N, num_classes)
    assert jnp.allclose(out, ref, atol=1e-4, rtol=1e-4), (out, ref)

    print("KERNEL_OK")
</pallas_src>

<mosaic_0001>
module attributes {stable_mosaic.version = 11 : i64} {
  func.func @greedyfc_kernel(%arg0: i32, %arg1: memref<8x1024xf32, #tpu.memory_space<vmem>>, %arg2: memref<1x1024xf32, #tpu.memory_space<vmem>>, %arg3: memref<1x1024xf32, #tpu.memory_space<vmem>>, %arg4: memref<1024x128xf32, #tpu.memory_space<vmem>>, %arg5: memref<1x128xf32, #tpu.memory_space<vmem>>, %arg6: memref<8x128xf32, #tpu.memory_space<vmem>>) attributes {dimension_semantics = [#tpu.dimension_semantics<parallel>], iteration_bounds = array<i64: 1>, scalar_prefetch = 0 : i64, scratch_operands = 0 : i64, tpu.core_type = #tpu.core_type<tc>, window_params = [{transform_indices = @transform_0, window_bounds = array<i64: 8, 1024>}, {pipeline_mode = #tpu.pipeline_mode<synchronous>, transform_indices = @transform_1, window_bounds = array<i64: 1, 1024>}, {pipeline_mode = #tpu.pipeline_mode<synchronous>, transform_indices = @transform_2, window_bounds = array<i64: 1, 1024>}, {pipeline_mode = #tpu.pipeline_mode<synchronous>, transform_indices = @transform_3, window_bounds = array<i64: 1024, 128>}, {pipeline_mode = #tpu.pipeline_mode<synchronous>, transform_indices = @transform_4, window_bounds = array<i64: 1, 128>}, {transform_indices = @transform_5, window_bounds = array<i64: 8, 128>}]} {
    %c0 = arith.constant 0 : index
    %c0_0 = arith.constant 0 : index
    %0 = vector.load %arg1[%c0, %c0_0] : memref<8x1024xf32, #tpu.memory_space<vmem>>, vector<8x1024xf32>
    %c0_1 = arith.constant 0 : index
    %c0_2 = arith.constant 0 : index
    %1 = vector.load %arg2[%c0_1, %c0_2] : memref<1x1024xf32, #tpu.memory_space<vmem>>, vector<1x1024xf32>
    %2 = vector.broadcast %1 : vector<1x1024xf32> to vector<8x1024xf32>
    %3 = arith.mulf %0, %2 : vector<8x1024xf32>
    %c0_3 = arith.constant 0 : index
    %c0_4 = arith.constant 0 : index
    %4 = vector.load %arg3[%c0_3, %c0_4] : memref<1x1024xf32, #tpu.memory_space<vmem>>, vector<1x1024xf32>
    %5 = vector.broadcast %4 : vector<1x1024xf32> to vector<8x1024xf32>
    %6 = arith.addf %3, %5 : vector<8x1024xf32>
    %cst = arith.constant 0.000000e+00 : f32
    %7 = vector.broadcast %cst : f32 to vector<8x1024xf32>
    %8 = arith.maximumf %6, %7 : vector<8x1024xf32>
    %c0_5 = arith.constant 0 : index
    %c0_6 = arith.constant 0 : index
    %9 = vector.load %arg4[%c0_5, %c0_6] : memref<1024x128xf32, #tpu.memory_space<vmem>>, vector<1024x128xf32>
    %cst_7 = arith.constant dense<0.000000e+00> : vector<8x128xf32>
    %10 = tpu.matmul %8, %9, %cst_7 {dimension_numbers = #tpu.dot_dimension_numbers<[1], [0], [0], [1], [0, 0, 1, 1], [], []>, precision = #tpu.contract_precision<fp32>} : vector<8x1024xf32>, vector<1024x128xf32>, vector<8x128xf32> -> vector<8x128xf32>
    %c0_8 = arith.constant 0 : index
    %c0_9 = arith.constant 0 : index
    %11 = vector.load %arg5[%c0_8, %c0_9] : memref<1x128xf32, #tpu.memory_space<vmem>>, vector<1x128xf32>
    %12 = vector.broadcast %11 : vector<1x128xf32> to vector<8x128xf32>
    %13 = arith.addf %10, %12 : vector<8x128xf32>
    %c0_10 = arith.constant 0 : index
    %c0_11 = arith.constant 0 : index
    %14 = vector.load %arg6[%c0_10, %c0_11] : memref<8x128xf32, #tpu.memory_space<vmem>>, vector<8x128xf32>
    tpu.vector_store %arg6[%c0_10, %c0_11], %13 {strides = array<i32>} : memref<8x128xf32, #tpu.memory_space<vmem>>, vector<8x128xf32>,
    return
  }
  func.func @transform_0(%arg0: i32) -> (i32, i32) {
    %c0_i32 = arith.constant 0 : i32
    %c0_i32_0 = arith.constant 0 : i32
    return %arg0, %c0_i32 : i32, i32
  }
  func.func @transform_1(%arg0: i32) -> (i32, i32) {
    %c0_i32 = arith.constant 0 : i32
    %c0_i32_0 = arith.constant 0 : i32
    %c0_i32_1 = arith.constant 0 : i32
    return %c0_i32, %c0_i32_0 : i32, i32
  }
  func.func @transform_2(%arg0: i32) -> (i32, i32) {
    %c0_i32 = arith.constant 0 : i32
    %c0_i32_0 = arith.constant 0 : i32
    %c0_i32_1 = arith.constant 0 : i32
    return %c0_i32, %c0_i32_0 : i32, i32
  }
  func.func @transform_3(%arg0: i32) -> (i32, i32) {
    %c0_i32 = arith.constant 0 : i32
    %c0_i32_0 = arith.constant 0 : i32
    %c0_i32_1 = arith.constant 0 : i32
    return %c0_i32, %c0_i32_0 : i32, i32
  }
  func.func @transform_4(%arg0: i32) -> (i32, i32) {
    %c0_i32 = arith.constant 0 : i32
    %c0_i32_0 = arith.constant 0 : i32
    %c0_i32_1 = arith.constant 0 : i32
    return %c0_i32, %c0_i32_0 : i32, i32
  }
  func.func @transform_5(%arg0: i32) -> (i32, i32) {
    %c0_i32 = arith.constant 0 : i32
    %c0_i32_0 = arith.constant 0 : i32
    return %arg0, %c0_i32 : i32, i32
  }
}

</mosaic_0001>

<llo_original>
// kernel: tpu_custom_call.1
$region0: #{tpu_custom_call.1}
  #allocation0 [shape = 'u32[]', space=smem, size = 0x4, offset = 0x4, fixed_abs, tag = 'smem constant byte address 0x4 - core index']
  #allocation1 [shape = 'u32[144,128]{1,0:T(1,128)}', space=vmem, size = 0x12000, scoped, tag = 'internal scratch']
  %s0 = inlined_call_operand.hbm [shape: f32[8,1024], index: 0, kind: input, shape index: {}]
  %s1 = inlined_call_operand.hbm [shape: f32[1,1024], index: 1, kind: input, shape index: {}]
  %s2 = inlined_call_operand.hbm [shape: f32[1,1024], index: 2, kind: input, shape index: {}]
  %s3 = inlined_call_operand.hbm [shape: f32[1024,128], index: 3, kind: input, shape index: {}]
  %s4 = inlined_call_operand.hbm [shape: f32[1,128], index: 4, kind: input, shape index: {}]
  %s5 = inlined_call_operand.hbm [shape: f32[8,128], index: 5, kind: output, shape index: {}]
  %s6 = sld [smem:[#allocation0]]
  $region50: #{tpu_custom_call.1} parent=0
    _
  %s8 = ssub.s32 1, %s6
  %s9 = scalar_select 0, %s8, %s6
  $region1: #{tpu_custom_call.1} parent=0
    #allocation2 [shape = 'u8[32768]{0}', space=vmem, size = 0x8000, scoped, tag = 'input window, operand 0, single buffered']
    #allocation3 [shape = 's32[1]{0}', space=sflag, size = 0x4, scoped, tag = 'scoped memory for tpu_custom_call.1']
    #allocation4 [shape = 's32[1]{0}', space=sflag, size = 0x4, scoped, tag = 'scoped memory for tpu_custom_call.1']
    #allocation5 [shape = 'u8[4096]{0}', space=vmem, size = 0x1000, scoped, tag = 'input window, operand 1, single buffered']
    #allocation6 [shape = 's32[1]{0}', space=sflag, size = 0x4, scoped, tag = 'scoped memory for tpu_custom_call.1']
    #allocation7 [shape = 'u8[4096]{0}', space=vmem, size = 0x1000, scoped, tag = 'input window, operand 2, single buffered']
    #allocation8 [shape = 'u8[524288]{0}', space=vmem, size = 0x80000, scoped, tag = 'input window, operand 3, single buffered']
    #allocation9 [shape = 's32[1]{0}', space=sflag, size = 0x4, scoped, tag = 'scoped memory for tpu_custom_call.1']
    #allocation10 [shape = 'u8[512]{0}', space=vmem, size = 0x400, scoped, tag = 'input window, operand 4, single buffered']
    #allocation11 [shape = 'u8[4096]{0}', space=vmem, size = 0x1000, scoped, tag = 'output window, operand 0, single buffered']
    %10 = vsyncpa [#allocation3], 0
    %11 = vsyncpa [#allocation6], 0
    %12 = vsyncpa [#allocation9], 0
    %13 = vsyncpa [#allocation4], 0
    // Predicated region
    $region2: #{tpu_custom_call.1} parent=1 // pred_check
      _
    $region3: #{tpu_custom_call.1} parent=1 // pred_check_branch
      %15 = sbr.rel (0) target = $region5
    $region4: #{tpu_custom_call.1} parent=1 // pred_region
      %s17 = ssub.s32 1024, 1024
      %18 = vsyncadd [#allocation3], %s17
      %s20 = sshll.u32 [#allocation2], 4
      %s21 = int_to_ptr.vmem [resolvable:$true] %s20
      %23 = dma.hbm_to_vmem [thread:$0]  %s0, 1024, %s21, [#allocation3]
    $region5: #{tpu_custom_call.1} parent=1 // pred_fallthru
      _
    // Predicated region
    $region6: #{tpu_custom_call.1} parent=1 // pred_check
      _
    $region7: #{tpu_custom_call.1} parent=1 // pred_check_branch
      %25 = sbr.rel (0) target = $region9
    $region8: #{tpu_custom_call.1} parent=1 // pred_region
      %s27 = ssub.s32 128, 128
      %28 = vsyncadd [#allocation6], %s27
      %s30 = sshll.u32 [#allocation5], 4
      %s31 = int_to_ptr.vmem [resolvable:$true] %s30
      %33 = dma.hbm_to_vmem [thread:$0]  %s1, 128, %s31, [#allocation6]
    $region9: #{tpu_custom_call.1} parent=1 // pred_fallthru
      _
    // Predicated region
    $region10: #{tpu_custom_call.1} parent=1 // pred_check
      _
    $region11: #{tpu_custom_call.1} parent=1 // pred_check_branch
      %35 = sbr.rel (0) target = $region13
    $region12: #{tpu_custom_call.1} parent=1 // pred_region
      %s37 = ssub.s32 128, 128
      %38 = vsyncadd [#allocation6], %s37
      %s40 = sshll.u32 [#allocation7], 4
      %s41 = int_to_ptr.vmem [resolvable:$true] %s40
      %43 = dma.hbm_to_vmem [thread:$0]  %s2, 128, %s41, [#allocation6]
    $region13: #{tpu_custom_call.1} parent=1 // pred_fallthru
      _
    // Predicated region
    $region14: #{tpu_custom_call.1} parent=1 // pred_check
      _
    $region15: #{tpu_custom_call.1} parent=1 // pred_check_branch
      %45 = sbr.rel (0) target = $region17
    $region16: #{tpu_custom_call.1} parent=1 // pred_region
      %s47 = ssub.s32 16384, 16384
      %48 = vsyncadd [#allocation9], %s47
      %s49 = sshll.u32 [#allocation8], 4
      %s50 = int_to_ptr.vmem [resolvable:$true] %s49
      %55 = dma.hbm_to_vmem [thread:$0]  %s3, 16384, %s50, [#allocation9], 128, 128, 8
    $region17: #{tpu_custom_call.1} parent=1 // pred_fallthru
      _
    // Predicated region
    $region18: #{tpu_custom_call.1} parent=1 // pred_check
      _
    $region19: #{tpu_custom_call.1} parent=1 // pred_check_branch
      %57 = sbr.rel (0) target = $region21
    $region20: #{tpu_custom_call.1} parent=1 // pred_region
      %s59 = ssub.s32 16, 16
      %60 = vsyncadd [#allocation9], %s59
      %s62 = sshll.u32 [#allocation10], 4
      %s63 = int_to_ptr.vmem [resolvable:$true] %s62
      %65 = dma.hbm_to_vmem [thread:$0]  %s4, 16, %s63, [#allocation9]
    $region21: #{tpu_custom_call.1} parent=1 // pred_fallthru
      _
    // Predicated region
    $region22: #{tpu_custom_call.1} parent=1 // pred_check
      _
    $region23: #{tpu_custom_call.1} parent=1 // pred_check_branch
      %67 = sbr.rel (0) target = $region25
    $region24: #{tpu_custom_call.1} parent=1 // pred_region
      %68 = dma.done [#allocation3], 1024
    $region25: #{tpu_custom_call.1} parent=1 // pred_fallthru
      _
    // Predicated region
    $region26: #{tpu_custom_call.1} parent=1 // pred_check
      _
    $region27: #{tpu_custom_call.1} parent=1 // pred_check_branch
      %70 = sbr.rel (0) target = $region29
    $region28: #{tpu_custom_call.1} parent=1 // pred_region
      %71 = dma.done [#allocation6], 128
    $region29: #{tpu_custom_call.1} parent=1 // pred_fallthru
      _
    // Predicated region
    $region30: #{tpu_custom_call.1} parent=1 // pred_check
      _
    $region31: #{tpu_custom_call.1} parent=1 // pred_check_branch
      %73 = sbr.rel (0) target = $region33
    $region32: #{tpu_custom_call.1} parent=1 // pred_region
      %74 = dma.done [#allocation6], 128
    $region33: #{tpu_custom_call.1} parent=1 // pred_fallthru
      _
    // Predicated region
    $region34: #{tpu_custom_call.1} parent=1 // pred_check
      _
    $region35: #{tpu_custom_call.1} parent=1 // pred_check_branch
      %76 = sbr.rel (0) target = $region37
    $region36: #{tpu_custom_call.1} parent=1 // pred_region
      %77 = dma.done [#allocation9], 16384
    $region37: #{tpu_custom_call.1} parent=1 // pred_fallthru
      _
    // Predicated region
    $region38: #{tpu_custom_call.1} parent=1 // pred_check
      _
    $region39: #{tpu_custom_call.1} parent=1 // pred_check_branch
      %79 = sbr.rel (0) target = $region41
    $region40: #{tpu_custom_call.1} parent=1 // pred_region
      %80 = dma.done [#allocation9], 16
    $region41: #{tpu_custom_call.1} parent=1 // pred_fallthru
      _
    %v81 = vld [vmem:[#allocation2] sm:$0xff]
    %v82 = vld [vmem:[#allocation2 + $0x8] sm:$0xff]
    %v83 = vld [vmem:[#allocation2 + $0x10] sm:$0xff]
    %v84 = vld [vmem:[#allocation2 + $0x18] sm:$0xff]
    %v85 = vld [vmem:[#allocation2 + $0x20] sm:$0xff]
    %v86 = vld [vmem:[#allocation2 + $0x28] sm:$0xff]
    %v87 = vld [vmem:[#allocation2 + $0x30] sm:$0xff]
    %v88 = vld [vmem:[#allocation2 + $0x38] sm:$0xff]
    %v89 = vld [vmem:[#allocation5] sm:$0xff]
    %v91 = vlaneseq
    %v92 = vshrl.u32 %v91, 7
    %v93 = vsub.s32 0, %v92
    %v94 = vrot.slane %v89, %v93
    %v95 = vlaneseq
    %v96 = vshrl.u32 %v95, 7
    %v97 = vsub.s32 1, %v96
    %v98 = vrot.slane %v89, %v97
    %v99 = vlaneseq
    %v100 = vshrl.u32 %v99, 7
    %v101 = vsub.s32 2, %v100
    %v102 = vrot.slane %v89, %v101
    %v103 = vlaneseq
    %v104 = vshrl.u32 %v103, 7
    %v105 = vsub.s32 3, %v104
    %v106 = vrot.slane %v89, %v105
    %v107 = vlaneseq
    %v108 = vshrl.u32 %v107, 7
    %v109 = vsub.s32 4, %v108
    %v110 = vrot.slane %v89, %v109
    %v111 = vlaneseq
    %v112 = vshrl.u32 %v111, 7
    %v113 = vsub.s32 5, %v112
    %v114 = vrot.slane %v89, %v113
    %v115 = vlaneseq
    %v116 = vshrl.u32 %v115, 7
    %v117 = vsub.s32 6, %v116
    %v118 = vrot.slane %v89, %v117
    %v119 = vlaneseq
    %v120 = vshrl.u32 %v119, 7
    %v121 = vsub.s32 7, %v120
    %v122 = vrot.slane %v89, %v121
    %v131 = vmul.f32 %v81, %v94
    %v132 = vmul.f32 %v82, %v98
    %v133 = vmul.f32 %v83, %v102
    %v134 = vmul.f32 %v84, %v106
    %v135 = vmul.f32 %v85, %v110
    %v136 = vmul.f32 %v86, %v114
    %v137 = vmul.f32 %v87, %v118
    %v138 = vmul.f32 %v88, %v122
    %v139 = vld [vmem:[#allocation7] sm:$0xff]
    %v141 = vlaneseq
    %v142 = vshrl.u32 %v141, 7
    %v143 = vsub.s32 0, %v142
    %v144 = vrot.slane %v139, %v143
    %v145 = vlaneseq
    %v146 = vshrl.u32 %v145, 7
    %v147 = vsub.s32 1, %v146
    %v148 = vrot.slane %v139, %v147
    %v149 = vlaneseq
    %v150 = vshrl.u32 %v149, 7
    %v151 = vsub.s32 2, %v150
    %v152 = vrot.slane %v139, %v151
    %v153 = vlaneseq
    %v154 = vshrl.u32 %v153, 7
    %v155 = vsub.s32 3, %v154
    %v156 = vrot.slane %v139, %v155
    %v157 = vlaneseq
    %v158 = vshrl.u32 %v157, 7
    %v159 = vsub.s32 4, %v158
    %v160 = vrot.slane %v139, %v159
    %v161 = vlaneseq
    %v162 = vshrl.u32 %v161, 7
    %v163 = vsub.s32 5, %v162
    %v164 = vrot.slane %v139, %v163
    %v165 = vlaneseq
    %v166 = vshrl.u32 %v165, 7
    %v167 = vsub.s32 6, %v166
    %v168 = vrot.slane %v139, %v167
    %v169 = vlaneseq
    %v170 = vshrl.u32 %v169, 7
    %v171 = vsub.s32 7, %v170
    %v172 = vrot.slane %v139, %v171
    %v181 = vadd.f32 %v131, %v144
    %v182 = vadd.f32 %v132, %v148
    %v183 = vadd.f32 %v133, %v152
    %v184 = vadd.f32 %v134, %v156
    %v185 = vadd.f32 %v135, %v160
    %v186 = vadd.f32 %v136, %v164
    %v187 = vadd.f32 %v137, %v168
    %v188 = vadd.f32 %v138, %v172
    %v189 = vmax.f32 %v181, 0.0
    %v190 = vmax.f32 %v182, 0.0
    %v191 = vmax.f32 %v183, 0.0
    %v192 = vmax.f32 %v184, 0.0
    %v193 = vmax.f32 %v185, 0.0
    %v194 = vmax.f32 %v186, 0.0
    %v195 = vmax.f32 %v187, 0.0
    %v196 = vmax.f32 %v188, 0.0
    %v197 = vld [vmem:[#allocation8] sm:$0xff]
    %v198 = vld [vmem:[#allocation8 + $0x8] sm:$0xff]
    %v199 = vld [vmem:[#allocation8 + $0x10] sm:$0xff]
    %v200 = vld [vmem:[#allocation8 + $0x18] sm:$0xff]
    %v201 = vld [vmem:[#allocation8 + $0x20] sm:$0xff]
    %v202 = vld [vmem:[#allocation8 + $0x28] sm:$0xff]
    %v203 = vld [vmem:[#allocation8 + $0x30] sm:$0xff]
    %v204 = vld [vmem:[#allocation8 + $0x38] sm:$0xff]
    %v205 = vld [vmem:[#allocation8 + $0x40] sm:$0xff]
    %v206 = vld [vmem:[#allocation8 + $0x48] sm:$0xff]
    %v207 = vld [vmem:[#allocation8 + $0x50] sm:$0xff]
    %v208 = vld [vmem:[#allocation8 + $0x58] sm:$0xff]
    %v209 = vld [vmem:[#allocation8 + $0x60] sm:$0xff]
    %v210 = vld [vmem:[#allocation8 + $0x68] sm:$0xff]
    %v211 = vld [vmem:[#allocation8 + $0x70] sm:$0xff]
    %v212 = vld [vmem:[#allocation8 + $0x78] sm:$0xff]
    %v213 = vld [vmem:[#allocation8 + $0x80] sm:$0xff]
    %v214 = vld [vmem:[#allocation8 + $0x88] sm:$0xff]
    %v215 = vld [vmem:[#allocation8 + $0x90] sm:$0xff]
    %v216 = vld [vmem:[#allocation8 + $0x98] sm:$0xff]
    %v217 = vld [vmem:[#allocation8 + $0xa0] sm:$0xff]
    %v218 = vld [vmem:[#allocation8 + $0xa8] sm:$0xff]
    %v219 = vld [vmem:[#allocation8 + $0xb0] sm:$0xff]
    %v220 = vld [vmem:[#allocation8 + $0xb8] sm:$0xff]
    %v221 = vld [vmem:[#allocation8 + $0xc0] sm:$0xff]
    %v222 = vld [vmem:[#allocation8 + $0xc8] sm:$0xff]
    %v223 = vld [vmem:[#allocation8 + $0xd0] sm:$0xff]
    %v224 = vld [vmem:[#allocation8 + $0xd8] sm:$0xff]
    %v225 = vld [vmem:[#allocation8 + $0xe0] sm:$0xff]
    %v226 = vld [vmem:[#allocation8 + $0xe8] sm:$0xff]
    %v227 = vld [vmem:[#allocation8 + $0xf0] sm:$0xff]
    %v228 = vld [vmem:[#allocation8 + $0xf8] sm:$0xff]
    %v229 = vld [vmem:[#allocation8 + $0x100] sm:$0xff]
    %v230 = vld [vmem:[#allocation8 + $0x108] sm:$0xff]
    %v231 = vld [vmem:[#allocation8 + $0x110] sm:$0xff]
    %v232 = vld [vmem:[#allocation8 + $0x118] sm:$0xff]
    %v233 = vld [vmem:[#allocation8 + $0x120] sm:$0xff]
    %v234 = vld [vmem:[#allocation8 + $0x128] sm:$0xff]
    %v235 = vld [vmem:[#allocation8 + $0x130] sm:$0xff]
    %v236 = vld [vmem:[#allocation8 + $0x138] sm:$0xff]
    %v237 = vld [vmem:[#allocation8 + $0x140] sm:$0xff]
    %v238 = vld [vmem:[#allocation8 + $0x148] sm:$0xff]
    %v239 = vld [vmem:[#allocation8 + $0x150] sm:$0xff]
    %v240 = vld [vmem:[#allocation8 + $0x158] sm:$0xff]
    %v241 = vld [vmem:[#allocation8 + $0x160] sm:$0xff]
    %v242 = vld [vmem:[#allocation8 + $0x168] sm:$0xff]
    %v243 = vld [vmem:[#allocation8 + $0x170] sm:$0xff]
    %v244 = vld [vmem:[#allocation8 + $0x178] sm:$0xff]
    %v245 = vld [vmem:[#allocation8 + $0x180] sm:$0xff]
    %v246 = vld [vmem:[#allocation8 + $0x188] sm:$0xff]
    %v247 = vld [vmem:[#allocation8 + $0x190] sm:$0xff]
    %v248 = vld [vmem:[#allocation8 + $0x198] sm:$0xff]
    %v249 = vld [vmem:[#allocation8 + $0x1a0] sm:$0xff]
    %v250 = vld [vmem:[#allocation8 + $0x1a8] sm:$0xff]
    %v251 = vld [vmem:[#allocation8 + $0x1b0] sm:$0xff]
    %v252 = vld [vmem:[#allocation8 + $0x1b8] sm:$0xff]
    %v253 = vld [vmem:[#allocation8 + $0x1c0] sm:$0xff]
    %v254 = vld [vmem:[#allocation8 + $0x1c8] sm:$0xff]
    %v255 = vld [vmem:[#allocation8 + $0x1d0] sm:$0xff]
    %v256 = vld [vmem:[#allocation8 + $0x1d8] sm:$0xff]
    %v257 = vld [vmem:[#allocation8 + $0x1e0] sm:$0xff]
    %v258 = vld [vmem:[#allocation8 + $0x1e8] sm:$0xff]
    %v259 = vld [vmem:[#allocation8 + $0x1f0] sm:$0xff]
    %v260 = vld [vmem:[#allocation8 + $0x1f8] sm:$0xff]
    %v261 = vld [vmem:[#allocation8 + $0x200] sm:$0xff]
    %v262 = vld [vmem:[#allocation8 + $0x208] sm:$0xff]
    %v263 = vld [vmem:[#allocation8 + $0x210] sm:$0xff]
    %v264 = vld [vmem:[#allocation8 + $0x218] sm:$0xff]
    %v265 = vld [vmem:[#allocation8 + $0x220] sm:$0xff]
    %v266 = vld [vmem:[#allocation8 + $0x228] sm:$0xff]
    %v267 = vld [vmem:[#allocation8 + $0x230] sm:$0xff]
    %v268 = vld [vmem:[#allocation8 + $0x238] sm:$0xff]
    %v269 = vld [vmem:[#allocation8 + $0x240] sm:$0xff]
    %v270 = vld [vmem:[#allocation8 + $0x248] sm:$0xff]
    %v271 = vld [vmem:[#allocation8 + $0x250] sm:$0xff]
    %v272 = vld [vmem:[#allocation8 + $0x258] sm:$0xff]
    %v273 = vld [vmem:[#allocation8 + $0x260] sm:$0xff]
    %v274 = vld [vmem:[#allocation8 + $0x268] sm:$0xff]
    %v275 = vld [vmem:[#allocation8 + $0x270] sm:$0xff]
    %v276 = vld [vmem:[#allocation8 + $0x278] sm:$0xff]
    %v277 = vld [vmem:[#allocation8 + $0x280] sm:$0xff]
    %v278 = vld [vmem:[#allocation8 + $0x288] sm:$0xff]
    %v279 = vld [vmem:[#allocation8 + $0x290] sm:$0xff]
    %v280 = vld [vmem:[#allocation8 + $0x298] sm:$0xff]
    %v281 = vld [vmem:[#allocation8 + $0x2a0] sm:$0xff]
    %v282 = vld [vmem:[#allocation8 + $0x2a8] sm:$0xff]
    %v283 = vld [vmem:[#allocation8 + $0x2b0] sm:$0xff]
    %v284 = vld [vmem:[#allocation8 + $0x2b8] sm:$0xff]
    %v285 = vld [vmem:[#allocation8 + $0x2c0] sm:$0xff]
    %v286 = vld [vmem:[#allocation8 + $0x2c8] sm:$0xff]
    %v287 = vld [vmem:[#allocation8 + $0x2d0] sm:$0xff]
    %v288 = vld [vmem:[#allocation8 + $0x2d8] sm:$0xff]
    %v289 = vld [vmem:[#allocation8 + $0x2e0] sm:$0xff]
    %v290 = vld [vmem:[#allocation8 + $0x2e8] sm:$0xff]
    %v291 = vld [vmem:[#allocation8 + $0x2f0] sm:$0xff]
    %v292 = vld [vmem:[#allocation8 + $0x2f8] sm:$0xff]
    %v293 = vld [vmem:[#allocation8 + $0x300] sm:$0xff]
    %v294 = vld [vmem:[#allocation8 + $0x308] sm:$0xff]
    %v295 = vld [vmem:[#allocation8 + $0x310] sm:$0xff]
    %v296 = vld [vmem:[#allocation8 + $0x318] sm:$0xff]
    %v297 = vld [vmem:[#allocation8 + $0x320] sm:$0xff]
    %v298 = vld [vmem:[#allocation8 + $0x328] sm:$0xff]
    %v299 = vld [vmem:[#allocation8 + $0x330] sm:$0xff]
    %v300 = vld [vmem:[#allocation8 + $0x338] sm:$0xff]
    %v301 = vld [vmem:[#allocation8 + $0x340] sm:$0xff]
    %v302 = vld [vmem:[#allocation8 + $0x348] sm:$0xff]
    %v303 = vld [vmem:[#allocation8 + $0x350] sm:$0xff]
    %v304 = vld [vmem:[#allocation8 + $0x358] sm:$0xff]
    %v305 = vld [vmem:[#allocation8 + $0x360] sm:$0xff]
    %v306 = vld [vmem:[#allocation8 + $0x368] sm:$0xff]
    %v307 = vld [vmem:[#allocation8 + $0x370] sm:$0xff]
    %v308 = vld [vmem:[#allocation8 + $0x378] sm:$0xff]
    %v309 = vld [vmem:[#allocation8 + $0x380] sm:$0xff]
    %v310 = vld [vmem:[#allocation8 + $0x388] sm:$0xff]
    %v311 = vld [vmem:[#allocation8 + $0x390] sm:$0xff]
    %v312 = vld [vmem:[#allocation8 + $0x398] sm:$0xff]
    %v313 = vld [vmem:[#allocation8 + $0x3a0] sm:$0xff]
    %v314 = vld [vmem:[#allocation8 + $0x3a8] sm:$0xff]
    %v315 = vld [vmem:[#allocation8 + $0x3b0] sm:$0xff]
    %v316 = vld [vmem:[#allocation8 + $0x3b8] sm:$0xff]
    %v317 = vld [vmem:[#allocation8 + $0x3c0] sm:$0xff]
    %v318 = vld [vmem:[#allocation8 + $0x3c8] sm:$0xff]
    %v319 = vld [vmem:[#allocation8 + $0x3d0] sm:$0xff]
    %v320 = vld [vmem:[#allocation8 + $0x3d8] sm:$0xff]
    %v321 = vld [vmem:[#allocation8 + $0x3e0] sm:$0xff]
    %v322 = vld [vmem:[#allocation8 + $0x3e8] sm:$0xff]
    %v323 = vld [vmem:[#allocation8 + $0x3f0] sm:$0xff]
    %v324 = vld [vmem:[#allocation8 + $0x3f8] sm:$0xff]
    %v325 = vld [vmem:[#allocation10] sm:$0x1]
    %v327 = vlaneseq
    %v328 = vshrl.u32 %v327, 7
    %v329 = vsub.s32 0, %v328
    %v330 = vrot.slane %v325, %v329
    %332 = vmatprep.subr.mxu0 0.0
    %v333 = vand.u32 %v197, 4294901760
    %334 = vmatpush1.msra.mxu0 %v333
    %335 = vmatprep.subr.mxu0 0.0
    %v336 = vand.u32 %v198, 4294901760
    %337 = vmatpush1.msra.mxu0 %v336
    %338 = vmatprep.subr.mxu0 0.0
    %v339 = vand.u32 %v199, 4294901760
    %340 = vmatpush1.msra.mxu0 %v339
    %341 = vmatprep.subr.mxu0 0.0
    %v342 = vand.u32 %v200, 4294901760
    %343 = vmatpush1.msra.mxu0 %v342
    %344 = vmatprep.subr.mxu0 0.0
    %v345 = vand.u32 %v201, 4294901760
    %346 = vmatpush1.msra.mxu0 %v345
    %347 = vmatprep.subr.mxu0 0.0
    %v348 = vand.u32 %v202, 4294901760
    %349 = vmatpush1.msra.mxu0 %v348
    %350 = vmatprep.subr.mxu0 0.0
    %v351 = vand.u32 %v203, 4294901760
    %352 = vmatpush1.msra.mxu0 %v351
    %353 = vmatprep.subr.mxu0 0.0
    %v354 = vand.u32 %v204, 4294901760
    %355 = vmatpush1.msra.mxu0 %v354
    %356 = vmatprep.subr.mxu0 0.0
    %v357 = vand.u32 %v205, 4294901760
    %358 = vmatpush1.msra.mxu0 %v357
    %359 = vmatprep.subr.mxu0 0.0
    %v360 = vand.u32 %v206, 4294901760
    %361 = vmatpush1.msra.mxu0 %v360
    %362 = vmatprep.subr.mxu0 0.0
    %v363 = vand.u32 %v207, 4294901760
    %364 = vmatpush1.msra.mxu0 %v363
    %365 = vmatprep.subr.mxu0 0.0
    %v366 = vand.u32 %v208, 4294901760
    %367 = vmatpush1.msra.mxu0 %v366
    %368 = vmatprep.subr.mxu0 0.0
    %v369 = vand.u32 %v209, 4294901760
    %370 = vmatpush1.msra.mxu0 %v369
    %371 = vmatprep.subr.mxu0 0.0
    %v372 = vand.u32 %v210, 4294901760
    %373 = vmatpush1.msra.mxu0 %v372
    %374 = vmatprep.subr.mxu0 0.0
    %v375 = vand.u32 %v211, 4294901760
    %376 = vmatpush1.msra.mxu0 %v375
    %377 = vmatprep.subr.mxu0 0.0
    %v378 = vand.u32 %v212, 4294901760
    %379 = vmatpush1.msra.mxu0 %v378
    %380 = vmatprep.subr.mxu0 0.0
    %v381 = vand.u32 %v213, 4294901760
    %382 = vmatpush1.msra.mxu0 %v381
    %383 = vmatprep.subr.mxu0 0.0
    %v384 = vand.u32 %v214, 4294901760
    %385 = vmatpush1.msra.mxu0 %v384
    %386 = vmatprep.subr.mxu0 0.0
    %v387 = vand.u32 %v215, 4294901760
    %388 = vmatpush1.msra.mxu0 %v387
    %389 = vmatprep.subr.mxu0 0.0
    %v390 = vand.u32 %v216, 4294901760
    %391 = vmatpush1.msra.mxu0 %v390
    %392 = vmatprep.subr.mxu0 0.0
    %v393 = vand.u32 %v217, 4294901760
    %394 = vmatpush1.msra.mxu0 %v393
    %395 = vmatprep.subr.mxu0 0.0
    %v396 = vand.u32 %v218, 4294901760
    %397 = vmatpush1.msra.mxu0 %v396
    %398 = vmatprep.subr.mxu0 0.0
    %v399 = vand.u32 %v219, 4294901760
    %400 = vmatpush1.msra.mxu0 %v399
    %401 = vmatprep.subr.mxu0 0.0
    %v402 = vand.u32 %v220, 4294901760
    %403 = vmatpush1.msra.mxu0 %v402
    %404 = vmatprep.subr.mxu0 0.0
    %v405 = vand.u32 %v221, 4294901760
    %406 = vmatpush1.msra.mxu0 %v405
    %407 = vmatprep.subr.mxu0 0.0
    %v408 = vand.u32 %v222, 4294901760
    %409 = vmatpush1.msra.mxu0 %v408
    %410 = vmatprep.subr.mxu0 0.0
    %v411 = vand.u32 %v223, 4294901760
    %412 = vmatpush1.msra.mxu0 %v411
    %413 = vmatprep.subr.mxu0 0.0
    %v414 = vand.u32 %v224, 4294901760
    %415 = vmatpush1.msra.mxu0 %v414
    %416 = vmatprep.subr.mxu0 0.0
    %v417 = vand.u32 %v225, 4294901760
    %418 = vmatpush1.msra.mxu0 %v417
    %419 = vmatprep.subr.mxu0 0.0
    %v420 = vand.u32 %v226, 4294901760
    %421 = vmatpush1.msra.mxu0 %v420
    %422 = vmatprep.subr.mxu0 0.0
    %v423 = vand.u32 %v227, 4294901760
    %424 = vmatpush1.msra.mxu0 %v423
    %425 = vmatprep.subr.mxu0 0.0
    %v426 = vand.u32 %v228, 4294901760
    %427 = vmatpush1.msra.mxu0 %v426
    %v428 = vand.u32 %v190, 4294901760
    %v429 = vsub.f32 %v190, %v428
    %v430 = vand.u32 %v429, 4294901760
    %v431 = vsub.f32 %v429, %v430
    %v432 = vand.u32 %v431, 4294901760
    %433 = vmatprep.mubr.f32.mxu0 %v432
    %v434 = vand.u32 %v189, 4294901760
    %v435 = vsub.f32 %v189, %v434
    %v436 = vand.u32 %v435, 4294901760
    %v437 = vsub.f32 %v435, %v436
    %v438 = vand.u32 %v437, 4294901760
    %439 = vmatmul.mubr.f32.gmra.mrb[0].mxu0 %v438
    %v440 = vpop.f32.mrb[0].mxu0
    %v441 = vadd.f32 %v330, %v440
    %v442 = vpop.f32.mrb[0].mxu0
    %443 = vdwg.mxu0
    %444 = vmatprep.subr.mxu0 0.0
    %v445 = vand.u32 %v197, 4294901760
    %v446 = vsub.f32 %v197, %v445
    %v447 = vand.u32 %v446, 4294901760
    %v448 = vsub.f32 %v446, %v447
    %v449 = vand.u32 %v448, 4294901760
    %450 = vmatpush1.msra.mxu0 %v449
    %451 = vmatprep.subr.mxu0 0.0
    %v452 = vand.u32 %v198, 4294901760
    %v453 = vsub.f32 %v198, %v452
    %v454 = vand.u32 %v453, 4294901760
    %v455 = vsub.f32 %v453, %v454
    %v456 = vand.u32 %v455, 4294901760
    %457 = vmatpush1.msra.mxu0 %v456
    %458 = vmatprep.subr.mxu0 0.0
    %v459 = vand.u32 %v199, 4294901760
    %v460 = vsub.f32 %v199, %v459
    %v461 = vand.u32 %v460, 4294901760
    %v462 = vsub.f32 %v460, %v461
    %v463 = vand.u32 %v462, 4294901760
    %464 = vmatpush1.msra.mxu0 %v463
    %465 = vmatprep.subr.mxu0 0.0
    %v466 = vand.u32 %v200, 4294901760
    %v467 = vsub.f32 %v200, %v466
    %v468 = vand.u32 %v467, 4294901760
    %v469 = vsub.f32 %v467, %v468
    %v470 = vand.u32 %v469, 4294901760
    %471 = vmatpush1.msra.mxu0 %v470
    %472 = vmatprep.subr.mxu0 0.0
    %v473 = vand.u32 %v201, 4294901760
    %v474 = vsub.f32 %v201, %v473
    %v475 = vand.u32 %v474, 4294901760
    %v476 = vsub.f32 %v474, %v475
    %v477 = vand.u32 %v476, 4294901760
    %478 = vmatpush1.msra.mxu0 %v477
    %479 = vmatprep.subr.mxu0 0.0
    %v480 = vand.u32 %v202, 4294901760
    %v481 = vsub.f32 %v202, %v480
    %v482 = vand.u32 %v481, 4294901760
    %v483 = vsub.f32 %v481, %v482
    %v484 = vand.u32 %v483, 4294901760
    %485 = vmatpush1.msra.mxu0 %v484
    %486 = vmatprep.subr.mxu0 0.0
    %v487 = vand.u32 %v203, 4294901760
    %v488 = vsub.f32 %v203, %v487
    %v489 = vand.u32 %v488, 4294901760
    %v490 = vsub.f32 %v488, %v489
    %v491 = vand.u32 %v490, 4294901760
    %492 = vmatpush1.msra.mxu0 %v491
    %493 = vmatprep.subr.mxu0 0.0
    %v494 = vand.u32 %v204, 4294901760
    %v495 = vsub.f32 %v204, %v494
    %v496 = vand.u32 %v495, 4294901760
    %v497 = vsub.f32 %v495, %v496
    %v498 = vand.u32 %v497, 4294901760
    %499 = vmatpush1.msra.mxu0 %v498
    %500 = vmatprep.subr.mxu0 0.0
    %v501 = vand.u32 %v205, 4294901760
    %v502 = vsub.f32 %v205, %v501
    %v503 = vand.u32 %v502, 4294901760
    %v504 = vsub.f32 %v502, %v503
    %v505 = vand.u32 %v504, 4294901760
    %506 = vmatpush1.msra.mxu0 %v505
    %507 = vmatprep.subr.mxu0 0.0
    %v508 = vand.u32 %v206, 4294901760
    %v509 = vsub.f32 %v206, %v508
    %v510 = vand.u32 %v509, 4294901760
    %v511 = vsub.f32 %v509, %v510
    %v512 = vand.u32 %v511, 4294901760
    %513 = vmatpush1.msra.mxu0 %v512
    %514 = vmatprep.subr.mxu0 0.0
    %v515 = vand.u32 %v207, 4294901760
    %v516 = vsub.f32 %v207, %v515
    %v517 = vand.u32 %v516, 4294901760
    %v518 = vsub.f32 %v516, %v517
    %v519 = vand.u32 %v518, 4294901760
    %520 = vmatpush1.msra.mxu0 %v519
    %521 = vmatprep.subr.mxu0 0.0
    %v522 = vand.u32 %v208, 4294901760
    %v523 = vsub.f32 %v208, %v522
    %v524 = vand.u32 %v523, 4294901760
    %v525 = vsub.f32 %v523, %v524
    %v526 = vand.u32 %v525, 4294901760
    %527 = vmatpush1.msra.mxu0 %v526
    %528 = vmatprep.subr.mxu0 0.0
    %v529 = vand.u32 %v209, 4294901760
    %v530 = vsub.f32 %v209, %v529
    %v531 = vand.u32 %v530, 4294901760
    %v532 = vsub.f32 %v530, %v531
    %v533 = vand.u32 %v532, 4294901760
    %534 = vmatpush1.msra.mxu0 %v533
    %535 = vmatprep.subr.mxu0 0.0
    %v536 = vand.u32 %v210, 4294901760
    %v537 = vsub.f32 %v210, %v536
    %v538 = vand.u32 %v537, 4294901760
    %v539 = vsub.f32 %v537, %v538
    %v540 = vand.u32 %v539, 4294901760
    %541 = vmatpush1.msra.mxu0 %v540
    %542 = vmatprep.subr.mxu0 0.0
    %v543 = vand.u32 %v211, 4294901760
    %v544 = vsub.f32 %v211, %v543
    %v545 = vand.u32 %v544, 4294901760
    %v546 = vsub.f32 %v544, %v545
    %v547 = vand.u32 %v546, 4294901760
    %548 = vmatpush1.msra.mxu0 %v547
    %549 = vmatprep.subr.mxu0 0.0
    %v550 = vand.u32 %v212, 4294901760
    %v551 = vsub.f32 %v212, %v550
    %v552 = vand.u32 %v551, 4294901760
    %v553 = vsub.f32 %v551, %v552
    %v554 = vand.u32 %v553, 4294901760
    %555 = vmatpush1.msra.mxu0 %v554
    %556 = vmatprep.subr.mxu0 0.0
    %v557 = vand.u32 %v213, 4294901760
    %v558 = vsub.f32 %v213, %v557
    %v559 = vand.u32 %v558, 4294901760
    %v560 = vsub.f32 %v558, %v559
    %v561 = vand.u32 %v560, 4294901760
    %562 = vmatpush1.msra.mxu0 %v561
    %563 = vmatprep.subr.mxu0 0.0
    %v564 = vand.u32 %v214, 4294901760
    %v565 = vsub.f32 %v214, %v564
    %v566 = vand.u32 %v565, 4294901760
    %v567 = vsub.f32 %v565, %v566
    %v568 = vand.u32 %v567, 4294901760
    %569 = vmatpush1.msra.mxu0 %v568
    %570 = vmatprep.subr.mxu0 0.0
    %v571 = vand.u32 %v215, 4294901760
    %v572 = vsub.f32 %v215, %v571
    %v573 = vand.u32 %v572, 4294901760
    %v574 = vsub.f32 %v572, %v573
    %v575 = vand.u32 %v574, 4294901760
    %576 = vmatpush1.msra.mxu0 %v575
    %577 = vmatprep.subr.mxu0 0.0
    %v578 = vand.u32 %v216, 4294901760
    %v579 = vsub.f32 %v216, %v578
    %v580 = vand.u32 %v579, 4294901760
    %v581 = vsub.f32 %v579, %v580
    %v582 = vand.u32 %v581, 4294901760
    %583 = vmatpush1.msra.mxu0 %v582
    %584 = vmatprep.subr.mxu0 0.0
    %v585 = vand.u32 %v217, 4294901760
    %v586 = vsub.f32 %v217, %v585
    %v587 = vand.u32 %v586, 4294901760
    %v588 = vsub.f32 %v586, %v587
    %v589 = vand.u32 %v588, 4294901760
    %590 = vmatpush1.msra.mxu0 %v589
    %591 = vmatprep.subr.mxu0 0.0
    %v592 = vand.u32 %v218, 4294901760
    %v593 = vsub.f32 %v218, %v592
    %v594 = vand.u32 %v593, 4294901760
    %v595 = vsub.f32 %v593, %v594
    %v596 = vand.u32 %v595, 4294901760
    %597 = vmatpush1.msra.mxu0 %v596
    %598 = vmatprep.subr.mxu0 0.0
    %v599 = vand.u32 %v219, 4294901760
    %v600 = vsub.f32 %v219, %v599
    %v601 = vand.u32 %v600, 4294901760
    %v602 = vsub.f32 %v600, %v601
    %v603 = vand.u32 %v602, 4294901760
    %604 = vmatpush1.msra.mxu0 %v603
    %605 = vmatprep.subr.mxu0 0.0
    %v606 = vand.u32 %v220, 4294901760
    %v607 = vsub.f32 %v220, %v606
    %v608 = vand.u32 %v607, 4294901760
    %v609 = vsub.f32 %v607, %v608
    %v610 = vand.u32 %v609, 4294901760
    %611 = vmatpush1.msra.mxu0 %v610
    %612 = vmatprep.subr.mxu0 0.0
    %v613 = vand.u32 %v221, 4294901760
    %v614 = vsub.f32 %v221, %v613
    %v615 = vand.u32 %v614, 4294901760
    %v616 = vsub.f32 %v614, %v615
    %v617 = vand.u32 %v616, 4294901760
    %618 = vmatpush1.msra.mxu0 %v617
    %619 = vmatprep.subr.mxu0 0.0
    %v620 = vand.u32 %v222, 4294901760
    %v621 = vsub.f32 %v222, %v620
    %v622 = vand.u32 %v621, 4294901760
    %v623 = vsub.f32 %v621, %v622
    %v624 = vand.u32 %v623, 4294901760
    %625 = vmatpush1.msra.mxu0 %v624
    %626 = vmatprep.subr.mxu0 0.0
    %v627 = vand.u32 %v223, 4294901760
    %v628 = vsub.f32 %v223, %v627
    %v629 = vand.u32 %v628, 4294901760
    %v630 = vsub.f32 %v628, %v629
    %v631 = vand.u32 %v630, 4294901760
    %632 = vmatpush1.msra.mxu0 %v631
    %633 = vmatprep.subr.mxu0 0.0
    %v634 = vand.u32 %v224, 4294901760
    %v635 = vsub.f32 %v224, %v634
    %v636 = vand.u32 %v635, 4294901760
    %v637 = vsub.f32 %v635, %v636
    %v638 = vand.u32 %v637, 4294901760
    %639 = vmatpush1.msra.mxu0 %v638
    %640 = vmatprep.subr.mxu0 0.0
    %v641 = vand.u32 %v225, 4294901760
    %v642 = vsub.f32 %v225, %v641
    %v643 = vand.u32 %v642, 4294901760
    %v644 = vsub.f32 %v642, %v643
    %v645 = vand.u32 %v644, 4294901760
    %646 = vmatpush1.msra.mxu0 %v645
    %647 = vmatprep.subr.mxu0 0.0
    %v648 = vand.u32 %v226, 4294901760
    %v649 = vsub.f32 %v226, %v648
    %v650 = vand.u32 %v649, 4294901760
    %v651 = vsub.f32 %v649, %v650
    %v652 = vand.u32 %v651, 4294901760
    %653 = vmatpush1.msra.mxu0 %v652
    %654 = vmatprep.subr.mxu0 0.0
    %v655 = vand.u32 %v227, 4294901760
    %v656 = vsub.f32 %v227, %v655
    %v657 = vand.u32 %v656, 4294901760
    %v658 = vsub.f32 %v656, %v657
    %v659 = vand.u32 %v658, 4294901760
    %660 = vmatpush1.msra.mxu0 %v659
    %661 = vmatprep.subr.mxu0 0.0
    %v662 = vand.u32 %v228, 4294901760
    %v663 = vsub.f32 %v228, %v662
    %v664 = vand.u32 %v663, 4294901760
    %v665 = vsub.f32 %v663, %v664
    %v666 = vand.u32 %v665, 4294901760
    %667 = vmatpush1.msra.mxu0 %v666
    %v668 = vand.u32 %v190, 4294901760
    %669 = vmatprep.mubr.f32.mxu0 %v668
    %v670 = vand.u32 %v189, 4294901760
    %671 = vmatmul.mubr.f32.gmra.mrb[0].mxu0 %v670
    %v672 = vpop.f32.mrb[0].mxu0
    %v673 = vadd.f32 %v441, %v672
    %v674 = vpop.f32.mrb[0].mxu0
    %675 = vdwg.mxu0
    %676 = vmatprep.subr.mxu0 0.0
    %v677 = vand.u32 %v197, 4294901760
    %v678 = vsub.f32 %v197, %v677
    %679 = vmatpush1.msra.mxu0 %v678
    %680 = vmatprep.subr.mxu0 0.0
    %v681 = vand.u32 %v198, 4294901760
    %v682 = vsub.f32 %v198, %v681
    %683 = vmatpush1.msra.mxu0 %v682
    %684 = vmatprep.subr.mxu0 0.0
    %v685 = vand.u32 %v199, 4294901760
    %v686 = vsub.f32 %v199, %v685
    %687 = vmatpush1.msra.mxu0 %v686
    %688 = vmatprep.subr.mxu0 0.0
    %v689 = vand.u32 %v200, 4294901760
    %v690 = vsub.f32 %v200, %v689
    %691 = vmatpush1.msra.mxu0 %v690
    %692 = vmatprep.subr.mxu0 0.0
    %v693 = vand.u32 %v201, 4294901760
    %v694 = vsub.f32 %v201, %v693
    %695 = vmatpush1.msra.mxu0 %v694
    %696 = vmatprep.subr.mxu0 0.0
    %v697 = vand.u32 %v202, 4294901760
    %v698 = vsub.f32 %v202, %v697
    %699 = vmatpush1.msra.mxu0 %v698
    %700 = vmatprep.subr.mxu0 0.0
    %v701 = vand.u32 %v203, 4294901760
    %v702 = vsub.f32 %v203, %v701
    %703 = vmatpush1.msra.mxu0 %v702
    %704 = vmatprep.subr.mxu0 0.0
    %v705 = vand.u32 %v204, 4294901760
    %v706 = vsub.f32 %v204, %v705
    %707 = vmatpush1.msra.mxu0 %v706
    %708 = vmatprep.subr.mxu0 0.0
    %v709 = vand.u32 %v205, 4294901760
    %v710 = vsub.f32 %v205, %v709
    %711 = vmatpush1.msra.mxu0 %v710
    %712 = vmatprep.subr.mxu0 0.0
    %v713 = vand.u32 %v206, 4294901760
    %v714 = vsub.f32 %v206, %v713
    %715 = vmatpush1.msra.mxu0 %v714
    %716 = vmatprep.subr.mxu0 0.0
    %v717 = vand.u32 %v207, 4294901760
    %v718 = vsub.f32 %v207, %v717
    %719 = vmatpush1.msra.mxu0 %v718
    %720 = vmatprep.subr.mxu0 0.0
    %v721 = vand.u32 %v208, 4294901760
    %v722 = vsub.f32 %v208, %v721
    %723 = vmatpush1.msra.mxu0 %v722
    %724 = vmatprep.subr.mxu0 0.0
    %v725 = vand.u32 %v209, 4294901760
    %v726 = vsub.f32 %v209, %v725
    %727 = vmatpush1.msra.mxu0 %v726
    %728 = vmatprep.subr.mxu0 0.0
    %v729 = vand.u32 %v210, 4294901760
    %v730 = vsub.f32 %v210, %v729
    %731 = vmatpush1.msra.mxu0 %v730
    %732 = vmatprep.subr.mxu0 0.0
    %v733 = vand.u32 %v211, 4294901760
    %v734 = vsub.f32 %v211, %v733
    %735 = vmatpush1.msra.mxu0 %v734
    %736 = vmatprep.subr.mxu0 0.0
    %v737 = vand.u32 %v212, 4294901760
    %v738 = vsub.f32 %v212, %v737
    %739 = vmatpush1.msra.mxu0 %v738
    %740 = vmatprep.subr.mxu0 0.0
    %v741 = vand.u32 %v213, 4294901760
    %v742 = vsub.f32 %v213, %v741
    %743 = vmatpush1.msra.mxu0 %v742
    %744 = vmatprep.subr.mxu0 0.0
    %v745 = vand.u32 %v214, 4294901760
    %v746 = vsub.f32 %v214, %v745
    %747 = vmatpush1.msra.mxu0 %v746
    %748 = vmatprep.subr.mxu0 0.0
    %v749 = vand.u32 %v215, 4294901760
    %v750 = vsub.f32 %v215, %v749
    %751 = vmatpush1.msra.mxu0 %v750
    %752 = vmatprep.subr.mxu0 0.0
    %v753 = vand.u32 %v216, 4294901760
    %v754 = vsub.f32 %v216, %v753
    %755 = vmatpush1.msra.mxu0 %v754
    %756 = vmatprep.subr.mxu0 0.0
    %v757 = vand.u32 %v217, 4294901760
    %v758 = vsub.f32 %v217, %v757
    %759 = vmatpush1.msra.mxu0 %v758
    %760 = vmatprep.subr.mxu0 0.0
    %v761 = vand.u32 %v218, 4294901760
    %v762 = vsub.f32 %v218, %v761
    %763 = vmatpush1.msra.mxu0 %v762
    %764 = vmatprep.subr.mxu0 0.0
    %v765 = vand.u32 %v219, 4294901760
    %v766 = vsub.f32 %v219, %v765
    %767 = vmatpush1.msra.mxu0 %v766
    %768 = vmatprep.subr.mxu0 0.0
    %v769 = vand.u32 %v220, 4294901760
    %v770 = vsub.f32 %v220, %v769
    %771 = vmatpush1.msra.mxu0 %v770
    %772 = vmatprep.subr.mxu0 0.0
    %v773 = vand.u32 %v221, 4294901760
    %v774 = vsub.f32 %v221, %v773
    %775 = vmatpush1.msra.mxu0 %v774
    %776 = vmatprep.subr.mxu0 0.0
    %v777 = vand.u32 %v222, 4294901760
    %v778 = vsub.f32 %v222, %v777
    %779 = vmatpush1.msra.mxu0 %v778
    %780 = vmatprep.subr.mxu0 0.0
    %v781 = vand.u32 %v223, 4294901760
    %v782 = vsub.f32 %v223, %v781
    %783 = vmatpush1.msra.mxu0 %v782
    %784 = vmatprep.subr.mxu0 0.0
    %v785 = vand.u32 %v224, 4294901760
    %v786 = vsub.f32 %v224, %v785
    %787 = vmatpush1.msra.mxu0 %v786
    %788 = vmatprep.subr.mxu0 0.0
    %v789 = vand.u32 %v225, 4294901760
    %v790 = vsub.f32 %v225, %v789
    %791 = vmatpush1.msra.mxu0 %v790
    %792 = vmatprep.subr.mxu0 0.0
    %v793 = vand.u32 %v226, 4294901760
    %v794 = vsub.f32 %v226, %v793
    %795 = vmatpush1.msra.mxu0 %v794
    %796 = vmatprep.subr.mxu0 0.0
    %v797 = vand.u32 %v227, 4294901760
    %v798 = vsub.f32 %v227, %v797
    %799 = vmatpush1.msra.mxu0 %v798
    %800 = vmatprep.subr.mxu0 0.0
    %v801 = vand.u32 %v228, 4294901760
    %v802 = vsub.f32 %v228, %v801
    %803 = vmatpush1.msra.mxu0 %v802
    %v804 = vand.u32 %v190, 4294901760
    %v805 = vsub.f32 %v190, %v804
    %806 = vmatprep.mubr.f32.mxu0 %v805
    %v807 = vand.u32 %v189, 4294901760
    %v808 = vsub.f32 %v189, %v807
    %809 = vmatmul.mubr.f32.gmra.mrb[0].mxu0 %v808
    %v810 = vpop.f32.mrb[0].mxu0
    %v811 = vadd.f32 %v673, %v810
    %v812 = vpop.f32.mrb[0].mxu0
    %813 = vdwg.mxu0
    %814 = vmatprep.subr.mxu0 0.0
    %v815 = vand.u32 %v197, 4294901760
    %816 = vmatpush1.msra.mxu0 %v815
    %817 = vmatprep.subr.mxu0 0.0
    %v818 = vand.u32 %v198, 4294901760
    %819 = vmatpush1.msra.mxu0 %v818
    %820 = vmatprep.subr.mxu0 0.0
    %v821 = vand.u32 %v199, 4294901760
    %822 = vmatpush1.msra.mxu0 %v821
    %823 = vmatprep.subr.mxu0 0.0
    %v824 = vand.u32 %v200, 4294901760
    %825 = vmatpush1.msra.mxu0 %v824
    %826 = vmatprep.subr.mxu0 0.0
    %v827 = vand.u32 %v201, 4294901760
    %828 = vmatpush1.msra.mxu0 %v827
    %829 = vmatprep.subr.mxu0 0.0
    %v830 = vand.u32 %v202, 4294901760
    %831 = vmatpush1.msra.mxu0 %v830
    %832 = vmatprep.subr.mxu0 0.0
    %v833 = vand.u32 %v203, 4294901760
    %834 = vmatpush1.msra.mxu0 %v833
    %835 = vmatprep.subr.mxu0 0.0
    %v836 = vand.u32 %v204, 4294901760
    %837 = vmatpush1.msra.mxu0 %v836
    %838 = vmatprep.subr.mxu0 0.0
    %v839 = vand.u32 %v205, 4294901760
    %840 = vmatpush1.msra.mxu0 %v839
    %841 = vmatprep.subr.mxu0 0.0
    %v842 = vand.u32 %v206, 4294901760
    %843 = vmatpush1.msra.mxu0 %v842
    %844 = vmatprep.subr.mxu0 0.0
    %v845 = vand.u32 %v207, 4294901760
    %846 = vmatpush1.msra.mxu0 %v845
    %847 = vmatprep.subr.mxu0 0.0
    %v848 = vand.u32 %v208, 4294901760
    %849 = vmatpush1.msra.mxu0 %v848
    %850 = vmatprep.subr.mxu0 0.0
    %v851 = vand.u32 %v209, 4294901760
    %852 = vmatpush1.msra.mxu0 %v851
    %853 = vmatprep.subr.mxu0 0.0
    %v854 = vand.u32 %v210, 4294901760
    %855 = vmatpush1.msra.mxu0 %v854
    %856 = vmatprep.subr.mxu0 0.0
    %v857 = vand.u32 %v211, 4294901760
    %858 = vmatpush1.msra.mxu0 %v857
    %859 = vmatprep.subr.mxu0 0.0
    %v860 = vand.u32 %v212, 4294901760
    %861 = vmatpush1.msra.mxu0 %v860
    %862 = vmatprep.subr.mxu0 0.0
    %v863 = vand.u32 %v213, 4294901760
    %864 = vmatpush1.msra.mxu0 %v863
    %865 = vmatprep.subr.mxu0 0.0
    %v866 = vand.u32 %v214, 4294901760
    %867 = vmatpush1.msra.mxu0 %v866
    %868 = vmatprep.subr.mxu0 0.0
    %v869 = vand.u32 %v215, 4294901760
    %870 = vmatpush1.msra.mxu0 %v869
    %871 = vmatprep.subr.mxu0 0.0
    %v872 = vand.u32 %v216, 4294901760
    %873 = vmatpush1.msra.mxu0 %v872
    %874 = vmatprep.subr.mxu0 0.0
    %v875 = vand.u32 %v217, 4294901760
    %876 = vmatpush1.msra.mxu0 %v875
    %877 = vmatprep.subr.mxu0 0.0
    %v878 = vand.u32 %v218, 4294901760
    %879 = vmatpush1.msra.mxu0 %v878
    %880 = vmatprep.subr.mxu0 0.0
    %v881 = vand.u32 %v219, 4294901760
    %882 = vmatpush1.msra.mxu0 %v881
    %883 = vmatprep.subr.mxu0 0.0
    %v884 = vand.u32 %v220, 4294901760
    %885 = vmatpush1.msra.mxu0 %v884
    %886 = vmatprep.subr.mxu0 0.0
    %v887 = vand.u32 %v221, 4294901760
    %888 = vmatpush1.msra.mxu0 %v887
    %889 = vmatprep.subr.mxu0 0.0
    %v890 = vand.u32 %v222, 4294901760
    %891 = vmatpush1.msra.mxu0 %v890
    %892 = vmatprep.subr.mxu0 0.0
    %v893 = vand.u32 %v223, 4294901760
    %894 = vmatpush1.msra.mxu0 %v893
    %895 = vmatprep.subr.mxu0 0.0
    %v896 = vand.u32 %v224, 4294901760
    %897 = vmatpush1.msra.mxu0 %v896
    %898 = vmatprep.subr.mxu0 0.0
    %v899 = vand.u32 %v225, 4294901760
    %900 = vmatpush1.msra.mxu0 %v899
    %901 = vmatprep.subr.mxu0 0.0
    %v902 = vand.u32 %v226, 4294901760
    %903 = vmatpush1.msra.mxu0 %v902
    %904 = vmatprep.subr.mxu0 0.0
    %v905 = vand.u32 %v227, 4294901760
    %906 = vmatpush1.msra.mxu0 %v905
    %907 = vmatprep.subr.mxu0 0.0
    %v908 = vand.u32 %v228, 4294901760
    %909 = vmatpush1.msra.mxu0 %v908
    %v910 = vand.u32 %v190, 4294901760
    %v911 = vsub.f32 %v190, %v910
    %v912 = vand.u32 %v911, 4294901760
    %913 = vmatprep.mubr.f32.mxu0 %v912
    %v914 = vand.u32 %v189, 4294901760
    %v915 = vsub.f32 %v189, %v914
    %v916 = vand.u32 %v915, 4294901760
    %917 = vmatmul.mubr.f32.gmra.mrb[0].mxu0 %v916
    %v918 = vpop.f32.mrb[0].mxu0
    %v919 = vadd.f32 %v811, %v918
    %v920 = vpop.f32.mrb[0].mxu0
    %921 = vdwg.mxu0
    %922 = vmatprep.subr.mxu0 0.0
    %v923 = vand.u32 %v197, 4294901760
    %v924 = vsub.f32 %v197, %v923
    %v925 = vand.u32 %v924, 4294901760
    %926 = vmatpush1.msra.mxu0 %v925
    %927 = vmatprep.subr.mxu0 0.0
    %v928 = vand.u32 %v198, 4294901760
    %v929 = vsub.f32 %v198, %v928
    %v930 = vand.u32 %v929, 4294901760
    %931 = vmatpush1.msra.mxu0 %v930
    %932 = vmatprep.subr.mxu0 0.0
    %v933 = vand.u32 %v199, 4294901760
    %v934 = vsub.f32 %v199, %v933
    %v935 = vand.u32 %v934, 4294901760
    %936 = vmatpush1.msra.mxu0 %v935
    %937 = vmatprep.subr.mxu0 0.0
    %v938 = vand.u32 %v200, 4294901760
    %v939 = vsub.f32 %v200, %v938
    %v940 = vand.u32 %v939, 4294901760
    %941 = vmatpush1.msra.mxu0 %v940
    %942 = vmatprep.subr.mxu0 0.0
    %v943 = vand.u32 %v201, 4294901760
    %v944 = vsub.f32 %v201, %v943
    %v945 = vand.u32 %v944, 4294901760
    %946 = vmatpush1.msra.mxu0 %v945
    %947 = vmatprep.subr.mxu0 0.0
    %v948 = vand.u32 %v202, 4294901760
    %v949 = vsub.f32 %v202, %v948
    %v950 = vand.u32 %v949, 4294901760
    %951 = vmatpush1.msra.mxu0 %v950
    %952 = vmatprep.subr.mxu0 0.0
    %v953 = vand.u32 %v203, 4294901760
    %v954 = vsub.f32 %v203, %v953
    %v955 = vand.u32 %v954, 4294901760
    %956 = vmatpush1.msra.mxu0 %v955
    %957 = vmatprep.subr.mxu0 0.0
    %v958 = vand.u32 %v204, 4294901760
    %v959 = vsub.f32 %v204, %v958
    %v960 = vand.u32 %v959, 4294901760
    %961 = vmatpush1.msra.mxu0 %v960
    %962 = vmatprep.subr.mxu0 0.0
    %v963 = vand.u32 %v205, 4294901760
    %v964 = vsub.f32 %v205, %v963
    %v965 = vand.u32 %v964, 4294901760
    %966 = vmatpush1.msra.mxu0 %v965
    %967 = vmatprep.subr.mxu0 0.0
    %v968 = vand.u32 %v206, 4294901760
    %v969 = vsub.f32 %v206, %v968
    %v970 = vand.u32 %v969, 4294901760
    %971 = vmatpush1.msra.mxu0 %v970
    %972 = vmatprep.subr.mxu0 0.0
    %v973 = vand.u32 %v207, 4294901760
    %v974 = vsub.f32 %v207, %v973
    %v975 = vand.u32 %v974, 4294901760
    %976 = vmatpush1.msra.mxu0 %v975
    %977 = vmatprep.subr.mxu0 0.0
    %v978 = vand.u32 %v208, 4294901760
    %v979 = vsub.f32 %v208, %v978
    %v980 = vand.u32 %v979, 4294901760
    %981 = vmatpush1.msra.mxu0 %v980
    %982 = vmatprep.subr.mxu0 0.0
    %v983 = vand.u32 %v209, 4294901760
    %v984 = vsub.f32 %v209, %v983
    %v985 = vand.u32 %v984, 4294901760
    %986 = vmatpush1.msra.mxu0 %v985
    %987 = vmatprep.subr.mxu0 0.0
    %v988 = vand.u32 %v210, 4294901760
    %v989 = vsub.f32 %v210, %v988
    %v990 = vand.u32 %v989, 4294901760
    %991 = vmatpush1.msra.mxu0 %v990
    %992 = vmatprep.subr.mxu0 0.0
    %v993 = vand.u32 %v211, 4294901760
    %v994 = vsub.f32 %v211, %v993
    %v995 = vand.u32 %v994, 4294901760
    %996 = vmatpush1.msra.mxu0 %v995
    %997 = vmatprep.subr.mxu0 0.0
    %v998 = vand.u32 %v212, 4294901760
    %v999 = vsub.f32 %v212, %v998
    %v1000 = vand.u32 %v999, 4294901760
    %1001 = vmatpush1.msra.mxu0 %v1000
    %1002 = vmatprep.subr.mxu0 0.0
    %v1003 = vand.u32 %v213, 4294901760
    %v1004 = vsub.f32 %v213, %v1003
    %v1005 = vand.u32 %v1004, 4294901760
    %1006 = vmatpush1.msra.mxu0 %v1005
    %1007 = vmatprep.subr.mxu0 0.0
    %v1008 = vand.u32 %v214, 4294901760
    %v1009 = vsub.f32 %v214, %v1008
    %v1010 = vand.u32 %v1009, 4294901760
    %1011 = vmatpush1.msra.mxu0 %v1010
    %1012 = vmatprep.subr.mxu0 0.0
    %v1013 = vand.u32 %v215, 4294901760
    %v1014 = vsub.f32 %v215, %v1013
    %v1015 = vand.u32 %v1014, 4294901760
    %1016 = vmatpush1.msra.mxu0 %v1015
    %1017 = vmatprep.subr.mxu0 0.0
    %v1018 = vand.u32 %v216, 4294901760
    %v1019 = vsub.f32 %v216, %v1018
    %v1020 = vand.u32 %v1019, 4294901760
    %1021 = vmatpush1.msra.mxu0 %v1020
    %1022 = vmatprep.subr.mxu0 0.0
    %v1023 = vand.u32 %v217, 4294901760
    %v1024 = vsub.f32 %v217, %v1023
    %v1025 = vand.u32 %v1024, 4294901760
    %1026 = vmatpush1.msra.mxu0 %v1025
    %1027 = vmatprep.subr.mxu0 0.0
    %v1028 = vand.u32 %v218, 4294901760
    %v1029 = vsub.f32 %v218, %v1028
    %v1030 = vand.u32 %v1029, 4294901760
    %1031 = vmatpush1.msra.mxu0 %v1030
    %1032 = vmatprep.subr.mxu0 0.0
    %v1033 = vand.u32 %v219, 4294901760
    %v1034 = vsub.f32 %v219, %v1033
    %v1035 = vand.u32 %v1034, 4294901760
    %1036 = vmatpush1.msra.mxu0 %v1035
    %1037 = vmatprep.subr.mxu0 0.0
    %v1038 = vand.u32 %v220, 4294901760
    %v1039 = vsub.f32 %v220, %v1038
    %v1040 = vand.u32 %v1039, 4294901760
    %1041 = vmatpush1.msra.mxu0 %v1040
    %1042 = vmatprep.subr.mxu0 0.0
    %v1043 = vand.u32 %v221, 4294901760
    %v1044 = vsub.f32 %v221, %v1043
    %v1045 = vand.u32 %v1044, 4294901760
    %1046 = vmatpush1.msra.mxu0 %v1045
    %1047 = vmatprep.subr.mxu0 0.0
    %v1048 = vand.u32 %v222, 4294901760
    %v1049 = vsub.f32 %v222, %v1048
    %v1050 = vand.u32 %v1049, 4294901760
    %1051 = vmatpush1.msra.mxu0 %v1050
    %1052 = vmatprep.subr.mxu0 0.0
    %v1053 = vand.u32 %v223, 4294901760
    %v1054 = vsub.f32 %v223, %v1053
    %v1055 = vand.u32 %v1054, 4294901760
    %1056 = vmatpush1.msra.mxu0 %v1055
    %1057 = vmatprep.subr.mxu0 0.0
    %v1058 = vand.u32 %v224, 4294901760
    %v1059 = vsub.f32 %v224, %v1058
    %v1060 = vand.u32 %v1059, 4294901760
    %1061 = vmatpush1.msra.mxu0 %v1060
    %1062 = vmatprep.subr.mxu0 0.0
    %v1063 = vand.u32 %v225, 4294901760
    %v1064 = vsub.f32 %v225, %v1063
    %v1065 = vand.u32 %v1064, 4294901760
    %1066 = vmatpush1.msra.mxu0 %v1065
    %1067 = vmatprep.subr.mxu0 0.0
    %v1068 = vand.u32 %v226, 4294901760
    %v1069 = vsub.f32 %v226, %v1068
    %v1070 = vand.u32 %v1069, 4294901760
    %1071 = vmatpush1.msra.mxu0 %v1070
    %1072 = vmatprep.subr.mxu0 0.0
    %v1073 = vand.u32 %v227, 4294901760
    %v1074 = vsub.f32 %v227, %v1073
    %v1075 = vand.u32 %v1074, 4294901760
    %1076 = vmatpush1.msra.mxu0 %v1075
    %1077 = vmatprep.subr.mxu0 0.0
    %v1078 = vand.u32 %v228, 4294901760
    %v1079 = vsub.f32 %v228, %v1078
    %v1080 = vand.u32 %v1079, 4294901760
    %1081 = vmatpush1.msra.mxu0 %v1080
    %v1082 = vand.u32 %v190, 4294901760
    %1083 = vmatprep.mubr.f32.mxu0 %v1082
    %v1084 = vand.u32 %v189, 4294901760
    %1085 = vmatmul.mubr.f32.gmra.mrb[0].mxu0 %v1084
    %v1086 = vpop.f32.mrb[0].mxu0
    %v1087 = vadd.f32 %v919, %v1086
    %v1088 = vpop.f32.mrb[0].mxu0
    %1089 = vdwg.mxu0
    %1090 = vmatprep.subr.mxu0 0.0
    %v1091 = vand.u32 %v197, 4294901760
    %1092 = vmatpush1.msra.mxu0 %v1091
    %1093 = vmatprep.subr.mxu0 0.0
    %v1094 = vand.u32 %v198, 4294901760
    %1095 = vmatpush1.msra.mxu0 %v1094
    %1096 = vmatprep.subr.mxu0 0.0
    %v1097 = vand.u32 %v199, 4294901760
    %1098 = vmatpush1.msra.mxu0 %v1097
    %1099 = vmatprep.subr.mxu0 0.0
    %v1100 = vand.u32 %v200, 4294901760
    %1101 = vmatpush1.msra.mxu0 %v1100
    %1102 = vmatprep.subr.mxu0 0.0
    %v1103 = vand.u32 %v201, 4294901760
    %1104 = vmatpush1.msra.mxu0 %v1103
    %1105 = vmatprep.subr.mxu0 0.0
    %v1106 = vand.u32 %v202, 4294901760
    %1107 = vmatpush1.msra.mxu0 %v1106
    %1108 = vmatprep.subr.mxu0 0.0
    %v1109 = vand.u32 %v203, 4294901760
    %1110 = vmatpush1.msra.mxu0 %v1109
    %1111 = vmatprep.subr.mxu0 0.0
    %v1112 = vand.u32 %v204, 4294901760
    %1113 = vmatpush1.msra.mxu0 %v1112
    %1114 = vmatprep.subr.mxu0 0.0
    %v1115 = vand.u32 %v205, 4294901760
    %1116 = vmatpush1.msra.mxu0 %v1115
    %1117 = vmatprep.subr.mxu0 0.0
    %v1118 = vand.u32 %v206, 4294901760
    %1119 = vmatpush1.msra.mxu0 %v1118
    %1120 = vmatprep.subr.mxu0 0.0
    %v1121 = vand.u32 %v207, 4294901760
    %1122 = vmatpush1.msra.mxu0 %v1121
    %1123 = vmatprep.subr.mxu0 0.0
    %v1124 = vand.u32 %v208, 4294901760
    %1125 = vmatpush1.msra.mxu0 %v1124
    %1126 = vmatprep.subr.mxu0 0.0
    %v1127 = vand.u32 %v209, 4294901760
    %1128 = vmatpush1.msra.mxu0 %v1127
    %1129 = vmatprep.subr.mxu0 0.0
    %v1130 = vand.u32 %v210, 4294901760
    %1131 = vmatpush1.msra.mxu0 %v1130
    %1132 = vmatprep.subr.mxu0 0.0
    %v1133 = vand.u32 %v211, 4294901760
    %1134 = vmatpush1.msra.mxu0 %v1133
    %1135 = vmatprep.subr.mxu0 0.0
    %v1136 = vand.u32 %v212, 4294901760
    %1137 = vmatpush1.msra.mxu0 %v1136
    %1138 = vmatprep.subr.mxu0 0.0
    %v1139 = vand.u32 %v213, 4294901760
    %1140 = vmatpush1.msra.mxu0 %v1139
    %1141 = vmatprep.subr.mxu0 0.0
    %v1142 = vand.u32 %v214, 4294901760
    %1143 = vmatpush1.msra.mxu0 %v1142
    %1144 = vmatprep.subr.mxu0 0.0
    %v1145 = vand.u32 %v215, 4294901760
    %1146 = vmatpush1.msra.mxu0 %v1145
    %1147 = vmatprep.subr.mxu0 0.0
    %v1148 = vand.u32 %v216, 4294901760
    %1149 = vmatpush1.msra.mxu0 %v1148
    %1150 = vmatprep.subr.mxu0 0.0
    %v1151 = vand.u32 %v217, 4294901760
    %1152 = vmatpush1.msra.mxu0 %v1151
    %1153 = vmatprep.subr.mxu0 0.0
    %v1154 = vand.u32 %v218, 4294901760
    %1155 = vmatpush1.msra.mxu0 %v1154
    %1156 = vmatprep.subr.mxu0 0.0
    %v1157 = vand.u32 %v219, 4294901760
    %1158 = vmatpush1.msra.mxu0 %v1157
    %1159 = vmatprep.subr.mxu0 0.0
    %v1160 = vand.u32 %v220, 4294901760
    %1161 = vmatpush1.msra.mxu0 %v1160
    %1162 = vmatprep.subr.mxu0 0.0
    %v1163 = vand.u32 %v221, 4294901760
    %1164 = vmatpush1.msra.mxu0 %v1163
    %1165 = vmatprep.subr.mxu0 0.0
    %v1166 = vand.u32 %v222, 4294901760
    %1167 = vmatpush1.msra.mxu0 %v1166
    %1168 = vmatprep.subr.mxu0 0.0
    %v1169 = vand.u32 %v223, 4294901760
    %1170 = vmatpush1.msra.mxu0 %v1169
    %1171 = vmatprep.subr.mxu0 0.0
    %v1172 = vand.u32 %v224, 4294901760
    %1173 = vmatpush1.msra.mxu0 %v1172
    %1174 = vmatprep.subr.mxu0 0.0
    %v1175 = vand.u32 %v225, 4294901760
    %1176 = vmatpush1.msra.mxu0 %v1175
    %1177 = vmatprep.subr.mxu0 0.0
    %v1178 = vand.u32 %v226, 4294901760
    %1179 = vmatpush1.msra.mxu0 %v1178
    %1180 = vmatprep.subr.mxu0 0.0
    %v1181 = vand.u32 %v227, 4294901760
    %1182 = vmatpush1.msra.mxu0 %v1181
    %1183 = vmatprep.subr.mxu0 0.0
    %v1184 = vand.u32 %v228, 4294901760
    %1185 = vmatpush1.msra.mxu0 %v1184
    %v1186 = vand.u32 %v190, 4294901760
    %1187 = vmatprep.mubr.f32.mxu0 %v1186
    %v1188 = vand.u32 %v189, 4294901760
    %1189 = vmatmul.mubr.f32.gmra.mrb[0].mxu0 %v1188
    %v1190 = vpop.f32.mrb[0].mxu0
    %v1191 = vadd.f32 %v1087, %v1190
    %v1192 = vpop.f32.mrb[0].mxu0
    %1193 = vdwg.mxu0
    %1194 = vmatprep.subr.mxu0 0.0
    %v1195 = vand.u32 %v229, 4294901760
    %1196 = vmatpush1.msra.mxu0 %v1195
    %1197 = vmatprep.subr.mxu0 0.0
    %v1198 = vand.u32 %v230, 4294901760
    %1199 = vmatpush1.msra.mxu0 %v1198
    %1200 = vmatprep.subr.mxu0 0.0
    %v1201 = vand.u32 %v231, 4294901760
    %1202 = vmatpush1.msra.mxu0 %v1201
    %1203 = vmatprep.subr.mxu0 0.0
    %v1204 = vand.u32 %v232, 4294901760
    %1205 = vmatpush1.msra.mxu0 %v1204
    %1206 = vmatprep.subr.mxu0 0.0
    %v1207 = vand.u32 %v233, 4294901760
    %1208 = vmatpush1.msra.mxu0 %v1207
    %1209 = vmatprep.subr.mxu0 0.0
    %v1210 = vand.u32 %v234, 4294901760
    %1211 = vmatpush1.msra.mxu0 %v1210
    %1212 = vmatprep.subr.mxu0 0.0
    %v1213 = vand.u32 %v235, 4294901760
    %1214 = vmatpush1.msra.mxu0 %v1213
    %1215 = vmatprep.subr.mxu0 0.0
    %v1216 = vand.u32 %v236, 4294901760
    %1217 = vmatpush1.msra.mxu0 %v1216
    %1218 = vmatprep.subr.mxu0 0.0
    %v1219 = vand.u32 %v237, 4294901760
    %1220 = vmatpush1.msra.mxu0 %v1219
    %1221 = vmatprep.subr.mxu0 0.0
    %v1222 = vand.u32 %v238, 4294901760
    %1223 = vmatpush1.msra.mxu0 %v1222
    %1224 = vmatprep.subr.mxu0 0.0
    %v1225 = vand.u32 %v239, 4294901760
    %1226 = vmatpush1.msra.mxu0 %v1225
    %1227 = vmatprep.subr.mxu0 0.0
    %v1228 = vand.u32 %v240, 4294901760
    %1229 = vmatpush1.msra.mxu0 %v1228
    %1230 = vmatprep.subr.mxu0 0.0
    %v1231 = vand.u32 %v241, 4294901760
    %1232 = vmatpush1.msra.mxu0 %v1231
    %1233 = vmatprep.subr.mxu0 0.0
    %v1234 = vand.u32 %v242, 4294901760
    %1235 = vmatpush1.msra.mxu0 %v1234
    %1236 = vmatprep.subr.mxu0 0.0
    %v1237 = vand.u32 %v243, 4294901760
    %1238 = vmatpush1.msra.mxu0 %v1237
    %1239 = vmatprep.subr.mxu0 0.0
    %v1240 = vand.u32 %v244, 4294901760
    %1241 = vmatpush1.msra.mxu0 %v1240
    %1242 = vmatprep.subr.mxu0 0.0
    %v1243 = vand.u32 %v245, 4294901760
    %1244 = vmatpush1.msra.mxu0 %v1243
    %1245 = vmatprep.subr.mxu0 0.0
    %v1246 = vand.u32 %v246, 4294901760
    %1247 = vmatpush1.msra.mxu0 %v1246
    %1248 = vmatprep.subr.mxu0 0.0
    %v1249 = vand.u32 %v247, 4294901760
    %1250 = vmatpush1.msra.mxu0 %v1249
    %1251 = vmatprep.subr.mxu0 0.0
    %v1252 = vand.u32 %v248, 4294901760
    %1253 = vmatpush1.msra.mxu0 %v1252
    %1254 = vmatprep.subr.mxu0 0.0
    %v1255 = vand.u32 %v249, 4294901760
    %1256 = vmatpush1.msra.mxu0 %v1255
    %1257 = vmatprep.subr.mxu0 0.0
    %v1258 = vand.u32 %v250, 4294901760
    %1259 = vmatpush1.msra.mxu0 %v1258
    %1260 = vmatprep.subr.mxu0 0.0
    %v1261 = vand.u32 %v251, 4294901760
    %1262 = vmatpush1.msra.mxu0 %v1261
    %1263 = vmatprep.subr.mxu0 0.0
    %v1264 = vand.u32 %v252, 4294901760
    %1265 = vmatpush1.msra.mxu0 %v1264
    %1266 = vmatprep.subr.mxu0 0.0
    %v1267 = vand.u32 %v253, 4294901760
    %1268 = vmatpush1.msra.mxu0 %v1267
    %1269 = vmatprep.subr.mxu0 0.0
    %v1270 = vand.u32 %v254, 4294901760
    %1271 = vmatpush1.msra.mxu0 %v1270
    %1272 = vmatprep.subr.mxu0 0.0
    %v1273 = vand.u32 %v255, 4294901760
    %1274 = vmatpush1.msra.mxu0 %v1273
    %1275 = vmatprep.subr.mxu0 0.0
    %v1276 = vand.u32 %v256, 4294901760
    %1277 = vmatpush1.msra.mxu0 %v1276
    %1278 = vmatprep.subr.mxu0 0.0
    %v1279 = vand.u32 %v257, 4294901760
    %1280 = vmatpush1.msra.mxu0 %v1279
    %1281 = vmatprep.subr.mxu0 0.0
    %v1282 = vand.u32 %v258, 4294901760
    %1283 = vmatpush1.msra.mxu0 %v1282
    %1284 = vmatprep.subr.mxu0 0.0
    %v1285 = vand.u32 %v259, 4294901760
    %1286 = vmatpush1.msra.mxu0 %v1285
    %1287 = vmatprep.subr.mxu0 0.0
    %v1288 = vand.u32 %v260, 4294901760
    %1289 = vmatpush1.msra.mxu0 %v1288
    %v1290 = vand.u32 %v192, 4294901760
    %v1291 = vsub.f32 %v192, %v1290
    %v1292 = vand.u32 %v1291, 4294901760
    %v1293 = vsub.f32 %v1291, %v1292
    %v1294 = vand.u32 %v1293, 4294901760
    %1295 = vmatprep.mubr.f32.mxu0 %v1294
    %v1296 = vand.u32 %v191, 4294901760
    %v1297 = vsub.f32 %v191, %v1296
    %v1298 = vand.u32 %v1297, 4294901760
    %v1299 = vsub.f32 %v1297, %v1298
    %v1300 = vand.u32 %v1299, 4294901760
    %1301 = vmatmul.mubr.f32.gmra.mrb[0].mxu0 %v1300
    %v1302 = vpop.f32.mrb[0].mxu0
    %v1303 = vadd.f32 %v1191, %v1302
    %v1304 = vpop.f32.mrb[0].mxu0
    %1305 = vdwg.mxu0
    %1306 = vmatprep.subr.mxu0 0.0
    %v1307 = vand.u32 %v229, 4294901760
    %v1308 = vsub.f32 %v229, %v1307
    %v1309 = vand.u32 %v1308, 4294901760
    %v1310 = vsub.f32 %v1308, %v1309
    %v1311 = vand.u32 %v1310, 4294901760
    %1312 = vmatpush1.msra.mxu0 %v1311
    %1313 = vmatprep.subr.mxu0 0.0
    %v1314 = vand.u32 %v230, 4294901760
    %v1315 = vsub.f32 %v230, %v1314
    %v1316 = vand.u32 %v1315, 4294901760
    %v1317 = vsub.f32 %v1315, %v1316
    %v1318 = vand.u32 %v1317, 4294901760
    %1319 = vmatpush1.msra.mxu0 %v1318
    %1320 = vmatprep.subr.mxu0 0.0
    %v1321 = vand.u32 %v231, 4294901760
    %v1322 = vsub.f32 %v231, %v1321
    %v1323 = vand.u32 %v1322, 4294901760
    %v1324 = vsub.f32 %v1322, %v1323
    %v1325 = vand.u32 %v1324, 4294901760
    %1326 = vmatpush1.msra.mxu0 %v1325
    %1327 = vmatprep.subr.mxu0 0.0
    %v1328 = vand.u32 %v232, 4294901760
    %v1329 = vsub.f32 %v232, %v1328
    %v1330 = vand.u32 %v1329, 4294901760
    %v1331 = vsub.f32 %v1329, %v1330
    %v1332 = vand.u32 %v1331, 4294901760
    %1333 = vmatpush1.msra.mxu0 %v1332
    %1334 = vmatprep.subr.mxu0 0.0
    %v1335 = vand.u32 %v233, 4294901760
    %v1336 = vsub.f32 %v233, %v1335
    %v1337 = vand.u32 %v1336, 4294901760
    %v1338 = vsub.f32 %v1336, %v1337
    %v1339 = vand.u32 %v1338, 4294901760
    %1340 = vmatpush1.msra.mxu0 %v1339
    %1341 = vmatprep.subr.mxu0 0.0
    %v1342 = vand.u32 %v234, 4294901760
    %v1343 = vsub.f32 %v234, %v1342
    %v1344 = vand.u32 %v1343, 4294901760
    %v1345 = vsub.f32 %v1343, %v1344
    %v1346 = vand.u32 %v1345, 4294901760
    %1347 = vmatpush1.msra.mxu0 %v1346
    %1348 = vmatprep.subr.mxu0 0.0
    %v1349 = vand.u32 %v235, 4294901760
    %v1350 = vsub.f32 %v235, %v1349
    %v1351 = vand.u32 %v1350, 4294901760
    %v1352 = vsub.f32 %v1350, %v1351
    %v1353 = vand.u32 %v1352, 4294901760
    %1354 = vmatpush1.msra.mxu0 %v1353
    %1355 = vmatprep.subr.mxu0 0.0
    %v1356 = vand.u32 %v236, 4294901760
    %v1357 = vsub.f32 %v236, %v1356
    %v1358 = vand.u32 %v1357, 4294901760
    %v1359 = vsub.f32 %v1357, %v1358
    %v1360 = vand.u32 %v1359, 4294901760
    %1361 = vmatpush1.msra.mxu0 %v1360
    %1362 = vmatprep.subr.mxu0 0.0
    %v1363 = vand.u32 %v237, 4294901760
    %v1364 = vsub.f32 %v237, %v1363
    %v1365 = vand.u32 %v1364, 4294901760
    %v1366 = vsub.f32 %v1364, %v1365
    %v1367 = vand.u32 %v1366, 4294901760
    %1368 = vmatpush1.msra.mxu0 %v1367
    %1369 = vmatprep.subr.mxu0 0.0
    %v1370 = vand.u32 %v238, 4294901760
    %v1371 = vsub.f32 %v238, %v1370
    %v1372 = vand.u32 %v1371, 4294901760
    %v1373 = vsub.f32 %v1371, %v1372
    %v1374 = vand.u32 %v1373, 4294901760
    %1375 = vmatpush1.msra.mxu0 %v1374
    %1376 = vmatprep.subr.mxu0 0.0
    %v1377 = vand.u32 %v239, 4294901760
    %v1378 = vsub.f32 %v239, %v1377
    %v1379 = vand.u32 %v1378, 4294901760
    %v1380 = vsub.f32 %v1378, %v1379
    %v1381 = vand.u32 %v1380, 4294901760
    %1382 = vmatpush1.msra.mxu0 %v1381
    %1383 = vmatprep.subr.mxu0 0.0
    %v1384 = vand.u32 %v240, 4294901760
    %v1385 = vsub.f32 %v240, %v1384
    %v1386 = vand.u32 %v1385, 4294901760
    %v1387 = vsub.f32 %v1385, %v1386
    %v1388 = vand.u32 %v1387, 4294901760
    %1389 = vmatpush1.msra.mxu0 %v1388
    %1390 = vmatprep.subr.mxu0 0.0
    %v1391 = vand.u32 %v241, 4294901760
    %v1392 = vsub.f32 %v241, %v1391
    %v1393 = vand.u32 %v1392, 4294901760
    %v1394 = vsub.f32 %v1392, %v1393
    %v1395 = vand.u32 %v1394, 4294901760
    %1396 = vmatpush1.msra.mxu0 %v1395
    %1397 = vmatprep.subr.mxu0 0.0
    %v1398 = vand.u32 %v242, 4294901760
    %v1399 = vsub.f32 %v242, %v1398
    %v1400 = vand.u32 %v1399, 4294901760
    %v1401 = vsub.f32 %v1399, %v1400
    %v1402 = vand.u32 %v1401, 4294901760
    %1403 = vmatpush1.msra.mxu0 %v1402
    %1404 = vmatprep.subr.mxu0 0.0
    %v1405 = vand.u32 %v243, 4294901760
    %v1406 = vsub.f32 %v243, %v1405
    %v1407 = vand.u32 %v1406, 4294901760
    %v1408 = vsub.f32 %v1406, %v1407
    %v1409 = vand.u32 %v1408, 4294901760
    %1410 = vmatpush1.msra.mxu0 %v1409
    %1411 = vmatprep.subr.mxu0 0.0
    %v1412 = vand.u32 %v244, 4294901760
    %v1413 = vsub.f32 %v244, %v1412
    %v1414 = vand.u32 %v1413, 4294901760
    %v1415 = vsub.f32 %v1413, %v1414
    %v1416 = vand.u32 %v1415, 4294901760
    %1417 = vmatpush1.msra.mxu0 %v1416
    %1418 = vmatprep.subr.mxu0 0.0
    %v1419 = vand.u32 %v245, 4294901760
    %v1420 = vsub.f32 %v245, %v1419
    %v1421 = vand.u32 %v1420, 4294901760
    %v1422 = vsub.f32 %v1420, %v1421
    %v1423 = vand.u32 %v1422, 4294901760
    %1424 = vmatpush1.msra.mxu0 %v1423
    %1425 = vmatprep.subr.mxu0 0.0
    %v1426 = vand.u32 %v246, 4294901760
    %v1427 = vsub.f32 %v246, %v1426
    %v1428 = vand.u32 %v1427, 4294901760
    %v1429 = vsub.f32 %v1427, %v1428
    %v1430 = vand.u32 %v1429, 4294901760
    %1431 = vmatpush1.msra.mxu0 %v1430
    %1432 = vmatprep.subr.mxu0 0.0
    %v1433 = vand.u32 %v247, 4294901760
    %v1434 = vsub.f32 %v247, %v1433
    %v1435 = vand.u32 %v1434, 4294901760
    %v1436 = vsub.f32 %v1434, %v1435
    %v1437 = vand.u32 %v1436, 4294901760
    %1438 = vmatpush1.msra.mxu0 %v1437
    %1439 = vmatprep.subr.mxu0 0.0
    %v1440 = vand.u32 %v248, 4294901760
    %v1441 = vsub.f32 %v248, %v1440
    %v1442 = vand.u32 %v1441, 4294901760
    %v1443 = vsub.f32 %v1441, %v1442
    %v1444 = vand.u32 %v1443, 4294901760
    %1445 = vmatpush1.msra.mxu0 %v1444
    %1446 = vmatprep.subr.mxu0 0.0
    %v1447 = vand.u32 %v249, 4294901760
    %v1448 = vsub.f32 %v249, %v1447
    %v1449 = vand.u32 %v1448, 4294901760
    %v1450 = vsub.f32 %v1448, %v1449
    %v1451 = vand.u32 %v1450, 4294901760
    %1452 = vmatpush1.msra.mxu0 %v1451
    %1453 = vmatprep.subr.mxu0 0.0
    %v1454 = vand.u32 %v250, 4294901760
    %v1455 = vsub.f32 %v250, %v1454
    %v1456 = vand.u32 %v1455, 4294901760
    %v1457 = vsub.f32 %v1455, %v1456
    %v1458 = vand.u32 %v1457, 4294901760
    %1459 = vmatpush1.msra.mxu0 %v1458
    %1460 = vmatprep.subr.mxu0 0.0
    %v1461 = vand.u32 %v251, 4294901760
    %v1462 = vsub.f32 %v251, %v1461
    %v1463 = vand.u32 %v1462, 4294901760
    %v1464 = vsub.f32 %v1462, %v1463
    %v1465 = vand.u32 %v1464, 4294901760
    %1466 = vmatpush1.msra.mxu0 %v1465
    %1467 = vmatprep.subr.mxu0 0.0
    %v1468 = vand.u32 %v252, 4294901760
    %v1469 = vsub.f32 %v252, %v1468
    %v1470 = vand.u32 %v1469, 4294901760
    %v1471 = vsub.f32 %v1469, %v1470
    %v1472 = vand.u32 %v1471, 4294901760
    %1473 = vmatpush1.msra.mxu0 %v1472
    %1474 = vmatprep.subr.mxu0 0.0
    %v1475 = vand.u32 %v253, 4294901760
    %v1476 = vsub.f32 %v253, %v1475
    %v1477 = vand.u32 %v1476, 4294901760
    %v1478 = vsub.f32 %v1476, %v1477
    %v1479 = vand.u32 %v1478, 4294901760
    %1480 = vmatpush1.msra.mxu0 %v1479
    %1481 = vmatprep.subr.mxu0 0.0
    %v1482 = vand.u32 %v254, 4294901760
    %v1483 = vsub.f32 %v254, %v1482
    %v1484 = vand.u32 %v1483, 4294901760
    %v1485 = vsub.f32 %v1483, %v1484
    %v1486 = vand.u32 %v1485, 4294901760
    %1487 = vmatpush1.msra.mxu0 %v1486
    %1488 = vmatprep.subr.mxu0 0.0
    %v1489 = vand.u32 %v255, 4294901760
    %v1490 = vsub.f32 %v255, %v1489
    %v1491 = vand.u32 %v1490, 4294901760
    %v1492 = vsub.f32 %v1490, %v1491
    %v1493 = vand.u32 %v1492, 4294901760
    %1494 = vmatpush1.msra.mxu0 %v1493
    %1495 = vmatprep.subr.mxu0 0.0
    %v1496 = vand.u32 %v256, 4294901760
    %v1497 = vsub.f32 %v256, %v1496
    %v1498 = vand.u32 %v1497, 4294901760
    %v1499 = vsub.f32 %v1497, %v1498
    %v1500 = vand.u32 %v1499, 4294901760
    %1501 = vmatpush1.msra.mxu0 %v1500
    %1502 = vmatprep.subr.mxu0 0.0
    %v1503 = vand.u32 %v257, 4294901760
    %v1504 = vsub.f32 %v257, %v1503
    %v1505 = vand.u32 %v1504, 4294901760
    %v1506 = vsub.f32 %v1504, %v1505
    %v1507 = vand.u32 %v1506, 4294901760
    %1508 = vmatpush1.msra.mxu0 %v1507
    %1509 = vmatprep.subr.mxu0 0.0
    %v1510 = vand.u32 %v258, 4294901760
    %v1511 = vsub.f32 %v258, %v1510
    %v1512 = vand.u32 %v1511, 4294901760
    %v1513 = vsub.f32 %v1511, %v1512
    %v1514 = vand.u32 %v1513, 4294901760
    %1515 = vmatpush1.msra.mxu0 %v1514
    %1516 = vmatprep.subr.mxu0 0.0
    %v1517 = vand.u32 %v259, 4294901760
    %v1518 = vsub.f32 %v259, %v1517
    %v1519 = vand.u32 %v1518, 4294901760
    %v1520 = vsub.f32 %v1518, %v1519
    %v1521 = vand.u32 %v1520, 4294901760
    %1522 = vmatpush1.msra.mxu0 %v1521
    %1523 = vmatprep.subr.mxu0 0.0
    %v1524 = vand.u32 %v260, 4294901760
    %v1525 = vsub.f32 %v260, %v1524
    %v1526 = vand.u32 %v1525, 4294901760
    %v1527 = vsub.f32 %v1525, %v1526
    %v1528 = vand.u32 %v1527, 4294901760
    %1529 = vmatpush1.msra.mxu0 %v1528
    %v1530 = vand.u32 %v192, 4294901760
    %1531 = vmatprep.mubr.f32.mxu0 %v1530
    %v1532 = vand.u32 %v191, 4294901760
    %1533 = vmatmul.mubr.f32.gmra.mrb[0].mxu0 %v1532
    %v1534 = vpop.f32.mrb[0].mxu0
    %v1535 = vadd.f32 %v1303, %v1534
    %v1536 = vpop.f32.mrb[0].mxu0
    %1537 = vdwg.mxu0
    %1538 = vmatprep.subr.mxu0 0.0
    %v1539 = vand.u32 %v229, 4294901760
    %v1540 = vsub.f32 %v229, %v1539
    %1541 = vmatpush1.msra.mxu0 %v1540
    %1542 = vmatprep.subr.mxu0 0.0
    %v1543 = vand.u32 %v230, 4294901760
    %v1544 = vsub.f32 %v230, %v1543
    %1545 = vmatpush1.msra.mxu0 %v1544
    %1546 = vmatprep.subr.mxu0 0.0
    %v1547 = vand.u32 %v231, 4294901760
    %v1548 = vsub.f32 %v231, %v1547
    %1549 = vmatpush1.msra.mxu0 %v1548
    %1550 = vmatprep.subr.mxu0 0.0
    %v1551 = vand.u32 %v232, 4294901760
    %v1552 = vsub.f32 %v232, %v1551
    %1553 = vmatpush1.msra.mxu0 %v1552
    %1554 = vmatprep.subr.mxu0 0.0
    %v1555 = vand.u32 %v233, 4294901760
    %v1556 = vsub.f32 %v233, %v1555
    %1557 = vmatpush1.msra.mxu0 %v1556
    %1558 = vmatprep.subr.mxu0 0.0
    %v1559 = vand.u32 %v234, 4294901760
    %v1560 = vsub.f32 %v234, %v1559
    %1561 = vmatpush1.msra.mxu0 %v1560
    %1562 = vmatprep.subr.mxu0 0.0
    %v1563 = vand.u32 %v235, 4294901760
    %v1564 = vsub.f32 %v235, %v1563
    %1565 = vmatpush1.msra.mxu0 %v1564
    %1566 = vmatprep.subr.mxu0 0.0
    %v1567 = vand.u32 %v236, 4294901760
    %v1568 = vsub.f32 %v236, %v1567
    %1569 = vmatpush1.msra.mxu0 %v1568
    %1570 = vmatprep.subr.mxu0 0.0
    %v1571 = vand.u32 %v237, 4294901760
    %v1572 = vsub.f32 %v237, %v1571
    %1573 = vmatpush1.msra.mxu0 %v1572
    %1574 = vmatprep.subr.mxu0 0.0
    %v1575 = vand.u32 %v238, 4294901760
    %v1576 = vsub.f32 %v238, %v1575
    %1577 = vmatpush1.msra.mxu0 %v1576
    %1578 = vmatprep.subr.mxu0 0.0
    %v1579 = vand.u32 %v239, 4294901760
    %v1580 = vsub.f32 %v239, %v1579
    %1581 = vmatpush1.msra.mxu0 %v1580
    %1582 = vmatprep.subr.mxu0 0.0
    %v1583 = vand.u32 %v240, 4294901760
    %v1584 = vsub.f32 %v240, %v1583
    %1585 = vmatpush1.msra.mxu0 %v1584
    %1586 = vmatprep.subr.mxu0 0.0
    %v1587 = vand.u32 %v241, 4294901760
    %v1588 = vsub.f32 %v241, %v1587
    %1589 = vmatpush1.msra.mxu0 %v1588
    %1590 = vmatprep.subr.mxu0 0.0
    %v1591 = vand.u32 %v242, 4294901760
    %v1592 = vsub.f32 %v242, %v1591
    %1593 = vmatpush1.msra.mxu0 %v1592
    %1594 = vmatprep.subr.mxu0 0.0
    %v1595 = vand.u32 %v243, 4294901760
    %v1596 = vsub.f32 %v243, %v1595
    %1597 = vmatpush1.msra.mxu0 %v1596
    %1598 = vmatprep.subr.mxu0 0.0
    %v1599 = vand.u32 %v244, 4294901760
    %v1600 = vsub.f32 %v244, %v1599
    %1601 = vmatpush1.msra.mxu0 %v1600
    %1602 = vmatprep.subr.mxu0 0.0
    %v1603 = vand.u32 %v245, 4294901760
    %v1604 = vsub.f32 %v245, %v1603
    %1605 = vmatpush1.msra.mxu0 %v1604
    %1606 = vmatprep.subr.mxu0 0.0
    %v1607 = vand.u32 %v246, 4294901760
    %v1608 = vsub.f32 %v246, %v1607
    %1609 = vmatpush1.msra.mxu0 %v1608
    %1610 = vmatprep.subr.mxu0 0.0
    %v1611 = vand.u32 %v247, 4294901760
    %v1612 = vsub.f32 %v247, %v1611
    %1613 = vmatpush1.msra.mxu0 %v1612
    %1614 = vmatprep.subr.mxu0 0.0
    %v1615 = vand.u32 %v248, 4294901760
    %v1616 = vsub.f32 %v248, %v1615
    %1617 = vmatpush1.msra.mxu0 %v1616
    %1618 = vmatprep.subr.mxu0 0.0
    %v1619 = vand.u32 %v249, 4294901760
    %v1620 = vsub.f32 %v249, %v1619
    %1621 = vmatpush1.msra.mxu0 %v1620
    %1622 = vmatprep.subr.mxu0 0.0
    %v1623 = vand.u32 %v250, 4294901760
    %v1624 = vsub.f32 %v250, %v1623
    %1625 = vmatpush1.msra.mxu0 %v1624
    %1626 = vmatprep.subr.mxu0 0.0
    %v1627 = vand.u32 %v251, 4294901760
    %v1628 = vsub.f32 %v251, %v1627
    %1629 = vmatpush1.msra.mxu0 %v1628
    %1630 = vmatprep.subr.mxu0 0.0
    %v1631 = vand.u32 %v252, 4294901760
    %v1632 = vsub.f32 %v252, %v1631
    %1633 = vmatpush1.msra.mxu0 %v1632
    %1634 = vmatprep.subr.mxu0 0.0
    %v1635 = vand.u32 %v253, 4294901760
    %v1636 = vsub.f32 %v253, %v1635
    %1637 = vmatpush1.msra.mxu0 %v1636
    %1638 = vmatprep.subr.mxu0 0.0
    %v1639 = vand.u32 %v254, 4294901760
    %v1640 = vsub.f32 %v254, %v1639
    %1641 = vmatpush1.msra.mxu0 %v1640
    %1642 = vmatprep.subr.mxu0 0.0
    %v1643 = vand.u32 %v255, 4294901760
    %v1644 = vsub.f32 %v255, %v1643
    %1645 = vmatpush1.msra.mxu0 %v1644
    %1646 = vmatprep.subr.mxu0 0.0
    %v1647 = vand.u32 %v256, 4294901760
    %v1648 = vsub.f32 %v256, %v1647
    %1649 = vmatpush1.msra.mxu0 %v1648
    %1650 = vmatprep.subr.mxu0 0.0
    %v1651 = vand.u32 %v257, 4294901760
    %v1652 = vsub.f32 %v257, %v1651
    %1653 = vmatpush1.msra.mxu0 %v1652
    %1654 = vmatprep.subr.mxu0 0.0
    %v1655 = vand.u32 %v258, 4294901760
    %v1656 = vsub.f32 %v258, %v1655
    %1657 = vmatpush1.msra.mxu0 %v1656
    %1658 = vmatprep.subr.mxu0 0.0
    %v1659 = vand.u32 %v259, 4294901760
    %v1660 = vsub.f32 %v259, %v1659
    %1661 = vmatpush1.msra.mxu0 %v1660
    %1662 = vmatprep.subr.mxu0 0.0
    %v1663 = vand.u32 %v260, 4294901760
    %v1664 = vsub.f32 %v260, %v1663
    %1665 = vmatpush1.msra.mxu0 %v1664
    %v1666 = vand.u32 %v192, 4294901760
    %v1667 = vsub.f32 %v192, %v1666
    %1668 = vmatprep.mubr.f32.mxu0 %v1667
    %v1669 = vand.u32 %v191, 4294901760
    %v1670 = vsub.f32 %v191, %v1669
    %1671 = vmatmul.mubr.f32.gmra.mrb[0].mxu0 %v1670
    %v1672 = vpop.f32.mrb[0].mxu0
    %v1673 = vadd.f32 %v1535, %v1672
    %v1674 = vpop.f32.mrb[0].mxu0
    %1675 = vdwg.mxu0
    %1676 = vmatprep.subr.mxu0 0.0
    %v1677 = vand.u32 %v229, 4294901760
    %1678 = vmatpush1.msra.mxu0 %v1677
    %1679 = vmatprep.subr.mxu0 0.0
    %v1680 = vand.u32 %v230, 4294901760
    %1681 = vmatpush1.msra.mxu0 %v1680
    %1682 = vmatprep.subr.mxu0 0.0
    %v1683 = vand.u32 %v231, 4294901760
    %1684 = vmatpush1.msra.mxu0 %v1683
    %1685 = vmatprep.subr.mxu0 0.0
    %v1686 = vand.u32 %v232, 4294901760
    %1687 = vmatpush1.msra.mxu0 %v1686
    %1688 = vmatprep.subr.mxu0 0.0
    %v1689 = vand.u32 %v233, 4294901760
    %1690 = vmatpush1.msra.mxu0 %v1689
    %1691 = vmatprep.subr.mxu0 0.0
    %v1692 = vand.u32 %v234, 4294901760
    %1693 = vmatpush1.msra.mxu0 %v1692
    %1694 = vmatprep.subr.mxu0 0.0
    %v1695 = vand.u32 %v235, 4294901760
    %1696 = vmatpush1.msra.mxu0 %v1695
    %1697 = vmatprep.subr.mxu0 0.0
    %v1698 = vand.u32 %v236, 4294901760
    %1699 = vmatpush1.msra.mxu0 %v1698
    %1700 = vmatprep.subr.mxu0 0.0
    %v1701 = vand.u32 %v237, 4294901760
    %1702 = vmatpush1.msra.mxu0 %v1701
    %1703 = vmatprep.subr.mxu0 0.0
    %v1704 = vand.u32 %v238, 4294901760
    %1705 = vmatpush1.msra.mxu0 %v1704
    %1706 = vmatprep.subr.mxu0 0.0
    %v1707 = vand.u32 %v239, 4294901760
    %1708 = vmatpush1.msra.mxu0 %v1707
    %1709 = vmatprep.subr.mxu0 0.0
    %v1710 = vand.u32 %v240, 4294901760
    %1711 = vmatpush1.msra.mxu0 %v1710
    %1712 = vmatprep.subr.mxu0 0.0
    %v1713 = vand.u32 %v241, 4294901760
    %1714 = vmatpush1.msra.mxu0 %v1713
    %1715 = vmatprep.subr.mxu0 0.0
    %v1716 = vand.u32 %v242, 4294901760
    %1717 = vmatpush1.msra.mxu0 %v1716
    %1718 = vmatprep.subr.mxu0 0.0
    %v1719 = vand.u32 %v243, 4294901760
    %1720 = vmatpush1.msra.mxu0 %v1719
    %1721 = vmatprep.subr.mxu0 0.0
    %v1722 = vand.u32 %v244, 4294901760
    %1723 = vmatpush1.msra.mxu0 %v1722
    %1724 = vmatprep.subr.mxu0 0.0
    %v1725 = vand.u32 %v245, 4294901760
    %1726 = vmatpush1.msra.mxu0 %v1725
    %1727 = vmatprep.subr.mxu0 0.0
    %v1728 = vand.u32 %v246, 4294901760
    %1729 = vmatpush1.msra.mxu0 %v1728
    %1730 = vmatprep.subr.mxu0 0.0
    %v1731 = vand.u32 %v247, 4294901760
    %1732 = vmatpush1.msra.mxu0 %v1731
    %1733 = vmatprep.subr.mxu0 0.0
    %v1734 = vand.u32 %v248, 4294901760
    %1735 = vmatpush1.msra.mxu0 %v1734
    %1736 = vmatprep.subr.mxu0 0.0
    %v1737 = vand.u32 %v249, 4294901760
    %1738 = vmatpush1.msra.mxu0 %v1737
    %1739 = vmatprep.subr.mxu0 0.0
    %v1740 = vand.u32 %v250, 4294901760
    %1741 = vmatpush1.msra.mxu0 %v1740
    %1742 = vmatprep.subr.mxu0 0.0
    %v1743 = vand.u32 %v251, 4294901760
    %1744 = vmatpush1.msra.mxu0 %v1743
    %1745 = vmatprep.subr.mxu0 0.0
    %v1746 = vand.u32 %v252, 4294901760
    %1747 = vmatpush1.msra.mxu0 %v1746
    %1748 = vmatprep.subr.mxu0 0.0
    %v1749 = vand.u32 %v253, 4294901760
    %1750 = vmatpush1.msra.mxu0 %v1749
    %1751 = vmatprep.subr.mxu0 0.0
    %v1752 = vand.u32 %v254, 4294901760
    %1753 = vmatpush1.msra.mxu0 %v1752
    %1754 = vmatprep.subr.mxu0 0.0
    %v1755 = vand.u32 %v255, 4294901760
    %1756 = vmatpush1.msra.mxu0 %v1755
    %1757 = vmatprep.subr.mxu0 0.0
    %v1758 = vand.u32 %v256, 4294901760
    %1759 = vmatpush1.msra.mxu0 %v1758
    %1760 = vmatprep.subr.mxu0 0.0
    %v1761 = vand.u32 %v257, 4294901760
    %1762 = vmatpush1.msra.mxu0 %v1761
    %1763 = vmatprep.subr.mxu0 0.0
    %v1764 = vand.u32 %v258, 4294901760
    %1765 = vmatpush1.msra.mxu0 %v1764
    %1766 = vmatprep.subr.mxu0 0.0
    %v1767 = vand.u32 %v259, 4294901760
    %1768 = vmatpush1.msra.mxu0 %v1767
    %1769 = vmatprep.subr.mxu0 0.0
    %v1770 = vand.u32 %v260, 4294901760
    %1771 = vmatpush1.msra.mxu0 %v1770
    %v1772 = vand.u32 %v192, 4294901760
    %v1773 = vsub.f32 %v192, %v1772
    %v1774 = vand.u32 %v1773, 4294901760
    %1775 = vmatprep.mubr.f32.mxu0 %v1774
    %v1776 = vand.u32 %v191, 4294901760
    %v1777 = vsub.f32 %v191, %v1776
    %v1778 = vand.u32 %v1777, 4294901760
    %1779 = vmatmul.mubr.f32.gmra.mrb[0].mxu0 %v1778
    %v1780 = vpop.f32.mrb[0].mxu0
    %v1781 = vadd.f32 %v1673, %v1780
    %v1782 = vpop.f32.mrb[0].mxu0
    %1783 = vdwg.mxu0
    %1784 = vmatprep.subr.mxu0 0.0
    %v1785 = vand.u32 %v229, 4294901760
    %v1786 = vsub.f32 %v229, %v1785
    %v1787 = vand.u32 %v1786, 4294901760
    %1788 = vmatpush1.msra.mxu0 %v1787
    %1789 = vmatprep.subr.mxu0 0.0
    %v1790 = vand.u32 %v230, 4294901760
    %v1791 = vsub.f32 %v230, %v1790
    %v1792 = vand.u32 %v1791, 4294901760
    %1793 = vmatpush1.msra.mxu0 %v1792
    %1794 = vmatprep.subr.mxu0 0.0
    %v1795 = vand.u32 %v231, 4294901760
    %v1796 = vsub.f32 %v231, %v1795
    %v1797 = vand.u32 %v1796, 4294901760
    %1798 = vmatpush1.msra.mxu0 %v1797
    %1799 = vmatprep.subr.mxu0 0.0
    %v1800 = vand.u32 %v232, 4294901760
    %v1801 = vsub.f32 %v232, %v1800
    %v1802 = vand.u32 %v1801, 4294901760
    %1803 = vmatpush1.msra.mxu0 %v1802
    %1804 = vmatprep.subr.mxu0 0.0
    %v1805 = vand.u32 %v233, 4294901760
    %v1806 = vsub.f32 %v233, %v1805
    %v1807 = vand.u32 %v1806, 4294901760
    %1808 = vmatpush1.msra.mxu0 %v1807
    %1809 = vmatprep.subr.mxu0 0.0
    %v1810 = vand.u32 %v234, 4294901760
    %v1811 = vsub.f32 %v234, %v1810
    %v1812 = vand.u32 %v1811, 4294901760
    %1813 = vmatpush1.msra.mxu0 %v1812
    %1814 = vmatprep.subr.mxu0 0.0
    %v1815 = vand.u32 %v235, 4294901760
    %v1816 = vsub.f32 %v235, %v1815
    %v1817 = vand.u32 %v1816, 4294901760
    %1818 = vmatpush1.msra.mxu0 %v1817
    %1819 = vmatprep.subr.mxu0 0.0
    %v1820 = vand.u32 %v236, 4294901760
    %v1821 = vsub.f32 %v236, %v1820
    %v1822 = vand.u32 %v1821, 4294901760
    %1823 = vmatpush1.msra.mxu0 %v1822
    %1824 = vmatprep.subr.mxu0 0.0
    %v1825 = vand.u32 %v237, 4294901760
    %v1826 = vsub.f32 %v237, %v1825
    %v1827 = vand.u32 %v1826, 4294901760
    %1828 = vmatpush1.msra.mxu0 %v1827
    %1829 = vmatprep.subr.mxu0 0.0
    %v1830 = vand.u32 %v238, 4294901760
    %v1831 = vsub.f32 %v238, %v1830
    %v1832 = vand.u32 %v1831, 4294901760
    %1833 = vmatpush1.msra.mxu0 %v1832
    %1834 = vmatprep.subr.mxu0 0.0
    %v1835 = vand.u32 %v239, 4294901760
    %v1836 = vsub.f32 %v239, %v1835
    %v1837 = vand.u32 %v1836, 4294901760
    %1838 = vmatpush1.msra.mxu0 %v1837
    %1839 = vmatprep.subr.mxu0 0.0
    %v1840 = vand.u32 %v240, 4294901760
    %v1841 = vsub.f32 %v240, %v1840
    %v1842 = vand.u32 %v1841, 4294901760
    %1843 = vmatpush1.msra.mxu0 %v1842
    %1844 = vmatprep.subr.mxu0 0.0
    %v1845 = vand.u32 %v241, 4294901760
    %v1846 = vsub.f32 %v241, %v1845
    %v1847 = vand.u32 %v1846, 4294901760
    %1848 = vmatpush1.msra.mxu0 %v1847
    %1849 = vmatprep.subr.mxu0 0.0
    %v1850 = vand.u32 %v242, 4294901760
    %v1851 = vsub.f32 %v242, %v1850
    %v1852 = vand.u32 %v1851, 4294901760
    %1853 = vmatpush1.msra.mxu0 %v1852
    %1854 = vmatprep.subr.mxu0 0.0
    %v1855 = vand.u32 %v243, 4294901760
    %v1856 = vsub.f32 %v243, %v1855
    %v1857 = vand.u32 %v1856, 4294901760
    %1858 = vmatpush1.msra.mxu0 %v1857
    %1859 = vmatprep.subr.mxu0 0.0
    %v1860 = vand.u32 %v244, 4294901760
    %v1861 = vsub.f32 %v244, %v1860
    %v1862 = vand.u32 %v1861, 4294901760
    %1863 = vmatpush1.msra.mxu0 %v1862
    %1864 = vmatprep.subr.mxu0 0.0
    %v1865 = vand.u32 %v245, 4294901760
    %v1866 = vsub.f32 %v245, %v1865
    %v1867 = vand.u32 %v1866, 4294901760
    %1868 = vmatpush1.msra.mxu0 %v1867
    %1869 = vmatprep.subr.mxu0 0.0
    %v1870 = vand.u32 %v246, 4294901760
    %v1871 = vsub.f32 %v246, %v1870
    %v1872 = vand.u32 %v1871, 4294901760
    %1873 = vmatpush1.msra.mxu0 %v1872
    %1874 = vmatprep.subr.mxu0 0.0
    %v1875 = vand.u32 %v247, 4294901760
    %v1876 = vsub.f32 %v247, %v1875
    %v1877 = vand.u32 %v1876, 4294901760
    %1878 = vmatpush1.msra.mxu0 %v1877
    %1879 = vmatprep.subr.mxu0 0.0
    %v1880 = vand.u32 %v248, 4294901760
    %v1881 = vsub.f32 %v248, %v1880
    %v1882 = vand.u32 %v1881, 4294901760
    %1883 = vmatpush1.msra.mxu0 %v1882
    %1884 = vmatprep.subr.mxu0 0.0
    %v1885 = vand.u32 %v249, 4294901760
    %v1886 = vsub.f32 %v249, %v1885
    %v1887 = vand.u32 %v1886, 4294901760
    %1888 = vmatpush1.msra.mxu0 %v1887
    %1889 = vmatprep.subr.mxu0 0.0
    %v1890 = vand.u32 %v250, 4294901760
    %v1891 = vsub.f32 %v250, %v1890
    %v1892 = vand.u32 %v1891, 4294901760
    %1893 = vmatpush1.msra.mxu0 %v1892
    %1894 = vmatprep.subr.mxu0 0.0
    %v1895 = vand.u32 %v251, 4294901760
    %v1896 = vsub.f32 %v251, %v1895
    %v1897 = vand.u32 %v1896, 4294901760
    %1898 = vmatpush1.msra.mxu0 %v1897
    %1899 = vmatprep.subr.mxu0 0.0
    %v1900 = vand.u32 %v252, 4294901760
    %v1901 = vsub.f32 %v252, %v1900
    %v1902 = vand.u32 %v1901, 4294901760
    %1903 = vmatpush1.msra.mxu0 %v1902
    %1904 = vmatprep.subr.mxu0 0.0
    %v1905 = vand.u32 %v253, 4294901760
    %v1906 = vsub.f32 %v253, %v1905
    %v1907 = vand.u32 %v1906, 4294901760
    %1908 = vmatpush1.msra.mxu0 %v1907
    %1909 = vmatprep.subr.mxu0 0.0
    %v1910 = vand.u32 %v254, 4294901760
    %v1911 = vsub.f32 %v254, %v1910
    %v1912 = vand.u32 %v1911, 4294901760
    %1913 = vmatpush1.msra.mxu0 %v1912
    %1914 = vmatprep.subr.mxu0 0.0
    %v1915 = vand.u32 %v255, 4294901760
    %v1916 = vsub.f32 %v255, %v1915
    %v1917 = vand.u32 %v1916, 4294901760
    %1918 = vmatpush1.msra.mxu0 %v1917
    %1919 = vmatprep.subr.mxu0 0.0
    %v1920 = vand.u32 %v256, 4294901760
    %v1921 = vsub.f32 %v256, %v1920
    %v1922 = vand.u32 %v1921, 4294901760
    %1923 = vmatpush1.msra.mxu0 %v1922
    %1924 = vmatprep.subr.mxu0 0.0
    %v1925 = vand.u32 %v257, 4294901760
    %v1926 = vsub.f32 %v257, %v1925
    %v1927 = vand.u32 %v1926, 4294901760
    %1928 = vmatpush1.msra.mxu0 %v1927
    %1929 = vmatprep.subr.mxu0 0.0
    %v1930 = vand.u32 %v258, 4294901760
    %v1931 = vsub.f32 %v258, %v1930
    %v1932 = vand.u32 %v1931, 4294901760
    %1933 = vmatpush1.msra.mxu0 %v1932
    %1934 = vmatprep.subr.mxu0 0.0
    %v1935 = vand.u32 %v259, 4294901760
    %v1936 = vsub.f32 %v259, %v1935
    %v1937 = vand.u32 %v1936, 4294901760
    %1938 = vmatpush1.msra.mxu0 %v1937
    %1939 = vmatprep.subr.mxu0 0.0
    %v1940 = vand.u32 %v260, 4294901760
    %v1941 = vsub.f32 %v260, %v1940
    %v1942 = vand.u32 %v1941, 4294901760
    %1943 = vmatpush1.msra.mxu0 %v1942
    %v1944 = vand.u32 %v192, 4294901760
    %1945 = vmatprep.mubr.f32.mxu0 %v1944
    %v1946 = vand.u32 %v191, 4294901760
    %1947 = vmatmul.mubr.f32.gmra.mrb[0].mxu0 %v1946
    %v1948 = vpop.f32.mrb[0].mxu0
    %v1949 = vadd.f32 %v1781, %v1948
    %v1950 = vpop.f32.mrb[0].mxu0
    %1951 = vdwg.mxu0
    %1952 = vmatprep.subr.mxu0 0.0
    %v1953 = vand.u32 %v229, 4294901760
    %1954 = vmatpush1.msra.mxu0 %v1953
    %1955 = vmatprep.subr.mxu0 0.0
    %v1956 = vand.u32 %v230, 4294901760
    %1957 = vmatpush1.msra.mxu0 %v1956
    %1958 = vmatprep.subr.mxu0 0.0
    %v1959 = vand.u32 %v231, 4294901760
    %1960 = vmatpush1.msra.mxu0 %v1959
    %1961 = vmatprep.subr.mxu0 0.0
    %v1962 = vand.u32 %v232, 4294901760
    %1963 = vmatpush1.msra.mxu0 %v1962
    %1964 = vmatprep.subr.mxu0 0.0
    %v1965 = vand.u32 %v233, 4294901760
    %1966 = vmatpush1.msra.mxu0 %v1965
    %1967 = vmatprep.subr.mxu0 0.0
    %v1968 = vand.u32 %v234, 4294901760
    %1969 = vmatpush1.msra.mxu0 %v1968
    %1970 = vmatprep.subr.mxu0 0.0
    %v1971 = vand.u32 %v235, 4294901760
    %1972 = vmatpush1.msra.mxu0 %v1971
    %1973 = vmatprep.subr.mxu0 0.0
    %v1974 = vand.u32 %v236, 4294901760
    %1975 = vmatpush1.msra.mxu0 %v1974
    %1976 = vmatprep.subr.mxu0 0.0
    %v1977 = vand.u32 %v237, 4294901760
    %1978 = vmatpush1.msra.mxu0 %v1977
    %1979 = vmatprep.subr.mxu0 0.0
    %v1980 = vand.u32 %v238, 4294901760
    %1981 = vmatpush1.msra.mxu0 %v1980
    %1982 = vmatprep.subr.mxu0 0.0
    %v1983 = vand.u32 %v239, 4294901760
    %1984 = vmatpush1.msra.mxu0 %v1983
    %1985 = vmatprep.subr.mxu0 0.0
    %v1986 = vand.u32 %v240, 4294901760
    %1987 = vmatpush1.msra.mxu0 %v1986
    %1988 = vmatprep.subr.mxu0 0.0
    %v1989 = vand.u32 %v241, 4294901760
    %1990 = vmatpush1.msra.mxu0 %v1989
    %1991 = vmatprep.subr.mxu0 0.0
    %v1992 = vand.u32 %v242, 4294901760
    %1993 = vmatpush1.msra.mxu0 %v1992
    %1994 = vmatprep.subr.mxu0 0.0
    %v1995 = vand.u32 %v243, 4294901760
    %1996 = vmatpush1.msra.mxu0 %v1995
    %1997 = vmatprep.subr.mxu0 0.0
    %v1998 = vand.u32 %v244, 4294901760
    %1999 = vmatpush1.msra.mxu0 %v1998
    %2000 = vmatprep.subr.mxu0 0.0
    %v2001 = vand.u32 %v245, 4294901760
    %2002 = vmatpush1.msra.mxu0 %v2001
    %2003 = vmatprep.subr.mxu0 0.0
    %v2004 = vand.u32 %v246, 4294901760
    %2005 = vmatpush1.msra.mxu0 %v2004
    %2006 = vmatprep.subr.mxu0 0.0
    %v2007 = vand.u32 %v247, 4294901760
    %2008 = vmatpush1.msra.mxu0 %v2007
    %2009 = vmatprep.subr.mxu0 0.0
    %v2010 = vand.u32 %v248, 4294901760
    %2011 = vmatpush1.msra.mxu0 %v2010
    %2012 = vmatprep.subr.mxu0 0.0
    %v2013 = vand.u32 %v249, 4294901760
    %2014 = vmatpush1.msra.mxu0 %v2013
    %2015 = vmatprep.subr.mxu0 0.0
    %v2016 = vand.u32 %v250, 4294901760
    %2017 = vmatpush1.msra.mxu0 %v2016
    %2018 = vmatprep.subr.mxu0 0.0
    %v2019 = vand.u32 %v251, 4294901760
    %2020 = vmatpush1.msra.mxu0 %v2019
    %2021 = vmatprep.subr.mxu0 0.0
    %v2022 = vand.u32 %v252, 4294901760
    %2023 = vmatpush1.msra.mxu0 %v2022
    %2024 = vmatprep.subr.mxu0 0.0
    %v2025 = vand.u32 %v253, 4294901760
    %2026 = vmatpush1.msra.mxu0 %v2025
    %2027 = vmatprep.subr.mxu0 0.0
    %v2028 = vand.u32 %v254, 4294901760
    %2029 = vmatpush1.msra.mxu0 %v2028
    %2030 = vmatprep.subr.mxu0 0.0
    %v2031 = vand.u32 %v255, 4294901760
    %2032 = vmatpush1.msra.mxu0 %v2031
    %2033 = vmatprep.subr.mxu0 0.0
    %v2034 = vand.u32 %v256, 4294901760
    %2035 = vmatpush1.msra.mxu0 %v2034
    %2036 = vmatprep.subr.mxu0 0.0
    %v2037 = vand.u32 %v257, 4294901760
    %2038 = vmatpush1.msra.mxu0 %v2037
    %2039 = vmatprep.subr.mxu0 0.0
    %v2040 = vand.u32 %v258, 4294901760
    %2041 = vmatpush1.msra.mxu0 %v2040
    %2042 = vmatprep.subr.mxu0 0.0
    %v2043 = vand.u32 %v259, 4294901760
    %2044 = vmatpush1.msra.mxu0 %v2043
    %2045 = vmatprep.subr.mxu0 0.0
    %v2046 = vand.u32 %v260, 4294901760
    %2047 = vmatpush1.msra.mxu0 %v2046
    %v2048 = vand.u32 %v192, 4294901760
    %2049 = vmatprep.mubr.f32.mxu0 %v2048
    %v2050 = vand.u32 %v191, 4294901760
    %2051 = vmatmul.mubr.f32.gmra.mrb[0].mxu0 %v2050
    %v2052 = vpop.f32.mrb[0].mxu0
    %v2053 = vadd.f32 %v1949, %v2052
    %v2054 = vpop.f32.mrb[0].mxu0
    %2055 = vdwg.mxu0
    %2056 = vmatprep.subr.mxu0 0.0
    %v2057 = vand.u32 %v261, 4294901760
    %2058 = vmatpush1.msra.mxu0 %v2057
    %2059 = vmatprep.subr.mxu0 0.0
    %v2060 = vand.u32 %v262, 4294901760
    %2061 = vmatpush1.msra.mxu0 %v2060
    %2062 = vmatprep.subr.mxu0 0.0
    %v2063 = vand.u32 %v263, 4294901760
    %2064 = vmatpush1.msra.mxu0 %v2063
    %2065 = vmatprep.subr.mxu0 0.0
    %v2066 = vand.u32 %v264, 4294901760
    %2067 = vmatpush1.msra.mxu0 %v2066
    %2068 = vmatprep.subr.mxu0 0.0
    %v2069 = vand.u32 %v265, 4294901760
    %2070 = vmatpush1.msra.mxu0 %v2069
    %2071 = vmatprep.subr.mxu0 0.0
    %v2072 = vand.u32 %v266, 4294901760
    %2073 = vmatpush1.msra.mxu0 %v2072
    %2074 = vmatprep.subr.mxu0 0.0
    %v2075 = vand.u32 %v267, 4294901760
    %2076 = vmatpush1.msra.mxu0 %v2075
    %2077 = vmatprep.subr.mxu0 0.0
    %v2078 = vand.u32 %v268, 4294901760
    %2079 = vmatpush1.msra.mxu0 %v2078
    %2080 = vmatprep.subr.mxu0 0.0
    %v2081 = vand.u32 %v269, 4294901760
    %2082 = vmatpush1.msra.mxu0 %v2081
    %2083 = vmatprep.subr.mxu0 0.0
    %v2084 = vand.u32 %v270, 4294901760
    %2085 = vmatpush1.msra.mxu0 %v2084
    %2086 = vmatprep.subr.mxu0 0.0
    %v2087 = vand.u32 %v271, 4294901760
    %2088 = vmatpush1.msra.mxu0 %v2087
    %2089 = vmatprep.subr.mxu0 0.0
    %v2090 = vand.u32 %v272, 4294901760
    %2091 = vmatpush1.msra.mxu0 %v2090
    %2092 = vmatprep.subr.mxu0 0.0
    %v2093 = vand.u32 %v273, 4294901760
    %2094 = vmatpush1.msra.mxu0 %v2093
    %2095 = vmatprep.subr.mxu0 0.0
    %v2096 = vand.u32 %v274, 4294901760
    %2097 = vmatpush1.msra.mxu0 %v2096
    %2098 = vmatprep.subr.mxu0 0.0
    %v2099 = vand.u32 %v275, 4294901760
    %2100 = vmatpush1.msra.mxu0 %v2099
    %2101 = vmatprep.subr.mxu0 0.0
    %v2102 = vand.u32 %v276, 4294901760
    %2103 = vmatpush1.msra.mxu0 %v2102
    %2104 = vmatprep.subr.mxu0 0.0
    %v2105 = vand.u32 %v277, 4294901760
    %2106 = vmatpush1.msra.mxu0 %v2105
    %2107 = vmatprep.subr.mxu0 0.0
    %v2108 = vand.u32 %v278, 4294901760
    %2109 = vmatpush1.msra.mxu0 %v2108
    %2110 = vmatprep.subr.mxu0 0.0
    %v2111 = vand.u32 %v279, 4294901760
    %2112 = vmatpush1.msra.mxu0 %v2111
    %2113 = vmatprep.subr.mxu0 0.0
    %v2114 = vand.u32 %v280, 4294901760
    %2115 = vmatpush1.msra.mxu0 %v2114
    %2116 = vmatprep.subr.mxu0 0.0
    %v2117 = vand.u32 %v281, 4294901760
    %2118 = vmatpush1.msra.mxu0 %v2117
    %2119 = vmatprep.subr.mxu0 0.0
    %v2120 = vand.u32 %v282, 4294901760
    %2121 = vmatpush1.msra.mxu0 %v2120
    %2122 = vmatprep.subr.mxu0 0.0
    %v2123 = vand.u32 %v283, 4294901760
    %2124 = vmatpush1.msra.mxu0 %v2123
    %2125 = vmatprep.subr.mxu0 0.0
    %v2126 = vand.u32 %v284, 4294901760
    %2127 = vmatpush1.msra.mxu0 %v2126
    %2128 = vmatprep.subr.mxu0 0.0
    %v2129 = vand.u32 %v285, 4294901760
    %2130 = vmatpush1.msra.mxu0 %v2129
    %2131 = vmatprep.subr.mxu0 0.0
    %v2132 = vand.u32 %v286, 4294901760
    %2133 = vmatpush1.msra.mxu0 %v2132
    %2134 = vmatprep.subr.mxu0 0.0
    %v2135 = vand.u32 %v287, 4294901760
    %2136 = vmatpush1.msra.mxu0 %v2135
    %2137 = vmatprep.subr.mxu0 0.0
    %v2138 = vand.u32 %v288, 4294901760
    %2139 = vmatpush1.msra.mxu0 %v2138
    %2140 = vmatprep.subr.mxu0 0.0
    %v2141 = vand.u32 %v289, 4294901760
    %2142 = vmatpush1.msra.mxu0 %v2141
    %2143 = vmatprep.subr.mxu0 0.0
    %v2144 = vand.u32 %v290, 4294901760
    %2145 = vmatpush1.msra.mxu0 %v2144
    %2146 = vmatprep.subr.mxu0 0.0
    %v2147 = vand.u32 %v291, 4294901760
    %2148 = vmatpush1.msra.mxu0 %v2147
    %2149 = vmatprep.subr.mxu0 0.0
    %v2150 = vand.u32 %v292, 4294901760
    %2151 = vmatpush1.msra.mxu0 %v2150
    %v2152 = vand.u32 %v194, 4294901760
    %v2153 = vsub.f32 %v194, %v2152
    %v2154 = vand.u32 %v2153, 4294901760
    %v2155 = vsub.f32 %v2153, %v2154
    %v2156 = vand.u32 %v2155, 4294901760
    %2157 = vmatprep.mubr.f32.mxu0 %v2156
    %v2158 = vand.u32 %v193, 4294901760
    %v2159 = vsub.f32 %v193, %v2158
    %v2160 = vand.u32 %v2159, 4294901760
    %v2161 = vsub.f32 %v2159, %v2160
    %v2162 = vand.u32 %v2161, 4294901760
    %2163 = vmatmul.mubr.f32.gmra.mrb[0].mxu0 %v2162
    %v2164 = vpop.f32.mrb[0].mxu0
    %v2165 = vadd.f32 %v2053, %v2164
    %v2166 = vpop.f32.mrb[0].mxu0
    %2167 = vdwg.mxu0
    %2168 = vmatprep.subr.mxu0 0.0
    %v2169 = vand.u32 %v261, 4294901760
    %v2170 = vsub.f32 %v261, %v2169
    %v2171 = vand.u32 %v2170, 4294901760
    %v2172 = vsub.f32 %v2170, %v2171
    %v2173 = vand.u32 %v2172, 4294901760
    %2174 = vmatpush1.msra.mxu0 %v2173
    %2175 = vmatprep.subr.mxu0 0.0
    %v2176 = vand.u32 %v262, 4294901760
    %v2177 = vsub.f32 %v262, %v2176
    %v2178 = vand.u32 %v2177, 4294901760
    %v2179 = vsub.f32 %v2177, %v2178
    %v2180 = vand.u32 %v2179, 4294901760
    %2181 = vmatpush1.msra.mxu0 %v2180
    %2182 = vmatprep.subr.mxu0 0.0
    %v2183 = vand.u32 %v263, 4294901760
    %v2184 = vsub.f32 %v263, %v2183
    %v2185 = vand.u32 %v2184, 4294901760
    %v2186 = vsub.f32 %v2184, %v2185
    %v2187 = vand.u32 %v2186, 4294901760
    %2188 = vmatpush1.msra.mxu0 %v2187
    %2189 = vmatprep.subr.mxu0 0.0
    %v2190 = vand.u32 %v264, 4294901760
    %v2191 = vsub.f32 %v264, %v2190
    %v2192 = vand.u32 %v2191, 4294901760
    %v2193 = vsub.f32 %v2191, %v2192
    %v2194 = vand.u32 %v2193, 4294901760
    %2195 = vmatpush1.msra.mxu0 %v2194
    %2196 = vmatprep.subr.mxu0 0.0
    %v2197 = vand.u32 %v265, 4294901760
    %v2198 = vsub.f32 %v265, %v2197
    %v2199 = vand.u32 %v2198, 4294901760
    %v2200 = vsub.f32 %v2198, %v2199
    %v2201 = vand.u32 %v2200, 4294901760
    %2202 = vmatpush1.msra.mxu0 %v2201
    %2203 = vmatprep.subr.mxu0 0.0
    %v2204 = vand.u32 %v266, 4294901760
    %v2205 = vsub.f32 %v266, %v2204
    %v2206 = vand.u32 %v2205, 4294901760
    %v2207 = vsub.f32 %v2205, %v2206
    %v2208 = vand.u32 %v2207, 4294901760
    %2209 = vmatpush1.msra.mxu0 %v2208
    %2210 = vmatprep.subr.mxu0 0.0
    %v2211 = vand.u32 %v267, 4294901760
    %v2212 = vsub.f32 %v267, %v2211
    %v2213 = vand.u32 %v2212, 4294901760
    %v2214 = vsub.f32 %v2212, %v2213
    %v2215 = vand.u32 %v2214, 4294901760
    %2216 = vmatpush1.msra.mxu0 %v2215
    %2217 = vmatprep.subr.mxu0 0.0
    %v2218 = vand.u32 %v268, 4294901760
    %v2219 = vsub.f32 %v268, %v2218
    %v2220 = vand.u32 %v2219, 4294901760
    %v2221 = vsub.f32 %v2219, %v2220
    %v2222 = vand.u32 %v2221, 4294901760
    %2223 = vmatpush1.msra.mxu0 %v2222
    %2224 = vmatprep.subr.mxu0 0.0
    %v2225 = vand.u32 %v269, 4294901760
    %v2226 = vsub.f32 %v269, %v2225
    %v2227 = vand.u32 %v2226, 4294901760
    %v2228 = vsub.f32 %v2226, %v2227
    %v2229 = vand.u32 %v2228, 4294901760
    %2230 = vmatpush1.msra.mxu0 %v2229
    %2231 = vmatprep.subr.mxu0 0.0
    %v2232 = vand.u32 %v270, 4294901760
    %v2233 = vsub.f32 %v270, %v2232
    %v2234 = vand.u32 %v2233, 4294901760
    %v2235 = vsub.f32 %v2233, %v2234
    %v2236 = vand.u32 %v2235, 4294901760
    %2237 = vmatpush1.msra.mxu0 %v2236
    %2238 = vmatprep.subr.mxu0 0.0
    %v2239 = vand.u32 %v271, 4294901760
    %v2240 = vsub.f32 %v271, %v2239
    %v2241 = vand.u32 %v2240, 4294901760
    %v2242 = vsub.f32 %v2240, %v2241
    %v2243 = vand.u32 %v2242, 4294901760
    %2244 = vmatpush1.msra.mxu0 %v2243
    %2245 = vmatprep.subr.mxu0 0.0
    %v2246 = vand.u32 %v272, 4294901760
    %v2247 = vsub.f32 %v272, %v2246
    %v2248 = vand.u32 %v2247, 4294901760
    %v2249 = vsub.f32 %v2247, %v2248
    %v2250 = vand.u32 %v2249, 4294901760
    %2251 = vmatpush1.msra.mxu0 %v2250
    %2252 = vmatprep.subr.mxu0 0.0
    %v2253 = vand.u32 %v273, 4294901760
    %v2254 = vsub.f32 %v273, %v2253
    %v2255 = vand.u32 %v2254, 4294901760
    %v2256 = vsub.f32 %v2254, %v2255
    %v2257 = vand.u32 %v2256, 4294901760
    %2258 = vmatpush1.msra.mxu0 %v2257
    %2259 = vmatprep.subr.mxu0 0.0
    %v2260 = vand.u32 %v274, 4294901760
    %v2261 = vsub.f32 %v274, %v2260
    %v2262 = vand.u32 %v2261, 4294901760
    %v2263 = vsub.f32 %v2261, %v2262
    %v2264 = vand.u32 %v2263, 4294901760
    %2265 = vmatpush1.msra.mxu0 %v2264
    %2266 = vmatprep.subr.mxu0 0.0
    %v2267 = vand.u32 %v275, 4294901760
    %v2268 = vsub.f32 %v275, %v2267
    %v2269 = vand.u32 %v2268, 4294901760
    %v2270 = vsub.f32 %v2268, %v2269
    %v2271 = vand.u32 %v2270, 4294901760
    %2272 = vmatpush1.msra.mxu0 %v2271
    %2273 = vmatprep.subr.mxu0 0.0
    %v2274 = vand.u32 %v276, 4294901760
    %v2275 = vsub.f32 %v276, %v2274
    %v2276 = vand.u32 %v2275, 4294901760
    %v2277 = vsub.f32 %v2275, %v2276
    %v2278 = vand.u32 %v2277, 4294901760
    %2279 = vmatpush1.msra.mxu0 %v2278
    %2280 = vmatprep.subr.mxu0 0.0
    %v2281 = vand.u32 %v277, 4294901760
    %v2282 = vsub.f32 %v277, %v2281
    %v2283 = vand.u32 %v2282, 4294901760
    %v2284 = vsub.f32 %v2282, %v2283
    %v2285 = vand.u32 %v2284, 4294901760
    %2286 = vmatpush1.msra.mxu0 %v2285
    %2287 = vmatprep.subr.mxu0 0.0
    %v2288 = vand.u32 %v278, 4294901760
    %v2289 = vsub.f32 %v278, %v2288
    %v2290 = vand.u32 %v2289, 4294901760
    %v2291 = vsub.f32 %v2289, %v2290
    %v2292 = vand.u32 %v2291, 4294901760
    %2293 = vmatpush1.msra.mxu0 %v2292
    %2294 = vmatprep.subr.mxu0 0.0
    %v2295 = vand.u32 %v279, 4294901760
    %v2296 = vsub.f32 %v279, %v2295
    %v2297 = vand.u32 %v2296, 4294901760
    %v2298 = vsub.f32 %v2296, %v2297
    %v2299 = vand.u32 %v2298, 4294901760
    %2300 = vmatpush1.msra.mxu0 %v2299
    %2301 = vmatprep.subr.mxu0 0.0
    %v2302 = vand.u32 %v280, 4294901760
    %v2303 = vsub.f32 %v280, %v2302
    %v2304 = vand.u32 %v2303, 4294901760
    %v2305 = vsub.f32 %v2303, %v2304
    %v2306 = vand.u32 %v2305, 4294901760
    %2307 = vmatpush1.msra.mxu0 %v2306
    %2308 = vmatprep.subr.mxu0 0.0
    %v2309 = vand.u32 %v281, 4294901760
    %v2310 = vsub.f32 %v281, %v2309
    %v2311 = vand.u32 %v2310, 4294901760
    %v2312 = vsub.f32 %v2310, %v2311
    %v2313 = vand.u32 %v2312, 4294901760
    %2314 = vmatpush1.msra.mxu0 %v2313
    %2315 = vmatprep.subr.mxu0 0.0
    %v2316 = vand.u32 %v282, 4294901760
    %v2317 = vsub.f32 %v282, %v2316
    %v2318 = vand.u32 %v2317, 4294901760
    %v2319 = vsub.f32 %v2317, %v2318
    %v2320 = vand.u32 %v2319, 4294901760
    %2321 = vmatpush1.msra.mxu0 %v2320
    %2322 = vmatprep.subr.mxu0 0.0
    %v2323 = vand.u32 %v283, 4294901760
    %v2324 = vsub.f32 %v283, %v2323
    %v2325 = vand.u32 %v2324, 4294901760
    %v2326 = vsub.f32 %v2324, %v2325
    %v2327 = vand.u32 %v2326, 4294901760
    %2328 = vmatpush1.msra.mxu0 %v2327
    %2329 = vmatprep.subr.mxu0 0.0
    %v2330 = vand.u32 %v284, 4294901760
    %v2331 = vsub.f32 %v284, %v2330
    %v2332 = vand.u32 %v2331, 4294901760
    %v2333 = vsub.f32 %v2331, %v2332
    %v2334 = vand.u32 %v2333, 4294901760
    %2335 = vmatpush1.msra.mxu0 %v2334
    %2336 = vmatprep.subr.mxu0 0.0
    %v2337 = vand.u32 %v285, 4294901760
    %v2338 = vsub.f32 %v285, %v2337
    %v2339 = vand.u32 %v2338, 4294901760
    %v2340 = vsub.f32 %v2338, %v2339
    %v2341 = vand.u32 %v2340, 4294901760
    %2342 = vmatpush1.msra.mxu0 %v2341
    %2343 = vmatprep.subr.mxu0 0.0
    %v2344 = vand.u32 %v286, 4294901760
    %v2345 = vsub.f32 %v286, %v2344
    %v2346 = vand.u32 %v2345, 4294901760
    %v2347 = vsub.f32 %v2345, %v2346
    %v2348 = vand.u32 %v2347, 4294901760
    %2349 = vmatpush1.msra.mxu0 %v2348
    %2350 = vmatprep.subr.mxu0 0.0
    %v2351 = vand.u32 %v287, 4294901760
    %v2352 = vsub.f32 %v287, %v2351
    %v2353 = vand.u32 %v2352, 4294901760
    %v2354 = vsub.f32 %v2352, %v2353
    %v2355 = vand.u32 %v2354, 4294901760
    %2356 = vmatpush1.msra.mxu0 %v2355
    %2357 = vmatprep.subr.mxu0 0.0
    %v2358 = vand.u32 %v288, 4294901760
    %v2359 = vsub.f32 %v288, %v2358
    %v2360 = vand.u32 %v2359, 4294901760
    %v2361 = vsub.f32 %v2359, %v2360
    %v2362 = vand.u32 %v2361, 4294901760
    %2363 = vmatpush1.msra.mxu0 %v2362
    %2364 = vmatprep.subr.mxu0 0.0
    %v2365 = vand.u32 %v289, 4294901760
    %v2366 = vsub.f32 %v289, %v2365
    %v2367 = vand.u32 %v2366, 4294901760
    %v2368 = vsub.f32 %v2366, %v2367
    %v2369 = vand.u32 %v2368, 4294901760
    %2370 = vmatpush1.msra.mxu0 %v2369
    %2371 = vmatprep.subr.mxu0 0.0
    %v2372 = vand.u32 %v290, 4294901760
    %v2373 = vsub.f32 %v290, %v2372
    %v2374 = vand.u32 %v2373, 4294901760
    %v2375 = vsub.f32 %v2373, %v2374
    %v2376 = vand.u32 %v2375, 4294901760
    %2377 = vmatpush1.msra.mxu0 %v2376
    %2378 = vmatprep.subr.mxu0 0.0
    %v2379 = vand.u32 %v291, 4294901760
    %v2380 = vsub.f32 %v291, %v2379
    %v2381 = vand.u32 %v2380, 4294901760
    %v2382 = vsub.f32 %v2380, %v2381
    %v2383 = vand.u32 %v2382, 4294901760
    %2384 = vmatpush1.msra.mxu0 %v2383
    %2385 = vmatprep.subr.mxu0 0.0
    %v2386 = vand.u32 %v292, 4294901760
    %v2387 = vsub.f32 %v292, %v2386
    %v2388 = vand.u32 %v2387, 4294901760
    %v2389 = vsub.f32 %v2387, %v2388
    %v2390 = vand.u32 %v2389, 4294901760
    %2391 = vmatpush1.msra.mxu0 %v2390
    %v2392 = vand.u32 %v194, 4294901760
    %2393 = vmatprep.mubr.f32.mxu0 %v2392
    %v2394 = vand.u32 %v193, 4294901760
    %2395 = vmatmul.mubr.f32.gmra.mrb[0].mxu0 %v2394
    %v2396 = vpop.f32.mrb[0].mxu0
    %v2397 = vadd.f32 %v2165, %v2396
    %v2398 = vpop.f32.mrb[0].mxu0
    %2399 = vdwg.mxu0
    %2400 = vmatprep.subr.mxu0 0.0
    %v2401 = vand.u32 %v261, 4294901760
    %v2402 = vsub.f32 %v261, %v2401
    %2403 = vmatpush1.msra.mxu0 %v2402
    %2404 = vmatprep.subr.mxu0 0.0
    %v2405 = vand.u32 %v262, 4294901760
    %v2406 = vsub.f32 %v262, %v2405
    %2407 = vmatpush1.msra.mxu0 %v2406
    %2408 = vmatprep.subr.mxu0 0.0
    %v2409 = vand.u32 %v263, 4294901760
    %v2410 = vsub.f32 %v263, %v2409
    %2411 = vmatpush1.msra.mxu0 %v2410
    %2412 = vmatprep.subr.mxu0 0.0
    %v2413 = vand.u32 %v264, 4294901760
    %v2414 = vsub.f32 %v264, %v2413
    %2415 = vmatpush1.msra.mxu0 %v2414
    %2416 = vmatprep.subr.mxu0 0.0
    %v2417 = vand.u32 %v265, 4294901760
    %v2418 = vsub.f32 %v265, %v2417
    %2419 = vmatpush1.msra.mxu0 %v2418
    %2420 = vmatprep.subr.mxu0 0.0
    %v2421 = vand.u32 %v266, 4294901760
    %v2422 = vsub.f32 %v266, %v2421
    %2423 = vmatpush1.msra.mxu0 %v2422
    %2424 = vmatprep.subr.mxu0 0.0
    %v2425 = vand.u32 %v267, 4294901760
    %v2426 = vsub.f32 %v267, %v2425
    %2427 = vmatpush1.msra.mxu0 %v2426
    %2428 = vmatprep.subr.mxu0 0.0
    %v2429 = vand.u32 %v268, 4294901760
    %v2430 = vsub.f32 %v268, %v2429
    %2431 = vmatpush1.msra.mxu0 %v2430
    %2432 = vmatprep.subr.mxu0 0.0
    %v2433 = vand.u32 %v269, 4294901760
    %v2434 = vsub.f32 %v269, %v2433
    %2435 = vmatpush1.msra.mxu0 %v2434
    %2436 = vmatprep.subr.mxu0 0.0
    %v2437 = vand.u32 %v270, 4294901760
    %v2438 = vsub.f32 %v270, %v2437
    %2439 = vmatpush1.msra.mxu0 %v2438
    %2440 = vmatprep.subr.mxu0 0.0
    %v2441 = vand.u32 %v271, 4294901760
    %v2442 = vsub.f32 %v271, %v2441
    %2443 = vmatpush1.msra.mxu0 %v2442
    %2444 = vmatprep.subr.mxu0 0.0
    %v2445 = vand.u32 %v272, 4294901760
    %v2446 = vsub.f32 %v272, %v2445
    %2447 = vmatpush1.msra.mxu0 %v2446
    %2448 = vmatprep.subr.mxu0 0.0
    %v2449 = vand.u32 %v273, 4294901760
    %v2450 = vsub.f32 %v273, %v2449
    %2451 = vmatpush1.msra.mxu0 %v2450
    %2452 = vmatprep.subr.mxu0 0.0
    %v2453 = vand.u32 %v274, 4294901760
    %v2454 = vsub.f32 %v274, %v2453
    %2455 = vmatpush1.msra.mxu0 %v2454
    %2456 = vmatprep.subr.mxu0 0.0
    %v2457 = vand.u32 %v275, 4294901760
    %v2458 = vsub.f32 %v275, %v2457
    %2459 = vmatpush1.msra.mxu0 %v2458
    %2460 = vmatprep.subr.mxu0 0.0
    %v2461 = vand.u32 %v276, 4294901760
    %v2462 = vsub.f32 %v276, %v2461
    %2463 = vmatpush1.msra.mxu0 %v2462
    %2464 = vmatprep.subr.mxu0 0.0
    %v2465 = vand.u32 %v277, 4294901760
    %v2466 = vsub.f32 %v277, %v2465
    %2467 = vmatpush1.msra.mxu0 %v2466
    %2468 = vmatprep.subr.mxu0 0.0
    %v2469 = vand.u32 %v278, 4294901760
    %v2470 = vsub.f32 %v278, %v2469
    %2471 = vmatpush1.msra.mxu0 %v2470
    %2472 = vmatprep.subr.mxu0 0.0
    %v2473 = vand.u32 %v279, 4294901760
    %v2474 = vsub.f32 %v279, %v2473
    %2475 = vmatpush1.msra.mxu0 %v2474
    %2476 = vmatprep.subr.mxu0 0.0
    %v2477 = vand.u32 %v280, 4294901760
    %v2478 = vsub.f32 %v280, %v2477
    %2479 = vmatpush1.msra.mxu0 %v2478
    %2480 = vmatprep.subr.mxu0 0.0
    %v2481 = vand.u32 %v281, 4294901760
    %v2482 = vsub.f32 %v281, %v2481
    %2483 = vmatpush1.msra.mxu0 %v2482
    %2484 = vmatprep.subr.mxu0 0.0
    %v2485 = vand.u32 %v282, 4294901760
    %v2486 = vsub.f32 %v282, %v2485
    %2487 = vmatpush1.msra.mxu0 %v2486
    %2488 = vmatprep.subr.mxu0 0.0
    %v2489 = vand.u32 %v283, 4294901760
    %v2490 = vsub.f32 %v283, %v2489
    %2491 = vmatpush1.msra.mxu0 %v2490
    %2492 = vmatprep.subr.mxu0 0.0
    %v2493 = vand.u32 %v284, 4294901760
    %v2494 = vsub.f32 %v284, %v2493
    %2495 = vmatpush1.msra.mxu0 %v2494
    %2496 = vmatprep.subr.mxu0 0.0
    %v2497 = vand.u32 %v285, 4294901760
    %v2498 = vsub.f32 %v285, %v2497
    %2499 = vmatpush1.msra.mxu0 %v2498
    %2500 = vmatprep.subr.mxu0 0.0
    %v2501 = vand.u32 %v286, 4294901760
    %v2502 = vsub.f32 %v286, %v2501
    %2503 = vmatpush1.msra.mxu0 %v2502
    %2504 = vmatprep.subr.mxu0 0.0
    %v2505 = vand.u32 %v287, 4294901760
    %v2506 = vsub.f32 %v287, %v2505
    %2507 = vmatpush1.msra.mxu0 %v2506
    %2508 = vmatprep.subr.mxu0 0.0
    %v2509 = vand.u32 %v288, 4294901760
    %v2510 = vsub.f32 %v288, %v2509
    %2511 = vmatpush1.msra.mxu0 %v2510
    %2512 = vmatprep.subr.mxu0 0.0
    %v2513 = vand.u32 %v289, 4294901760
    %v2514 = vsub.f32 %v289, %v2513
    %2515 = vmatpush1.msra.mxu0 %v2514
    %2516 = vmatprep.subr.mxu0 0.0
    %v2517 = vand.u32 %v290, 4294901760
    %v2518 = vsub.f32 %v290, %v2517
    %2519 = vmatpush1.msra.mxu0 %v2518
    %2520 = vmatprep.subr.mxu0 0.0
    %v2521 = vand.u32 %v291, 4294901760
    %v2522 = vsub.f32 %v291, %v2521
    %2523 = vmatpush1.msra.mxu0 %v2522
    %2524 = vmatprep.subr.mxu0 0.0
    %v2525 = vand.u32 %v292, 4294901760
    %v2526 = vsub.f32 %v292, %v2525
    %2527 = vmatpush1.msra.mxu0 %v2526
    %v2528 = vand.u32 %v194, 4294901760
    %v2529 = vsub.f32 %v194, %v2528
    %2530 = vmatprep.mubr.f32.mxu0 %v2529
    %v2531 = vand.u32 %v193, 4294901760
    %v2532 = vsub.f32 %v193, %v2531
    %2533 = vmatmul.mubr.f32.gmra.mrb[0].mxu0 %v2532
    %v2534 = vpop.f32.mrb[0].mxu0
    %v2535 = vadd.f32 %v2397, %v2534
    %v2536 = vpop.f32.mrb[0].mxu0
    %2537 = vdwg.mxu0
    %2538 = vmatprep.subr.mxu0 0.0
    %v2539 = vand.u32 %v261, 4294901760
    %2540 = vmatpush1.msra.mxu0 %v2539
    %2541 = vmatprep.subr.mxu0 0.0
    %v2542 = vand.u32 %v262, 4294901760
    %2543 = vmatpush1.msra.mxu0 %v2542
    %2544 = vmatprep.subr.mxu0 0.0
    %v2545 = vand.u32 %v263, 4294901760
    %2546 = vmatpush1.msra.mxu0 %v2545
    %2547 = vmatprep.subr.mxu0 0.0
    %v2548 = vand.u32 %v264, 4294901760
    %2549 = vmatpush1.msra.mxu0 %v2548
    %2550 = vmatprep.subr.mxu0 0.0
    %v2551 = vand.u32 %v265, 4294901760
    %2552 = vmatpush1.msra.mxu0 %v2551
    %2553 = vmatprep.subr.mxu0 0.0
    %v2554 = vand.u32 %v266, 4294901760
    %2555 = vmatpush1.msra.mxu0 %v2554
    %2556 = vmatprep.subr.mxu0 0.0
    %v2557 = vand.u32 %v267, 4294901760
    %2558 = vmatpush1.msra.mxu0 %v2557
    %2559 = vmatprep.subr.mxu0 0.0
    %v2560 = vand.u32 %v268, 4294901760
    %2561 = vmatpush1.msra.mxu0 %v2560
    %2562 = vmatprep.subr.mxu0 0.0
    %v2563 = vand.u32 %v269, 4294901760
    %2564 = vmatpush1.msra.mxu0 %v2563
    %2565 = vmatprep.subr.mxu0 0.0
    %v2566 = vand.u32 %v270, 4294901760
    %2567 = vmatpush1.msra.mxu0 %v2566
    %2568 = vmatprep.subr.mxu0 0.0
    %v2569 = vand.u32 %v271, 4294901760
    %2570 = vmatpush1.msra.mxu0 %v2569
    %2571 = vmatprep.subr.mxu0 0.0
    %v2572 = vand.u32 %v272, 4294901760
    %2573 = vmatpush1.msra.mxu0 %v2572
    %2574 = vmatprep.subr.mxu0 0.0
    %v2575 = vand.u32 %v273, 4294901760
    %2576 = vmatpush1.msra.mxu0 %v2575
    %2577 = vmatprep.subr.mxu0 0.0
    %v2578 = vand.u32 %v274, 4294901760
    %2579 = vmatpush1.msra.mxu0 %v2578
    %2580 = vmatprep.subr.mxu0 0.0
    %v2581 = vand.u32 %v275, 4294901760
    %2582 = vmatpush1.msra.mxu0 %v2581
    %2583 = vmatprep.subr.mxu0 0.0
    %v2584 = vand.u32 %v276, 4294901760
    %2585 = vmatpush1.msra.mxu0 %v2584
    %2586 = vmatprep.subr.mxu0 0.0
    %v2587 = vand.u32 %v277, 4294901760
    %2588 = vmatpush1.msra.mxu0 %v2587
    %2589 = vmatprep.subr.mxu0 0.0
    %v2590 = vand.u32 %v278, 4294901760
    %2591 = vmatpush1.msra.mxu0 %v2590
    %2592 = vmatprep.subr.mxu0 0.0
    %v2593 = vand.u32 %v279, 4294901760
    %2594 = vmatpush1.msra.mxu0 %v2593
    %2595 = vmatprep.subr.mxu0 0.0
    %v2596 = vand.u32 %v280, 4294901760
    %2597 = vmatpush1.msra.mxu0 %v2596
    %2598 = vmatprep.subr.mxu0 0.0
    %v2599 = vand.u32 %v281, 4294901760
    %2600 = vmatpush1.msra.mxu0 %v2599
    %2601 = vmatprep.subr.mxu0 0.0
    %v2602 = vand.u32 %v282, 4294901760
    %2603 = vmatpush1.msra.mxu0 %v2602
    %2604 = vmatprep.subr.mxu0 0.0
    %v2605 = vand.u32 %v283, 4294901760
    %2606 = vmatpush1.msra.mxu0 %v2605
    %2607 = vmatprep.subr.mxu0 0.0
    %v2608 = vand.u32 %v284, 4294901760
    %2609 = vmatpush1.msra.mxu0 %v2608
    %2610 = vmatprep.subr.mxu0 0.0
    %v2611 = vand.u32 %v285, 4294901760
    %2612 = vmatpush1.msra.mxu0 %v2611
    %2613 = vmatprep.subr.mxu0 0.0
    %v2614 = vand.u32 %v286, 4294901760
    %2615 = vmatpush1.msra.mxu0 %v2614
    %2616 = vmatprep.subr.mxu0 0.0
    %v2617 = vand.u32 %v287, 4294901760
    %2618 = vmatpush1.msra.mxu0 %v2617
    %2619 = vmatprep.subr.mxu0 0.0
    %v2620 = vand.u32 %v288, 4294901760
    %2621 = vmatpush1.msra.mxu0 %v2620
    %2622 = vmatprep.subr.mxu0 0.0
    %v2623 = vand.u32 %v289, 4294901760
    %2624 = vmatpush1.msra.mxu0 %v2623
    %2625 = vmatprep.subr.mxu0 0.0
    %v2626 = vand.u32 %v290, 4294901760
    %2627 = vmatpush1.msra.mxu0 %v2626
    %2628 = vmatprep.subr.mxu0 0.0
    %v2629 = vand.u32 %v291, 4294901760
    %2630 = vmatpush1.msra.mxu0 %v2629
    %2631 = vmatprep.subr.mxu0 0.0
    %v2632 = vand.u32 %v292, 4294901760
    %2633 = vmatpush1.msra.mxu0 %v2632
    %v2634 = vand.u32 %v194, 4294901760
    %v2635 = vsub.f32 %v194, %v2634
    %v2636 = vand.u32 %v2635, 4294901760
    %2637 = vmatprep.mubr.f32.mxu0 %v2636
    %v2638 = vand.u32 %v193, 4294901760
    %v2639 = vsub.f32 %v193, %v2638
    %v2640 = vand.u32 %v2639, 4294901760
    %2641 = vmatmul.mubr.f32.gmra.mrb[0].mxu0 %v2640
    %v2642 = vpop.f32.mrb[0].mxu0
    %v2643 = vadd.f32 %v2535, %v2642
    %v2644 = vpop.f32.mrb[0].mxu0
    %2645 = vdwg.mxu0
    %2646 = vmatprep.subr.mxu0 0.0
    %v2647 = vand.u32 %v261, 4294901760
    %v2648 = vsub.f32 %v261, %v2647
    %v2649 = vand.u32 %v2648, 4294901760
    %2650 = vmatpush1.msra.mxu0 %v2649
    %2651 = vmatprep.subr.mxu0 0.0
    %v2652 = vand.u32 %v262, 4294901760
    %v2653 = vsub.f32 %v262, %v2652
    %v2654 = vand.u32 %v2653, 4294901760
    %2655 = vmatpush1.msra.mxu0 %v2654
    %2656 = vmatprep.subr.mxu0 0.0
    %v2657 = vand.u32 %v263, 4294901760
    %v2658 = vsub.f32 %v263, %v2657
    %v2659 = vand.u32 %v2658, 4294901760
    %2660 = vmatpush1.msra.mxu0 %v2659
    %2661 = vmatprep.subr.mxu0 0.0
    %v2662 = vand.u32 %v264, 4294901760
    %v2663 = vsub.f32 %v264, %v2662
    %v2664 = vand.u32 %v2663, 4294901760
    %2665 = vmatpush1.msra.mxu0 %v2664
    %2666 = vmatprep.subr.mxu0 0.0
    %v2667 = vand.u32 %v265, 4294901760
    %v2668 = vsub.f32 %v265, %v2667
    %v2669 = vand.u32 %v2668, 4294901760
    %2670 = vmatpush1.msra.mxu0 %v2669
    %2671 = vmatprep.subr.mxu0 0.0
    %v2672 = vand.u32 %v266, 4294901760
    %v2673 = vsub.f32 %v266, %v2672
    %v2674 = vand.u32 %v2673, 4294901760
    %2675 = vmatpush1.msra.mxu0 %v2674
    %2676 = vmatprep.subr.mxu0 0.0
    %v2677 = vand.u32 %v267, 4294901760
    %v2678 = vsub.f32 %v267, %v2677
    %v2679 = vand.u32 %v2678, 4294901760
    %2680 = vmatpush1.msra.mxu0 %v2679
    %2681 = vmatprep.subr.mxu0 0.0
    %v2682 = vand.u32 %v268, 4294901760
    %v2683 = vsub.f32 %v268, %v2682
    %v2684 = vand.u32 %v2683, 4294901760
    %2685 = vmatpush1.msra.mxu0 %v2684
    %2686 = vmatprep.subr.mxu0 0.0
    %v2687 = vand.u32 %v269, 4294901760
    %v2688 = vsub.f32 %v269, %v2687
    %v2689 = vand.u32 %v2688, 4294901760
    %2690 = vmatpush1.msra.mxu0 %v2689
    %2691 = vmatprep.subr.mxu0 0.0
    %v2692 = vand.u32 %v270, 4294901760
    %v2693 = vsub.f32 %v270, %v2692
    %v2694 = vand.u32 %v2693, 4294901760
    %2695 = vmatpush1.msra.mxu0 %v2694
    %2696 = vmatprep.subr.mxu0 0.0
    %v2697 = vand.u32 %v271, 4294901760
    %v2698 = vsub.f32 %v271, %v2697
    %v2699 = vand.u32 %v2698, 4294901760
    %2700 = vmatpush1.msra.mxu0 %v2699
    %2701 = vmatprep.subr.mxu0 0.0
    %v2702 = vand.u32 %v272, 4294901760
    %v2703 = vsub.f32 %v272, %v2702
    %v2704 = vand.u32 %v2703, 4294901760
    %2705 = vmatpush1.msra.mxu0 %v2704
    %2706 = vmatprep.subr.mxu0 0.0
    %v2707 = vand.u32 %v273, 4294901760
    %v2708 = vsub.f32 %v273, %v2707
    %v2709 = vand.u32 %v2708, 4294901760
    %2710 = vmatpush1.msra.mxu0 %v2709
    %2711 = vmatprep.subr.mxu0 0.0
    %v2712 = vand.u32 %v274, 4294901760
    %v2713 = vsub.f32 %v274, %v2712
    %v2714 = vand.u32 %v2713, 4294901760
    %2715 = vmatpush1.msra.mxu0 %v2714
    %2716 = vmatprep.subr.mxu0 0.0
    %v2717 = vand.u32 %v275, 4294901760
    %v2718 = vsub.f32 %v275, %v2717
    %v2719 = vand.u32 %v2718, 4294901760
    %2720 = vmatpush1.msra.mxu0 %v2719
    %2721 = vmatprep.subr.mxu0 0.0
    %v2722 = vand.u32 %v276, 4294901760
    %v2723 = vsub.f32 %v276, %v2722
    %v2724 = vand.u32 %v2723, 4294901760
    %2725 = vmatpush1.msra.mxu0 %v2724
    %2726 = vmatprep.subr.mxu0 0.0
    %v2727 = vand.u32 %v277, 4294901760
    %v2728 = vsub.f32 %v277, %v2727
    %v2729 = vand.u32 %v2728, 4294901760
    %2730 = vmatpush1.msra.mxu0 %v2729
    %2731 = vmatprep.subr.mxu0 0.0
    %v2732 = vand.u32 %v278, 4294901760
    %v2733 = vsub.f32 %v278, %v2732
    %v2734 = vand.u32 %v2733, 4294901760
    %2735 = vmatpush1.msra.mxu0 %v2734
    %2736 = vmatprep.subr.mxu0 0.0
    %v2737 = vand.u32 %v279, 4294901760
    %v2738 = vsub.f32 %v279, %v2737
    %v2739 = vand.u32 %v2738, 4294901760
    %2740 = vmatpush1.msra.mxu0 %v2739
    %2741 = vmatprep.subr.mxu0 0.0
    %v2742 = vand.u32 %v280, 4294901760
    %v2743 = vsub.f32 %v280, %v2742
    %v2744 = vand.u32 %v2743, 4294901760
    %2745 = vmatpush1.msra.mxu0 %v2744
    %2746 = vmatprep.subr.mxu0 0.0
    %v2747 = vand.u32 %v281, 4294901760
    %v2748 = vsub.f32 %v281, %v2747
    %v2749 = vand.u32 %v2748, 4294901760
    %2750 = vmatpush1.msra.mxu0 %v2749
    %2751 = vmatprep.subr.mxu0 0.0
    %v2752 = vand.u32 %v282, 4294901760
    %v2753 = vsub.f32 %v282, %v2752
    %v2754 = vand.u32 %v2753, 4294901760
    %2755 = vmatpush1.msra.mxu0 %v2754
    %2756 = vmatprep.subr.mxu0 0.0
    %v2757 = vand.u32 %v283, 4294901760
    %v2758 = vsub.f32 %v283, %v2757
    %v2759 = vand.u32 %v2758, 4294901760
    %2760 = vmatpush1.msra.mxu0 %v2759
    %2761 = vmatprep.subr.mxu0 0.0
    %v2762 = vand.u32 %v284, 4294901760
    %v2763 = vsub.f32 %v284, %v2762
    %v2764 = vand.u32 %v2763, 4294901760
    %2765 = vmatpush1.msra.mxu0 %v2764
    %2766 = vmatprep.subr.mxu0 0.0
    %v2767 = vand.u32 %v285, 4294901760
    %v2768 = vsub.f32 %v285, %v2767
    %v2769 = vand.u32 %v2768, 4294901760
    %2770 = vmatpush1.msra.mxu0 %v2769
    %2771 = vmatprep.subr.mxu0 0.0
    %v2772 = vand.u32 %v286, 4294901760
    %v2773 = vsub.f32 %v286, %v2772
    %v2774 = vand.u32 %v2773, 4294901760
    %2775 = vmatpush1.msra.mxu0 %v2774
    %2776 = vmatprep.subr.mxu0 0.0
    %v2777 = vand.u32 %v287, 4294901760
    %v2778 = vsub.f32 %v287, %v2777
    %v2779 = vand.u32 %v2778, 4294901760
    %2780 = vmatpush1.msra.mxu0 %v2779
    %2781 = vmatprep.subr.mxu0 0.0
    %v2782 = vand.u32 %v288, 4294901760
    %v2783 = vsub.f32 %v288, %v2782
    %v2784 = vand.u32 %v2783, 4294901760
    %2785 = vmatpush1.msra.mxu0 %v2784
    %2786 = vmatprep.subr.mxu0 0.0
    %v2787 = vand.u32 %v289, 4294901760
    %v2788 = vsub.f32 %v289, %v2787
    %v2789 = vand.u32 %v2788, 4294901760
    %2790 = vmatpush1.msra.mxu0 %v2789
    %2791 = vmatprep.subr.mxu0 0.0
    %v2792 = vand.u32 %v290, 4294901760
    %v2793 = vsub.f32 %v290, %v2792
    %v2794 = vand.u32 %v2793, 4294901760
    %2795 = vmatpush1.msra.mxu0 %v2794
    %2796 = vmatprep.subr.mxu0 0.0
    %v2797 = vand.u32 %v291, 4294901760
    %v2798 = vsub.f32 %v291, %v2797
    %v2799 = vand.u32 %v2798, 4294901760
    %2800 = vmatpush1.msra.mxu0 %v2799
    %2801 = vmatprep.subr.mxu0 0.0
    %v2802 = vand.u32 %v292, 4294901760
    %v2803 = vsub.f32 %v292, %v2802
    %v2804 = vand.u32 %v2803, 4294901760
    %2805 = vmatpush1.msra.mxu0 %v2804
    %v2806 = vand.u32 %v194, 4294901760
    %2807 = vmatprep.mubr.f32.mxu0 %v2806
    %v2808 = vand.u32 %v193, 4294901760
    %2809 = vmatmul.mubr.f32.gmra.mrb[0].mxu0 %v2808
    %v2810 = vpop.f32.mrb[0].mxu0
    %v2811 = vadd.f32 %v2643, %v2810
    %v2812 = vpop.f32.mrb[0].mxu0
    %2813 = vdwg.mxu0
    %2814 = vmatprep.subr.mxu0 0.0
    %v2815 = vand.u32 %v261, 4294901760
    %2816 = vmatpush1.msra.mxu0 %v2815
    %2817 = vmatprep.subr.mxu0 0.0
    %v2818 = vand.u32 %v262, 4294901760
    %2819 = vmatpush1.msra.mxu0 %v2818
    %2820 = vmatprep.subr.mxu0 0.0
    %v2821 = vand.u32 %v263, 4294901760
    %2822 = vmatpush1.msra.mxu0 %v2821
    %2823 = vmatprep.subr.mxu0 0.0
    %v2824 = vand.u32 %v264, 4294901760
    %2825 = vmatpush1.msra.mxu0 %v2824
    %2826 = vmatprep.subr.mxu0 0.0
    %v2827 = vand.u32 %v265, 4294901760
    %2828 = vmatpush1.msra.mxu0 %v2827
    %2829 = vmatprep.subr.mxu0 0.0
    %v2830 = vand.u32 %v266, 4294901760
    %2831 = vmatpush1.msra.mxu0 %v2830
    %2832 = vmatprep.subr.mxu0 0.0
    %v2833 = vand.u32 %v267, 4294901760
    %2834 = vmatpush1.msra.mxu0 %v2833
    %2835 = vmatprep.subr.mxu0 0.0
    %v2836 = vand.u32 %v268, 4294901760
    %2837 = vmatpush1.msra.mxu0 %v2836
    %2838 = vmatprep.subr.mxu0 0.0
    %v2839 = vand.u32 %v269, 4294901760
    %2840 = vmatpush1.msra.mxu0 %v2839
    %2841 = vmatprep.subr.mxu0 0.0
    %v2842 = vand.u32 %v270, 4294901760
    %2843 = vmatpush1.msra.mxu0 %v2842
    %2844 = vmatprep.subr.mxu0 0.0
    %v2845 = vand.u32 %v271, 4294901760
    %2846 = vmatpush1.msra.mxu0 %v2845
    %2847 = vmatprep.subr.mxu0 0.0
    %v2848 = vand.u32 %v272, 4294901760
    %2849 = vmatpush1.msra.mxu0 %v2848
    %2850 = vmatprep.subr.mxu0 0.0
    %v2851 = vand.u32 %v273, 4294901760
    %2852 = vmatpush1.msra.mxu0 %v2851
    %2853 = vmatprep.subr.mxu0 0.0
    %v2854 = vand.u32 %v274, 4294901760
    %2855 = vmatpush1.msra.mxu0 %v2854
    %2856 = vmatprep.subr.mxu0 0.0
    %v2857 = vand.u32 %v275, 4294901760
    %2858 = vmatpush1.msra.mxu0 %v2857
    %2859 = vmatprep.subr.mxu0 0.0
    %v2860 = vand.u32 %v276, 4294901760
    %2861 = vmatpush1.msra.mxu0 %v2860
    %2862 = vmatprep.subr.mxu0 0.0
    %v2863 = vand.u32 %v277, 4294901760
    %2864 = vmatpush1.msra.mxu0 %v2863
    %2865 = vmatprep.subr.mxu0 0.0
    %v2866 = vand.u32 %v278, 4294901760
    %2867 = vmatpush1.msra.mxu0 %v2866
    %2868 = vmatprep.subr.mxu0 0.0
    %v2869 = vand.u32 %v279, 4294901760
    %2870 = vmatpush1.msra.mxu0 %v2869
    %2871 = vmatprep.subr.mxu0 0.0
    %v2872 = vand.u32 %v280, 4294901760
    %2873 = vmatpush1.msra.mxu0 %v2872
    %2874 = vmatprep.subr.mxu0 0.0
    %v2875 = vand.u32 %v281, 4294901760
    %2876 = vmatpush1.msra.mxu0 %v2875
    %2877 = vmatprep.subr.mxu0 0.0
    %v2878 = vand.u32 %v282, 4294901760
    %2879 = vmatpush1.msra.mxu0 %v2878
    %2880 = vmatprep.subr.mxu0 0.0
    %v2881 = vand.u32 %v283, 4294901760
    %2882 = vmatpush1.msra.mxu0 %v2881
    %2883 = vmatprep.subr.mxu0 0.0
    %v2884 = vand.u32 %v284, 4294901760
    %2885 = vmatpush1.msra.mxu0 %v2884
    %2886 = vmatprep.subr.mxu0 0.0
    %v2887 = vand.u32 %v285, 4294901760
    %2888 = vmatpush1.msra.mxu0 %v2887
    %2889 = vmatprep.subr.mxu0 0.0
    %v2890 = vand.u32 %v286, 4294901760
    %2891 = vmatpush1.msra.mxu0 %v2890
    %2892 = vmatprep.subr.mxu0 0.0
    %v2893 = vand.u32 %v287, 4294901760
    %2894 = vmatpush1.msra.mxu0 %v2893
    %2895 = vmatprep.subr.mxu0 0.0
    %v2896 = vand.u32 %v288, 4294901760
    %2897 = vmatpush1.msra.mxu0 %v2896
    %2898 = vmatprep.subr.mxu0 0.0
    %v2899 = vand.u32 %v289, 4294901760
    %2900 = vmatpush1.msra.mxu0 %v2899
    %2901 = vmatprep.subr.mxu0 0.0
    %v2902 = vand.u32 %v290, 4294901760
    %2903 = vmatpush1.msra.mxu0 %v2902
    %2904 = vmatprep.subr.mxu0 0.0
    %v2905 = vand.u32 %v291, 4294901760
    %2906 = vmatpush1.msra.mxu0 %v2905
    %2907 = vmatprep.subr.mxu0 0.0
    %v2908 = vand.u32 %v292, 4294901760
    %2909 = vmatpush1.msra.mxu0 %v2908
    %v2910 = vand.u32 %v194, 4294901760
    %2911 = vmatprep.mubr.f32.mxu0 %v2910
    %v2912 = vand.u32 %v193, 4294901760
    %2913 = vmatmul.mubr.f32.gmra.mrb[0].mxu0 %v2912
    %v2914 = vpop.f32.mrb[0].mxu0
    %v2915 = vadd.f32 %v2811, %v2914
    %v2916 = vpop.f32.mrb[0].mxu0
    %2917 = vdwg.mxu0
    %2918 = vmatprep.subr.mxu0 0.0
    %v2919 = vand.u32 %v293, 4294901760
    %2920 = vmatpush1.msra.mxu0 %v2919
    %2921 = vmatprep.subr.mxu0 0.0
    %v2922 = vand.u32 %v294, 4294901760
    %2923 = vmatpush1.msra.mxu0 %v2922
    %2924 = vmatprep.subr.mxu0 0.0
    %v2925 = vand.u32 %v295, 4294901760
    %2926 = vmatpush1.msra.mxu0 %v2925
    %2927 = vmatprep.subr.mxu0 0.0
    %v2928 = vand.u32 %v296, 4294901760
    %2929 = vmatpush1.msra.mxu0 %v2928
    %2930 = vmatprep.subr.mxu0 0.0
    %v2931 = vand.u32 %v297, 4294901760
    %2932 = vmatpush1.msra.mxu0 %v2931
    %2933 = vmatprep.subr.mxu0 0.0
    %v2934 = vand.u32 %v298, 4294901760
    %2935 = vmatpush1.msra.mxu0 %v2934
    %2936 = vmatprep.subr.mxu0 0.0
    %v2937 = vand.u32 %v299, 4294901760
    %2938 = vmatpush1.msra.mxu0 %v2937
    %2939 = vmatprep.subr.mxu0 0.0
    %v2940 = vand.u32 %v300, 4294901760
    %2941 = vmatpush1.msra.mxu0 %v2940
    %2942 = vmatprep.subr.mxu0 0.0
    %v2943 = vand.u32 %v301, 4294901760
    %2944 = vmatpush1.msra.mxu0 %v2943
    %2945 = vmatprep.subr.mxu0 0.0
    %v2946 = vand.u32 %v302, 4294901760
    %2947 = vmatpush1.msra.mxu0 %v2946
    %2948 = vmatprep.subr.mxu0 0.0
    %v2949 = vand.u32 %v303, 4294901760
    %2950 = vmatpush1.msra.mxu0 %v2949
    %2951 = vmatprep.subr.mxu0 0.0
    %v2952 = vand.u32 %v304, 4294901760
    %2953 = vmatpush1.msra.mxu0 %v2952
    %2954 = vmatprep.subr.mxu0 0.0
    %v2955 = vand.u32 %v305, 4294901760
    %2956 = vmatpush1.msra.mxu0 %v2955
    %2957 = vmatprep.subr.mxu0 0.0
    %v2958 = vand.u32 %v306, 4294901760
    %2959 = vmatpush1.msra.mxu0 %v2958
    %2960 = vmatprep.subr.mxu0 0.0
    %v2961 = vand.u32 %v307, 4294901760
    %2962 = vmatpush1.msra.mxu0 %v2961
    %2963 = vmatprep.subr.mxu0 0.0
    %v2964 = vand.u32 %v308, 4294901760
    %2965 = vmatpush1.msra.mxu0 %v2964
    %2966 = vmatprep.subr.mxu0 0.0
    %v2967 = vand.u32 %v309, 4294901760
    %2968 = vmatpush1.msra.mxu0 %v2967
    %2969 = vmatprep.subr.mxu0 0.0
    %v2970 = vand.u32 %v310, 4294901760
    %2971 = vmatpush1.msra.mxu0 %v2970
    %2972 = vmatprep.subr.mxu0 0.0
    %v2973 = vand.u32 %v311, 4294901760
    %2974 = vmatpush1.msra.mxu0 %v2973
    %2975 = vmatprep.subr.mxu0 0.0
    %v2976 = vand.u32 %v312, 4294901760
    %2977 = vmatpush1.msra.mxu0 %v2976
    %2978 = vmatprep.subr.mxu0 0.0
    %v2979 = vand.u32 %v313, 4294901760
    %2980 = vmatpush1.msra.mxu0 %v2979
    %2981 = vmatprep.subr.mxu0 0.0
    %v2982 = vand.u32 %v314, 4294901760
    %2983 = vmatpush1.msra.mxu0 %v2982
    %2984 = vmatprep.subr.mxu0 0.0
    %v2985 = vand.u32 %v315, 4294901760
    %2986 = vmatpush1.msra.mxu0 %v2985
    %2987 = vmatprep.subr.mxu0 0.0
    %v2988 = vand.u32 %v316, 4294901760
    %2989 = vmatpush1.msra.mxu0 %v2988
    %2990 = vmatprep.subr.mxu0 0.0
    %v2991 = vand.u32 %v317, 4294901760
    %2992 = vmatpush1.msra.mxu0 %v2991
    %2993 = vmatprep.subr.mxu0 0.0
    %v2994 = vand.u32 %v318, 4294901760
    %2995 = vmatpush1.msra.mxu0 %v2994
    %2996 = vmatprep.subr.mxu0 0.0
    %v2997 = vand.u32 %v319, 4294901760
    %2998 = vmatpush1.msra.mxu0 %v2997
    %2999 = vmatprep.subr.mxu0 0.0
    %v3000 = vand.u32 %v320, 4294901760
    %3001 = vmatpush1.msra.mxu0 %v3000
    %3002 = vmatprep.subr.mxu0 0.0
    %v3003 = vand.u32 %v321, 4294901760
    %3004 = vmatpush1.msra.mxu0 %v3003
    %3005 = vmatprep.subr.mxu0 0.0
    %v3006 = vand.u32 %v322, 4294901760
    %3007 = vmatpush1.msra.mxu0 %v3006
    %3008 = vmatprep.subr.mxu0 0.0
    %v3009 = vand.u32 %v323, 4294901760
    %3010 = vmatpush1.msra.mxu0 %v3009
    %3011 = vmatprep.subr.mxu0 0.0
    %v3012 = vand.u32 %v324, 4294901760
    %3013 = vmatpush1.msra.mxu0 %v3012
    %v3014 = vand.u32 %v196, 4294901760
    %v3015 = vsub.f32 %v196, %v3014
    %v3016 = vand.u32 %v3015, 4294901760
    %v3017 = vsub.f32 %v3015, %v3016
    %v3018 = vand.u32 %v3017, 4294901760
    %3019 = vmatprep.mubr.f32.mxu0 %v3018
    %v3020 = vand.u32 %v195, 4294901760
    %v3021 = vsub.f32 %v195, %v3020
    %v3022 = vand.u32 %v3021, 4294901760
    %v3023 = vsub.f32 %v3021, %v3022
    %v3024 = vand.u32 %v3023, 4294901760
    %3025 = vmatmul.mubr.f32.gmra.mrb[0].mxu0 %v3024
    %v3026 = vpop.f32.mrb[0].mxu0
    %v3027 = vadd.f32 %v2915, %v3026
    %v3028 = vpop.f32.mrb[0].mxu0
    %3029 = vdwg.mxu0
    %3030 = vmatprep.subr.mxu0 0.0
    %v3031 = vand.u32 %v293, 4294901760
    %v3032 = vsub.f32 %v293, %v3031
    %v3033 = vand.u32 %v3032, 4294901760
    %v3034 = vsub.f32 %v3032, %v3033
    %v3035 = vand.u32 %v3034, 4294901760
    %3036 = vmatpush1.msra.mxu0 %v3035
    %3037 = vmatprep.subr.mxu0 0.0
    %v3038 = vand.u32 %v294, 4294901760
    %v3039 = vsub.f32 %v294, %v3038
    %v3040 = vand.u32 %v3039, 4294901760
    %v3041 = vsub.f32 %v3039, %v3040
    %v3042 = vand.u32 %v3041, 4294901760
    %3043 = vmatpush1.msra.mxu0 %v3042
    %3044 = vmatprep.subr.mxu0 0.0
    %v3045 = vand.u32 %v295, 4294901760
    %v3046 = vsub.f32 %v295, %v3045
    %v3047 = vand.u32 %v3046, 4294901760
    %v3048 = vsub.f32 %v3046, %v3047
    %v3049 = vand.u32 %v3048, 4294901760
    %3050 = vmatpush1.msra.mxu0 %v3049
    %3051 = vmatprep.subr.mxu0 0.0
    %v3052 = vand.u32 %v296, 4294901760
    %v3053 = vsub.f32 %v296, %v3052
    %v3054 = vand.u32 %v3053, 4294901760
    %v3055 = vsub.f32 %v3053, %v3054
    %v3056 = vand.u32 %v3055, 4294901760
    %3057 = vmatpush1.msra.mxu0 %v3056
    %3058 = vmatprep.subr.mxu0 0.0
    %v3059 = vand.u32 %v297, 4294901760
    %v3060 = vsub.f32 %v297, %v3059
    %v3061 = vand.u32 %v3060, 4294901760
    %v3062 = vsub.f32 %v3060, %v3061
    %v3063 = vand.u32 %v3062, 4294901760
    %3064 = vmatpush1.msra.mxu0 %v3063
    %3065 = vmatprep.subr.mxu0 0.0
    %v3066 = vand.u32 %v298, 4294901760
    %v3067 = vsub.f32 %v298, %v3066
    %v3068 = vand.u32 %v3067, 4294901760
    %v3069 = vsub.f32 %v3067, %v3068
    %v3070 = vand.u32 %v3069, 4294901760
    %3071 = vmatpush1.msra.mxu0 %v3070
    %3072 = vmatprep.subr.mxu0 0.0
    %v3073 = vand.u32 %v299, 4294901760
    %v3074 = vsub.f32 %v299, %v3073
    %v3075 = vand.u32 %v3074, 4294901760
    %v3076 = vsub.f32 %v3074, %v3075
    %v3077 = vand.u32 %v3076, 4294901760
    %3078 = vmatpush1.msra.mxu0 %v3077
    %3079 = vmatprep.subr.mxu0 0.0
    %v3080 = vand.u32 %v300, 4294901760
    %v3081 = vsub.f32 %v300, %v3080
    %v3082 = vand.u32 %v3081, 4294901760
    %v3083 = vsub.f32 %v3081, %v3082
    %v3084 = vand.u32 %v3083, 4294901760
    %3085 = vmatpush1.msra.mxu0 %v3084
    %3086 = vmatprep.subr.mxu0 0.0
    %v3087 = vand.u32 %v301, 4294901760
    %v3088 = vsub.f32 %v301, %v3087
    %v3089 = vand.u32 %v3088, 4294901760
    %v3090 = vsub.f32 %v3088, %v3089
    %v3091 = vand.u32 %v3090, 4294901760
    %3092 = vmatpush1.msra.mxu0 %v3091
    %3093 = vmatprep.subr.mxu0 0.0
    %v3094 = vand.u32 %v302, 4294901760
    %v3095 = vsub.f32 %v302, %v3094
    %v3096 = vand.u32 %v3095, 4294901760
    %v3097 = vsub.f32 %v3095, %v3096
    %v3098 = vand.u32 %v3097, 4294901760
    %3099 = vmatpush1.msra.mxu0 %v3098
    %3100 = vmatprep.subr.mxu0 0.0
    %v3101 = vand.u32 %v303, 4294901760
    %v3102 = vsub.f32 %v303, %v3101
    %v3103 = vand.u32 %v3102, 4294901760
    %v3104 = vsub.f32 %v3102, %v3103
    %v3105 = vand.u32 %v3104, 4294901760
    %3106 = vmatpush1.msra.mxu0 %v3105
    %3107 = vmatprep.subr.mxu0 0.0
    %v3108 = vand.u32 %v304, 4294901760
    %v3109 = vsub.f32 %v304, %v3108
    %v3110 = vand.u32 %v3109, 4294901760
    %v3111 = vsub.f32 %v3109, %v3110
    %v3112 = vand.u32 %v3111, 4294901760
    %3113 = vmatpush1.msra.mxu0 %v3112
    %3114 = vmatprep.subr.mxu0 0.0
    %v3115 = vand.u32 %v305, 4294901760
    %v3116 = vsub.f32 %v305, %v3115
    %v3117 = vand.u32 %v3116, 4294901760
    %v3118 = vsub.f32 %v3116, %v3117
    %v3119 = vand.u32 %v3118, 4294901760
    %3120 = vmatpush1.msra.mxu0 %v3119
    %3121 = vmatprep.subr.mxu0 0.0
    %v3122 = vand.u32 %v306, 4294901760
    %v3123 = vsub.f32 %v306, %v3122
    %v3124 = vand.u32 %v3123, 4294901760
    %v3125 = vsub.f32 %v3123, %v3124
    %v3126 = vand.u32 %v3125, 4294901760
    %3127 = vmatpush1.msra.mxu0 %v3126
    %3128 = vmatprep.subr.mxu0 0.0
    %v3129 = vand.u32 %v307, 4294901760
    %v3130 = vsub.f32 %v307, %v3129
    %v3131 = vand.u32 %v3130, 4294901760
    %v3132 = vsub.f32 %v3130, %v3131
    %v3133 = vand.u32 %v3132, 4294901760
    %3134 = vmatpush1.msra.mxu0 %v3133
    %3135 = vmatprep.subr.mxu0 0.0
    %v3136 = vand.u32 %v308, 4294901760
    %v3137 = vsub.f32 %v308, %v3136
    %v3138 = vand.u32 %v3137, 4294901760
    %v3139 = vsub.f32 %v3137, %v3138
    %v3140 = vand.u32 %v3139, 4294901760
    %3141 = vmatpush1.msra.mxu0 %v3140
    %3142 = vmatprep.subr.mxu0 0.0
    %v3143 = vand.u32 %v309, 4294901760
    %v3144 = vsub.f32 %v309, %v3143
    %v3145 = vand.u32 %v3144, 4294901760
    %v3146 = vsub.f32 %v3144, %v3145
    %v3147 = vand.u32 %v3146, 4294901760
    %3148 = vmatpush1.msra.mxu0 %v3147
    %3149 = vmatprep.subr.mxu0 0.0
    %v3150 = vand.u32 %v310, 4294901760
    %v3151 = vsub.f32 %v310, %v3150
    %v3152 = vand.u32 %v3151, 4294901760
    %v3153 = vsub.f32 %v3151, %v3152
    %v3154 = vand.u32 %v3153, 4294901760
    %3155 = vmatpush1.msra.mxu0 %v3154
    %3156 = vmatprep.subr.mxu0 0.0
    %v3157 = vand.u32 %v311, 4294901760
    %v3158 = vsub.f32 %v311, %v3157
    %v3159 = vand.u32 %v3158, 4294901760
    %v3160 = vsub.f32 %v3158, %v3159
    %v3161 = vand.u32 %v3160, 4294901760
    %3162 = vmatpush1.msra.mxu0 %v3161
    %3163 = vmatprep.subr.mxu0 0.0
    %v3164 = vand.u32 %v312, 4294901760
    %v3165 = vsub.f32 %v312, %v3164
    %v3166 = vand.u32 %v3165, 4294901760
    %v3167 = vsub.f32 %v3165, %v3166
    %v3168 = vand.u32 %v3167, 4294901760
    %3169 = vmatpush1.msra.mxu0 %v3168
    %3170 = vmatprep.subr.mxu0 0.0
    %v3171 = vand.u32 %v313, 4294901760
    %v3172 = vsub.f32 %v313, %v3171
    %v3173 = vand.u32 %v3172, 4294901760
    %v3174 = vsub.f32 %v3172, %v3173
    %v3175 = vand.u32 %v3174, 4294901760
    %3176 = vmatpush1.msra.mxu0 %v3175
    %3177 = vmatprep.subr.mxu0 0.0
    %v3178 = vand.u32 %v314, 4294901760
    %v3179 = vsub.f32 %v314, %v3178
    %v3180 = vand.u32 %v3179, 4294901760
    %v3181 = vsub.f32 %v3179, %v3180
    %v3182 = vand.u32 %v3181, 4294901760
    %3183 = vmatpush1.msra.mxu0 %v3182
    %3184 = vmatprep.subr.mxu0 0.0
    %v3185 = vand.u32 %v315, 4294901760
    %v3186 = vsub.f32 %v315, %v3185
    %v3187 = vand.u32 %v3186, 4294901760
    %v3188 = vsub.f32 %v3186, %v3187
    %v3189 = vand.u32 %v3188, 4294901760
    %3190 = vmatpush1.msra.mxu0 %v3189
    %3191 = vmatprep.subr.mxu0 0.0
    %v3192 = vand.u32 %v316, 4294901760
    %v3193 = vsub.f32 %v316, %v3192
    %v3194 = vand.u32 %v3193, 4294901760
    %v3195 = vsub.f32 %v3193, %v3194
    %v3196 = vand.u32 %v3195, 4294901760
    %3197 = vmatpush1.msra.mxu0 %v3196
    %3198 = vmatprep.subr.mxu0 0.0
    %v3199 = vand.u32 %v317, 4294901760
    %v3200 = vsub.f32 %v317, %v3199
    %v3201 = vand.u32 %v3200, 4294901760
    %v3202 = vsub.f32 %v3200, %v3201
    %v3203 = vand.u32 %v3202, 4294901760
    %3204 = vmatpush1.msra.mxu0 %v3203
    %3205 = vmatprep.subr.mxu0 0.0
    %v3206 = vand.u32 %v318, 4294901760
    %v3207 = vsub.f32 %v318, %v3206
    %v3208 = vand.u32 %v3207, 4294901760
    %v3209 = vsub.f32 %v3207, %v3208
    %v3210 = vand.u32 %v3209, 4294901760
    %3211 = vmatpush1.msra.mxu0 %v3210
    %3212 = vmatprep.subr.mxu0 0.0
    %v3213 = vand.u32 %v319, 4294901760
    %v3214 = vsub.f32 %v319, %v3213
    %v3215 = vand.u32 %v3214, 4294901760
    %v3216 = vsub.f32 %v3214, %v3215
    %v3217 = vand.u32 %v3216, 4294901760
    %3218 = vmatpush1.msra.mxu0 %v3217
    %3219 = vmatprep.subr.mxu0 0.0
    %v3220 = vand.u32 %v320, 4294901760
    %v3221 = vsub.f32 %v320, %v3220
    %v3222 = vand.u32 %v3221, 4294901760
    %v3223 = vsub.f32 %v3221, %v3222
    %v3224 = vand.u32 %v3223, 4294901760
    %3225 = vmatpush1.msra.mxu0 %v3224
    %3226 = vmatprep.subr.mxu0 0.0
    %v3227 = vand.u32 %v321, 4294901760
    %v3228 = vsub.f32 %v321, %v3227
    %v3229 = vand.u32 %v3228, 4294901760
    %v3230 = vsub.f32 %v3228, %v3229
    %v3231 = vand.u32 %v3230, 4294901760
    %3232 = vmatpush1.msra.mxu0 %v3231
    %3233 = vmatprep.subr.mxu0 0.0
    %v3234 = vand.u32 %v322, 4294901760
    %v3235 = vsub.f32 %v322, %v3234
    %v3236 = vand.u32 %v3235, 4294901760
    %v3237 = vsub.f32 %v3235, %v3236
    %v3238 = vand.u32 %v3237, 4294901760
    %3239 = vmatpush1.msra.mxu0 %v3238
    %3240 = vmatprep.subr.mxu0 0.0
    %v3241 = vand.u32 %v323, 4294901760
    %v3242 = vsub.f32 %v323, %v3241
    %v3243 = vand.u32 %v3242, 4294901760
    %v3244 = vsub.f32 %v3242, %v3243
    %v3245 = vand.u32 %v3244, 4294901760
    %3246 = vmatpush1.msra.mxu0 %v3245
    %3247 = vmatprep.subr.mxu0 0.0
    %v3248 = vand.u32 %v324, 4294901760
    %v3249 = vsub.f32 %v324, %v3248
    %v3250 = vand.u32 %v3249, 4294901760
    %v3251 = vsub.f32 %v3249, %v3250
    %v3252 = vand.u32 %v3251, 4294901760
    %3253 = vmatpush1.msra.mxu0 %v3252
    %v3254 = vand.u32 %v196, 4294901760
    %3255 = vmatprep.mubr.f32.mxu0 %v3254
    %v3256 = vand.u32 %v195, 4294901760
    %3257 = vmatmul.mubr.f32.gmra.mrb[0].mxu0 %v3256
    %v3258 = vpop.f32.mrb[0].mxu0
    %v3259 = vadd.f32 %v3027, %v3258
    %v3260 = vpop.f32.mrb[0].mxu0
    %3261 = vdwg.mxu0
    %3262 = vmatprep.subr.mxu0 0.0
    %v3263 = vand.u32 %v293, 4294901760
    %v3264 = vsub.f32 %v293, %v3263
    %3265 = vmatpush1.msra.mxu0 %v3264
    %3266 = vmatprep.subr.mxu0 0.0
    %v3267 = vand.u32 %v294, 4294901760
    %v3268 = vsub.f32 %v294, %v3267
    %3269 = vmatpush1.msra.mxu0 %v3268
    %3270 = vmatprep.subr.mxu0 0.0
    %v3271 = vand.u32 %v295, 4294901760
    %v3272 = vsub.f32 %v295, %v3271
    %3273 = vmatpush1.msra.mxu0 %v3272
    %3274 = vmatprep.subr.mxu0 0.0
    %v3275 = vand.u32 %v296, 4294901760
    %v3276 = vsub.f32 %v296, %v3275
    %3277 = vmatpush1.msra.mxu0 %v3276
    %3278 = vmatprep.subr.mxu0 0.0
    %v3279 = vand.u32 %v297, 4294901760
    %v3280 = vsub.f32 %v297, %v3279
    %3281 = vmatpush1.msra.mxu0 %v3280
    %3282 = vmatprep.subr.mxu0 0.0
    %v3283 = vand.u32 %v298, 4294901760
    %v3284 = vsub.f32 %v298, %v3283
    %3285 = vmatpush1.msra.mxu0 %v3284
    %3286 = vmatprep.subr.mxu0 0.0
    %v3287 = vand.u32 %v299, 4294901760
    %v3288 = vsub.f32 %v299, %v3287
    %3289 = vmatpush1.msra.mxu0 %v3288
    %3290 = vmatprep.subr.mxu0 0.0
    %v3291 = vand.u32 %v300, 4294901760
    %v3292 = vsub.f32 %v300, %v3291
    %3293 = vmatpush1.msra.mxu0 %v3292
    %3294 = vmatprep.subr.mxu0 0.0
    %v3295 = vand.u32 %v301, 4294901760
    %v3296 = vsub.f32 %v301, %v3295
    %3297 = vmatpush1.msra.mxu0 %v3296
    %3298 = vmatprep.subr.mxu0 0.0
    %v3299 = vand.u32 %v302, 4294901760
    %v3300 = vsub.f32 %v302, %v3299
    %3301 = vmatpush1.msra.mxu0 %v3300
    %3302 = vmatprep.subr.mxu0 0.0
    %v3303 = vand.u32 %v303, 4294901760
    %v3304 = vsub.f32 %v303, %v3303
    %3305 = vmatpush1.msra.mxu0 %v3304
    %3306 = vmatprep.subr.mxu0 0.0
    %v3307 = vand.u32 %v304, 4294901760
    %v3308 = vsub.f32 %v304, %v3307
    %3309 = vmatpush1.msra.mxu0 %v3308
    %3310 = vmatprep.subr.mxu0 0.0
    %v3311 = vand.u32 %v305, 4294901760
    %v3312 = vsub.f32 %v305, %v3311
    %3313 = vmatpush1.msra.mxu0 %v3312
    %3314 = vmatprep.subr.mxu0 0.0
    %v3315 = vand.u32 %v306, 4294901760
    %v3316 = vsub.f32 %v306, %v3315
    %3317 = vmatpush1.msra.mxu0 %v3316
    %3318 = vmatprep.subr.mxu0 0.0
    %v3319 = vand.u32 %v307, 4294901760
    %v3320 = vsub.f32 %v307, %v3319
    %3321 = vmatpush1.msra.mxu0 %v3320
    %3322 = vmatprep.subr.mxu0 0.0
    %v3323 = vand.u32 %v308, 4294901760
    %v3324 = vsub.f32 %v308, %v3323
    %3325 = vmatpush1.msra.mxu0 %v3324
    %3326 = vmatprep.subr.mxu0 0.0
    %v3327 = vand.u32 %v309, 4294901760
    %v3328 = vsub.f32 %v309, %v3327
    %3329 = vmatpush1.msra.mxu0 %v3328
    %3330 = vmatprep.subr.mxu0 0.0
    %v3331 = vand.u32 %v310, 4294901760
    %v3332 = vsub.f32 %v310, %v3331
    %3333 = vmatpush1.msra.mxu0 %v3332
    %3334 = vmatprep.subr.mxu0 0.0
    %v3335 = vand.u32 %v311, 4294901760
    %v3336 = vsub.f32 %v311, %v3335
    %3337 = vmatpush1.msra.mxu0 %v3336
    %3338 = vmatprep.subr.mxu0 0.0
    %v3339 = vand.u32 %v312, 4294901760
    %v3340 = vsub.f32 %v312, %v3339
    %3341 = vmatpush1.msra.mxu0 %v3340
    %3342 = vmatprep.subr.mxu0 0.0
    %v3343 = vand.u32 %v313, 4294901760
    %v3344 = vsub.f32 %v313, %v3343
    %3345 = vmatpush1.msra.mxu0 %v3344
    %3346 = vmatprep.subr.mxu0 0.0
    %v3347 = vand.u32 %v314, 4294901760
    %v3348 = vsub.f32 %v314, %v3347
    %3349 = vmatpush1.msra.mxu0 %v3348
    %3350 = vmatprep.subr.mxu0 0.0
    %v3351 = vand.u32 %v315, 4294901760
    %v3352 = vsub.f32 %v315, %v3351
    %3353 = vmatpush1.msra.mxu0 %v3352
    %3354 = vmatprep.subr.mxu0 0.0
    %v3355 = vand.u32 %v316, 4294901760
    %v3356 = vsub.f32 %v316, %v3355
    %3357 = vmatpush1.msra.mxu0 %v3356
    %3358 = vmatprep.subr.mxu0 0.0
    %v3359 = vand.u32 %v317, 4294901760
    %v3360 = vsub.f32 %v317, %v3359
    %3361 = vmatpush1.msra.mxu0 %v3360
    %3362 = vmatprep.subr.mxu0 0.0
    %v3363 = vand.u32 %v318, 4294901760
    %v3364 = vsub.f32 %v318, %v3363
    %3365 = vmatpush1.msra.mxu0 %v3364
    %3366 = vmatprep.subr.mxu0 0.0
    %v3367 = vand.u32 %v319, 4294901760
    %v3368 = vsub.f32 %v319, %v3367
    %3369 = vmatpush1.msra.mxu0 %v3368
    %3370 = vmatprep.subr.mxu0 0.0
    %v3371 = vand.u32 %v320, 4294901760
    %v3372 = vsub.f32 %v320, %v3371
    %3373 = vmatpush1.msra.mxu0 %v3372
    %3374 = vmatprep.subr.mxu0 0.0
    %v3375 = vand.u32 %v321, 4294901760
    %v3376 = vsub.f32 %v321, %v3375
    %3377 = vmatpush1.msra.mxu0 %v3376
    %3378 = vmatprep.subr.mxu0 0.0
    %v3379 = vand.u32 %v322, 4294901760
    %v3380 = vsub.f32 %v322, %v3379
    %3381 = vmatpush1.msra.mxu0 %v3380
    %3382 = vmatprep.subr.mxu0 0.0
    %v3383 = vand.u32 %v323, 4294901760
    %v3384 = vsub.f32 %v323, %v3383
    %3385 = vmatpush1.msra.mxu0 %v3384
    %3386 = vmatprep.subr.mxu0 0.0
    %v3387 = vand.u32 %v324, 4294901760
    %v3388 = vsub.f32 %v324, %v3387
    %3389 = vmatpush1.msra.mxu0 %v3388
    %v3390 = vand.u32 %v196, 4294901760
    %v3391 = vsub.f32 %v196, %v3390
    %3392 = vmatprep.mubr.f32.mxu0 %v3391
    %v3393 = vand.u32 %v195, 4294901760
    %v3394 = vsub.f32 %v195, %v3393
    %3395 = vmatmul.mubr.f32.gmra.mrb[0].mxu0 %v3394
    %v3396 = vpop.f32.mrb[0].mxu0
    %v3397 = vadd.f32 %v3259, %v3396
    %v3398 = vpop.f32.mrb[0].mxu0
    %3399 = vdwg.mxu0
    %3400 = vmatprep.subr.mxu0 0.0
    %v3401 = vand.u32 %v293, 4294901760
    %3402 = vmatpush1.msra.mxu0 %v3401
    %3403 = vmatprep.subr.mxu0 0.0
    %v3404 = vand.u32 %v294, 4294901760
    %3405 = vmatpush1.msra.mxu0 %v3404
    %3406 = vmatprep.subr.mxu0 0.0
    %v3407 = vand.u32 %v295, 4294901760
    %3408 = vmatpush1.msra.mxu0 %v3407
    %3409 = vmatprep.subr.mxu0 0.0
    %v3410 = vand.u32 %v296, 4294901760
    %3411 = vmatpush1.msra.mxu0 %v3410
    %3412 = vmatprep.subr.mxu0 0.0
    %v3413 = vand.u32 %v297, 4294901760
    %3414 = vmatpush1.msra.mxu0 %v3413
    %3415 = vmatprep.subr.mxu0 0.0
    %v3416 = vand.u32 %v298, 4294901760
    %3417 = vmatpush1.msra.mxu0 %v3416
    %3418 = vmatprep.subr.mxu0 0.0
    %v3419 = vand.u32 %v299, 4294901760
    %3420 = vmatpush1.msra.mxu0 %v3419
    %3421 = vmatprep.subr.mxu0 0.0
    %v3422 = vand.u32 %v300, 4294901760
    %3423 = vmatpush1.msra.mxu0 %v3422
    %3424 = vmatprep.subr.mxu0 0.0
    %v3425 = vand.u32 %v301, 4294901760
    %3426 = vmatpush1.msra.mxu0 %v3425
    %3427 = vmatprep.subr.mxu0 0.0
    %v3428 = vand.u32 %v302, 4294901760
    %3429 = vmatpush1.msra.mxu0 %v3428
    %3430 = vmatprep.subr.mxu0 0.0
    %v3431 = vand.u32 %v303, 4294901760
    %3432 = vmatpush1.msra.mxu0 %v3431
    %3433 = vmatprep.subr.mxu0 0.0
    %v3434 = vand.u32 %v304, 4294901760
    %3435 = vmatpush1.msra.mxu0 %v3434
    %3436 = vmatprep.subr.mxu0 0.0
    %v3437 = vand.u32 %v305, 4294901760
    %3438 = vmatpush1.msra.mxu0 %v3437
    %3439 = vmatprep.subr.mxu0 0.0
    %v3440 = vand.u32 %v306, 4294901760
    %3441 = vmatpush1.msra.mxu0 %v3440
    %3442 = vmatprep.subr.mxu0 0.0
    %v3443 = vand.u32 %v307, 4294901760
    %3444 = vmatpush1.msra.mxu0 %v3443
    %3445 = vmatprep.subr.mxu0 0.0
    %v3446 = vand.u32 %v308, 4294901760
    %3447 = vmatpush1.msra.mxu0 %v3446
    %3448 = vmatprep.subr.mxu0 0.0
    %v3449 = vand.u32 %v309, 4294901760
    %3450 = vmatpush1.msra.mxu0 %v3449
    %3451 = vmatprep.subr.mxu0 0.0
    %v3452 = vand.u32 %v310, 4294901760
    %3453 = vmatpush1.msra.mxu0 %v3452
    %3454 = vmatprep.subr.mxu0 0.0
    %v3455 = vand.u32 %v311, 4294901760
    %3456 = vmatpush1.msra.mxu0 %v3455
    %3457 = vmatprep.subr.mxu0 0.0
    %v3458 = vand.u32 %v312, 4294901760
    %3459 = vmatpush1.msra.mxu0 %v3458
    %3460 = vmatprep.subr.mxu0 0.0
    %v3461 = vand.u32 %v313, 4294901760
    %3462 = vmatpush1.msra.mxu0 %v3461
    %3463 = vmatprep.subr.mxu0 0.0
    %v3464 = vand.u32 %v314, 4294901760
    %3465 = vmatpush1.msra.mxu0 %v3464
    %3466 = vmatprep.subr.mxu0 0.0
    %v3467 = vand.u32 %v315, 4294901760
    %3468 = vmatpush1.msra.mxu0 %v3467
    %3469 = vmatprep.subr.mxu0 0.0
    %v3470 = vand.u32 %v316, 4294901760
    %3471 = vmatpush1.msra.mxu0 %v3470
    %3472 = vmatprep.subr.mxu0 0.0
    %v3473 = vand.u32 %v317, 4294901760
    %3474 = vmatpush1.msra.mxu0 %v3473
    %3475 = vmatprep.subr.mxu0 0.0
    %v3476 = vand.u32 %v318, 4294901760
    %3477 = vmatpush1.msra.mxu0 %v3476
    %3478 = vmatprep.subr.mxu0 0.0
    %v3479 = vand.u32 %v319, 4294901760
    %3480 = vmatpush1.msra.mxu0 %v3479
    %3481 = vmatprep.subr.mxu0 0.0
    %v3482 = vand.u32 %v320, 4294901760
    %3483 = vmatpush1.msra.mxu0 %v3482
    %3484 = vmatprep.subr.mxu0 0.0
    %v3485 = vand.u32 %v321, 4294901760
    %3486 = vmatpush1.msra.mxu0 %v3485
    %3487 = vmatprep.subr.mxu0 0.0
    %v3488 = vand.u32 %v322, 4294901760
    %3489 = vmatpush1.msra.mxu0 %v3488
    %3490 = vmatprep.subr.mxu0 0.0
    %v3491 = vand.u32 %v323, 4294901760
    %3492 = vmatpush1.msra.mxu0 %v3491
    %3493 = vmatprep.subr.mxu0 0.0
    %v3494 = vand.u32 %v324, 4294901760
    %3495 = vmatpush1.msra.mxu0 %v3494
    %v3496 = vand.u32 %v196, 4294901760
    %v3497 = vsub.f32 %v196, %v3496
    %v3498 = vand.u32 %v3497, 4294901760
    %3499 = vmatprep.mubr.f32.mxu0 %v3498
    %v3500 = vand.u32 %v195, 4294901760
    %v3501 = vsub.f32 %v195, %v3500
    %v3502 = vand.u32 %v3501, 4294901760
    %3503 = vmatmul.mubr.f32.gmra.mrb[0].mxu0 %v3502
    %v3504 = vpop.f32.mrb[0].mxu0
    %v3505 = vadd.f32 %v3397, %v3504
    %v3506 = vpop.f32.mrb[0].mxu0
    %3507 = vdwg.mxu0
    %3508 = vmatprep.subr.mxu0 0.0
    %v3509 = vand.u32 %v293, 4294901760
    %v3510 = vsub.f32 %v293, %v3509
    %v3511 = vand.u32 %v3510, 4294901760
    %3512 = vmatpush1.msra.mxu0 %v3511
    %3513 = vmatprep.subr.mxu0 0.0
    %v3514 = vand.u32 %v294, 4294901760
    %v3515 = vsub.f32 %v294, %v3514
    %v3516 = vand.u32 %v3515, 4294901760
    %3517 = vmatpush1.msra.mxu0 %v3516
    %3518 = vmatprep.subr.mxu0 0.0
    %v3519 = vand.u32 %v295, 4294901760
    %v3520 = vsub.f32 %v295, %v3519
    %v3521 = vand.u32 %v3520, 4294901760
    %3522 = vmatpush1.msra.mxu0 %v3521
    %3523 = vmatprep.subr.mxu0 0.0
    %v3524 = vand.u32 %v296, 4294901760
    %v3525 = vsub.f32 %v296, %v3524
    %v3526 = vand.u32 %v3525, 4294901760
    %3527 = vmatpush1.msra.mxu0 %v3526
    %3528 = vmatprep.subr.mxu0 0.0
    %v3529 = vand.u32 %v297, 4294901760
    %v3530 = vsub.f32 %v297, %v3529
    %v3531 = vand.u32 %v3530, 4294901760
    %3532 = vmatpush1.msra.mxu0 %v3531
    %3533 = vmatprep.subr.mxu0 0.0
    %v3534 = vand.u32 %v298, 4294901760
    %v3535 = vsub.f32 %v298, %v3534
    %v3536 = vand.u32 %v3535, 4294901760
    %3537 = vmatpush1.msra.mxu0 %v3536
    %3538 = vmatprep.subr.mxu0 0.0
    %v3539 = vand.u32 %v299, 4294901760
    %v3540 = vsub.f32 %v299, %v3539
    %v3541 = vand.u32 %v3540, 4294901760
    %3542 = vmatpush1.msra.mxu0 %v3541
    %3543 = vmatprep.subr.mxu0 0.0
    %v3544 = vand.u32 %v300, 4294901760
    %v3545 = vsub.f32 %v300, %v3544
    %v3546 = vand.u32 %v3545, 4294901760
    %3547 = vmatpush1.msra.mxu0 %v3546
    %3548 = vmatprep.subr.mxu0 0.0
    %v3549 = vand.u32 %v301, 4294901760
    %v3550 = vsub.f32 %v301, %v3549
    %v3551 = vand.u32 %v3550, 4294901760
    %3552 = vmatpush1.msra.mxu0 %v3551
    %3553 = vmatprep.subr.mxu0 0.0
    %v3554 = vand.u32 %v302, 4294901760
    %v3555 = vsub.f32 %v302, %v3554
    %v3556 = vand.u32 %v3555, 4294901760
    %3557 = vmatpush1.msra.mxu0 %v3556
    %3558 = vmatprep.subr.mxu0 0.0
    %v3559 = vand.u32 %v303, 4294901760
    %v3560 = vsub.f32 %v303, %v3559
    %v3561 = vand.u32 %v3560, 4294901760
    %3562 = vmatpush1.msra.mxu0 %v3561
    %3563 = vmatprep.subr.mxu0 0.0
    %v3564 = vand.u32 %v304, 4294901760
    %v3565 = vsub.f32 %v304, %v3564
    %v3566 = vand.u32 %v3565, 4294901760
    %3567 = vmatpush1.msra.mxu0 %v3566
    %3568 = vmatprep.subr.mxu0 0.0
    %v3569 = vand.u32 %v305, 4294901760
    %v3570 = vsub.f32 %v305, %v3569
    %v3571 = vand.u32 %v3570, 4294901760
    %3572 = vmatpush1.msra.mxu0 %v3571
    %3573 = vmatprep.subr.mxu0 0.0
    %v3574 = vand.u32 %v306, 4294901760
    %v3575 = vsub.f32 %v306, %v3574
    %v3576 = vand.u32 %v3575, 4294901760
    %3577 = vmatpush1.msra.mxu0 %v3576
    %3578 = vmatprep.subr.mxu0 0.0
    %v3579 = vand.u32 %v307, 4294901760
    %v3580 = vsub.f32 %v307, %v3579
    %v3581 = vand.u32 %v3580, 4294901760
    %3582 = vmatpush1.msra.mxu0 %v3581
    %3583 = vmatprep.subr.mxu0 0.0
    %v3584 = vand.u32 %v308, 4294901760
    %v3585 = vsub.f32 %v308, %v3584
    %v3586 = vand.u32 %v3585, 4294901760
    %3587 = vmatpush1.msra.mxu0 %v3586
    %3588 = vmatprep.subr.mxu0 0.0
    %v3589 = vand.u32 %v309, 4294901760
    %v3590 = vsub.f32 %v309, %v3589
    %v3591 = vand.u32 %v3590, 4294901760
    %3592 = vmatpush1.msra.mxu0 %v3591
    %3593 = vmatprep.subr.mxu0 0.0
    %v3594 = vand.u32 %v310, 4294901760
    %v3595 = vsub.f32 %v310, %v3594
    %v3596 = vand.u32 %v3595, 4294901760
    %3597 = vmatpush1.msra.mxu0 %v3596
    %3598 = vmatprep.subr.mxu0 0.0
    %v3599 = vand.u32 %v311, 4294901760
    %v3600 = vsub.f32 %v311, %v3599
    %v3601 = vand.u32 %v3600, 4294901760
    %3602 = vmatpush1.msra.mxu0 %v3601
    %3603 = vmatprep.subr.mxu0 0.0
    %v3604 = vand.u32 %v312, 4294901760
    %v3605 = vsub.f32 %v312, %v3604
    %v3606 = vand.u32 %v3605, 4294901760
    %3607 = vmatpush1.msra.mxu0 %v3606
    %3608 = vmatprep.subr.mxu0 0.0
    %v3609 = vand.u32 %v313, 4294901760
    %v3610 = vsub.f32 %v313, %v3609
    %v3611 = vand.u32 %v3610, 4294901760
    %3612 = vmatpush1.msra.mxu0 %v3611
    %3613 = vmatprep.subr.mxu0 0.0
    %v3614 = vand.u32 %v314, 4294901760
    %v3615 = vsub.f32 %v314, %v3614
    %v3616 = vand.u32 %v3615, 4294901760
    %3617 = vmatpush1.msra.mxu0 %v3616
    %3618 = vmatprep.subr.mxu0 0.0
    %v3619 = vand.u32 %v315, 4294901760
    %v3620 = vsub.f32 %v315, %v3619
    %v3621 = vand.u32 %v3620, 4294901760
    %3622 = vmatpush1.msra.mxu0 %v3621
    %3623 = vmatprep.subr.mxu0 0.0
    %v3624 = vand.u32 %v316, 4294901760
    %v3625 = vsub.f32 %v316, %v3624
    %v3626 = vand.u32 %v3625, 4294901760
    %3627 = vmatpush1.msra.mxu0 %v3626
    %3628 = vmatprep.subr.mxu0 0.0
    %v3629 = vand.u32 %v317, 4294901760
    %v3630 = vsub.f32 %v317, %v3629
    %v3631 = vand.u32 %v3630, 4294901760
    %3632 = vmatpush1.msra.mxu0 %v3631
    %3633 = vmatprep.subr.mxu0 0.0
    %v3634 = vand.u32 %v318, 4294901760
    %v3635 = vsub.f32 %v318, %v3634
    %v3636 = vand.u32 %v3635, 4294901760
    %3637 = vmatpush1.msra.mxu0 %v3636
    %3638 = vmatprep.subr.mxu0 0.0
    %v3639 = vand.u32 %v319, 4294901760
    %v3640 = vsub.f32 %v319, %v3639
    %v3641 = vand.u32 %v3640, 4294901760
    %3642 = vmatpush1.msra.mxu0 %v3641
    %3643 = vmatprep.subr.mxu0 0.0
    %v3644 = vand.u32 %v320, 4294901760
    %v3645 = vsub.f32 %v320, %v3644
    %v3646 = vand.u32 %v3645, 4294901760
    %3647 = vmatpush1.msra.mxu0 %v3646
    %3648 = vmatprep.subr.mxu0 0.0
    %v3649 = vand.u32 %v321, 4294901760
    %v3650 = vsub.f32 %v321, %v3649
    %v3651 = vand.u32 %v3650, 4294901760
    %3652 = vmatpush1.msra.mxu0 %v3651
    %3653 = vmatprep.subr.mxu0 0.0
    %v3654 = vand.u32 %v322, 4294901760
    %v3655 = vsub.f32 %v322, %v3654
    %v3656 = vand.u32 %v3655, 4294901760
    %3657 = vmatpush1.msra.mxu0 %v3656
    %3658 = vmatprep.subr.mxu0 0.0
    %v3659 = vand.u32 %v323, 4294901760
    %v3660 = vsub.f32 %v323, %v3659
    %v3661 = vand.u32 %v3660, 4294901760
    %3662 = vmatpush1.msra.mxu0 %v3661
    %3663 = vmatprep.subr.mxu0 0.0
    %v3664 = vand.u32 %v324, 4294901760
    %v3665 = vsub.f32 %v324, %v3664
    %v3666 = vand.u32 %v3665, 4294901760
    %3667 = vmatpush1.msra.mxu0 %v3666
    %v3668 = vand.u32 %v196, 4294901760
    %3669 = vmatprep.mubr.f32.mxu0 %v3668
    %v3670 = vand.u32 %v195, 4294901760
    %3671 = vmatmul.mubr.f32.gmra.mrb[0].mxu0 %v3670
    %v3672 = vpop.f32.mrb[0].mxu0
    %v3673 = vadd.f32 %v3505, %v3672
    %v3674 = vpop.f32.mrb[0].mxu0
    %3675 = vdwg.mxu0
    %3676 = vmatprep.subr.mxu0 0.0
    %v3677 = vand.u32 %v293, 4294901760
    %3678 = vmatpush1.msra.mxu0 %v3677
    %3679 = vmatprep.subr.mxu0 0.0
    %v3680 = vand.u32 %v294, 4294901760
    %3681 = vmatpush1.msra.mxu0 %v3680
    %3682 = vmatprep.subr.mxu0 0.0
    %v3683 = vand.u32 %v295, 4294901760
    %3684 = vmatpush1.msra.mxu0 %v3683
    %3685 = vmatprep.subr.mxu0 0.0
    %v3686 = vand.u32 %v296, 4294901760
    %3687 = vmatpush1.msra.mxu0 %v3686
    %3688 = vmatprep.subr.mxu0 0.0
    %v3689 = vand.u32 %v297, 4294901760
    %3690 = vmatpush1.msra.mxu0 %v3689
    %3691 = vmatprep.subr.mxu0 0.0
    %v3692 = vand.u32 %v298, 4294901760
    %3693 = vmatpush1.msra.mxu0 %v3692
    %3694 = vmatprep.subr.mxu0 0.0
    %v3695 = vand.u32 %v299, 4294901760
    %3696 = vmatpush1.msra.mxu0 %v3695
    %3697 = vmatprep.subr.mxu0 0.0
    %v3698 = vand.u32 %v300, 4294901760
    %3699 = vmatpush1.msra.mxu0 %v3698
    %3700 = vmatprep.subr.mxu0 0.0
    %v3701 = vand.u32 %v301, 4294901760
    %3702 = vmatpush1.msra.mxu0 %v3701
    %3703 = vmatprep.subr.mxu0 0.0
    %v3704 = vand.u32 %v302, 4294901760
    %3705 = vmatpush1.msra.mxu0 %v3704
    %3706 = vmatprep.subr.mxu0 0.0
    %v3707 = vand.u32 %v303, 4294901760
    %3708 = vmatpush1.msra.mxu0 %v3707
    %3709 = vmatprep.subr.mxu0 0.0
    %v3710 = vand.u32 %v304, 4294901760
    %3711 = vmatpush1.msra.mxu0 %v3710
    %3712 = vmatprep.subr.mxu0 0.0
    %v3713 = vand.u32 %v305, 4294901760
    %3714 = vmatpush1.msra.mxu0 %v3713
    %3715 = vmatprep.subr.mxu0 0.0
    %v3716 = vand.u32 %v306, 4294901760
    %3717 = vmatpush1.msra.mxu0 %v3716
    %3718 = vmatprep.subr.mxu0 0.0
    %v3719 = vand.u32 %v307, 4294901760
    %3720 = vmatpush1.msra.mxu0 %v3719
    %3721 = vmatprep.subr.mxu0 0.0
    %v3722 = vand.u32 %v308, 4294901760
    %3723 = vmatpush1.msra.mxu0 %v3722
    %3724 = vmatprep.subr.mxu0 0.0
    %v3725 = vand.u32 %v309, 4294901760
    %3726 = vmatpush1.msra.mxu0 %v3725
    %3727 = vmatprep.subr.mxu0 0.0
    %v3728 = vand.u32 %v310, 4294901760
    %3729 = vmatpush1.msra.mxu0 %v3728
    %3730 = vmatprep.subr.mxu0 0.0
    %v3731 = vand.u32 %v311, 4294901760
    %3732 = vmatpush1.msra.mxu0 %v3731
    %3733 = vmatprep.subr.mxu0 0.0
    %v3734 = vand.u32 %v312, 4294901760
    %3735 = vmatpush1.msra.mxu0 %v3734
    %3736 = vmatprep.subr.mxu0 0.0
    %v3737 = vand.u32 %v313, 4294901760
    %3738 = vmatpush1.msra.mxu0 %v3737
    %3739 = vmatprep.subr.mxu0 0.0
    %v3740 = vand.u32 %v314, 4294901760
    %3741 = vmatpush1.msra.mxu0 %v3740
    %3742 = vmatprep.subr.mxu0 0.0
    %v3743 = vand.u32 %v315, 4294901760
    %3744 = vmatpush1.msra.mxu0 %v3743
    %3745 = vmatprep.subr.mxu0 0.0
    %v3746 = vand.u32 %v316, 4294901760
    %3747 = vmatpush1.msra.mxu0 %v3746
    %3748 = vmatprep.subr.mxu0 0.0
    %v3749 = vand.u32 %v317, 4294901760
    %3750 = vmatpush1.msra.mxu0 %v3749
    %3751 = vmatprep.subr.mxu0 0.0
    %v3752 = vand.u32 %v318, 4294901760
    %3753 = vmatpush1.msra.mxu0 %v3752
    %3754 = vmatprep.subr.mxu0 0.0
    %v3755 = vand.u32 %v319, 4294901760
    %3756 = vmatpush1.msra.mxu0 %v3755
    %3757 = vmatprep.subr.mxu0 0.0
    %v3758 = vand.u32 %v320, 4294901760
    %3759 = vmatpush1.msra.mxu0 %v3758
    %3760 = vmatprep.subr.mxu0 0.0
    %v3761 = vand.u32 %v321, 4294901760
    %3762 = vmatpush1.msra.mxu0 %v3761
    %3763 = vmatprep.subr.mxu0 0.0
    %v3764 = vand.u32 %v322, 4294901760
    %3765 = vmatpush1.msra.mxu0 %v3764
    %3766 = vmatprep.subr.mxu0 0.0
    %v3767 = vand.u32 %v323, 4294901760
    %3768 = vmatpush1.msra.mxu0 %v3767
    %3769 = vmatprep.subr.mxu0 0.0
    %v3770 = vand.u32 %v324, 4294901760
    %3771 = vmatpush1.msra.mxu0 %v3770
    %v3772 = vand.u32 %v196, 4294901760
    %3773 = vmatprep.mubr.f32.mxu0 %v3772
    %v3774 = vand.u32 %v195, 4294901760
    %3775 = vmatmul.mubr.f32.gmra.mrb[0].mxu0 %v3774
    %v3776 = vpop.f32.mrb[0].mxu0
    %v3777 = vadd.f32 %v3673, %v3776
    %v3778 = vpop.f32.mrb[0].mxu0
    %3779 = vdwg.mxu0
    %3780 = vst [vmem:[#allocation11] sm:$0xff] %v3777
    // Predicated region
    $region42: #{tpu_custom_call.1} parent=1 // pred_check
      _
    $region43: #{tpu_custom_call.1} parent=1 // pred_check_branch
      %3782 = sbr.rel (0) target = $region45
    $region44: #{tpu_custom_call.1} parent=1 // pred_region
      %s3784 = ssub.s32 128, 128
      %3785 = vsyncadd [#allocation4], %s3784
      %s3787 = sshll.u32 [#allocation11], 4
      %s3788 = int_to_ptr.vmem [resolvable:$true] %s3787
      %3790 = dma.vmem_to_hbm [thread:$0]  %s3788, 128, %s5, [#allocation4]
    $region45: #{tpu_custom_call.1} parent=1 // pred_fallthru
      _
    // Predicated region
    $region46: #{tpu_custom_call.1} parent=1 // pred_check
      _
    $region47: #{tpu_custom_call.1} parent=1 // pred_check_branch
      %3792 = sbr.rel (0) target = $region49
    $region48: #{tpu_custom_call.1} parent=1 // pred_region
      %3793 = dma.done [#allocation4], 128
    $region49: #{tpu_custom_call.1} parent=1 // pred_fallthru
      _
    %3794 = vsyncpa [#allocation3], 1
    %3795 = vsyncpa [#allocation6], 1
    %3796 = vsyncpa [#allocation9], 1
    %3797 = vsyncpa [#allocation4], 1

</llo_original>
